<compile_context>
chip_gen: v5e
topology: v5e:2x2
jax: 0.10.0
libtpu: 0.0.40
codegen_flags: <defaults>
</compile_context>

<pallas_src>
import functools
import jax
import jax.numpy as jnp
from jax.experimental import pallas as pl
from jax.experimental.pallas import tpu as pltpu

VMEM = pltpu.MemorySpace.VMEM
SMEM = pltpu.MemorySpace.SMEM


# ----------------------------------------------------------------------------
# Kernel A: stride-1 multi-tap conv, channel-last.
#   o[b, l, :] = act( sum_k xp[b, l+k, :] @ w[k] + bias )
# ----------------------------------------------------------------------------
def _conv_nlc_kernel(xp_ref, w_ref, b_ref, o_ref, *, relu):
    B, Lout, _ = o_ref.shape
    K = w_ref.shape[0]
    for b in range(B):                       # B is tiny and static -> unrolled
        acc = None
        for k in range(K):
            xs = xp_ref[b, pl.ds(k, Lout), :]                       # (Lout, Cin)
            t = jnp.dot(xs, w_ref[k], preferred_element_type=jnp.float32)
            acc = t if acc is None else acc + t
        y = acc + b_ref[...]                                        # f32
        if relu:
            y = jnp.maximum(y, 0.0)
        o_ref[b, :, :] = y.astype(o_ref.dtype)


def conv_nlc(xp, w_kcd, bias, relu, out_dtype=jnp.bfloat16):
    """xp: (B, Lp, Cin) padded input; w_kcd: (K, Cin, Cout); bias: (1, Cout) f32."""
    B, Lp, Cin = xp.shape
    K, _, Cout = w_kcd.shape
    Lout = Lp - K + 1
    flops = 2 * B * Lout * Cin * Cout * K
    bytes_accessed = int(xp.size * xp.dtype.itemsize + w_kcd.size * w_kcd.dtype.itemsize
                         + bias.size * 4 + B * Lout * Cout * jnp.dtype(out_dtype).itemsize)
    return pl.pallas_call(
        functools.partial(_conv_nlc_kernel, relu=relu),
        out_shape=jax.ShapeDtypeStruct((B, Lout, Cout), out_dtype),
        in_specs=[pl.BlockSpec(memory_space=VMEM)] * 3,
        out_specs=pl.BlockSpec(memory_space=VMEM),
        cost_estimate=pl.CostEstimate(flops=flops, transcendentals=0,
                                      bytes_accessed=bytes_accessed),
    )(xp, w_kcd, bias)


# ----------------------------------------------------------------------------
# Kernel B: fused [mu & log_var 1x1 conv] + reparameterize + [dec1 1x1 convT + ReLU]
# ----------------------------------------------------------------------------
def _latent_dec1_kernel(h_ref, wml_ref, bml_ref, eps_ref, wd1_ref, bd1_ref,
                        mu_ref, lv_ref, d1_ref):
    B, _, latent = mu_ref.shape
    for b in range(B):
        ml = jnp.dot(h_ref[b], wml_ref[...],
                     preferred_element_type=jnp.float32) + bml_ref[...]   # (Llat, 2*latent) f32
        mu = ml[:, :latent]
        lv = ml[:, latent:]
        std = jnp.exp(0.5 * lv)                                           # f32 EUP
        z = mu + eps_ref[b] * std                                         # f32
        d1 = jnp.dot(z.astype(wd1_ref.dtype), wd1_ref[...],
                     preferred_element_type=jnp.float32) + bd1_ref[...]
        d1 = jnp.maximum(d1, 0.0)
        mu_ref[b, :, :] = mu
        lv_ref[b, :, :] = lv
        d1_ref[b, :, :] = d1.astype(d1_ref.dtype)


def latent_and_dec1(h, w_ml, b_ml, eps, w_d1, b_d1):
    B, Llat, Ch = h.shape
    latent = eps.shape[2]
    Cd = w_d1.shape[1]
    flops = 2 * B * Llat * (Ch * 2 * latent + latent * Cd)
    bytes_accessed = int(h.size * h.dtype.itemsize + w_ml.size * w_ml.dtype.itemsize
                         + eps.size * 4 + w_d1.size * w_d1.dtype.itemsize
                         + B * Llat * (2 * latent * 2 * 4 + Cd * 2) + 4 * (2 * latent + Cd))
    return pl.pallas_call(
        _latent_dec1_kernel,
        out_shape=(
            jax.ShapeDtypeStruct((B, Llat, latent), jnp.float32),   # mu
            jax.ShapeDtypeStruct((B, Llat, latent), jnp.float32),   # log_var
            jax.ShapeDtypeStruct((B, Llat, Cd), jnp.bfloat16),      # dec1 output
        ),
        in_specs=[pl.BlockSpec(memory_space=VMEM)] * 6,
        out_specs=(pl.BlockSpec(memory_space=VMEM),) * 3,
        cost_estimate=pl.CostEstimate(flops=flops, transcendentals=B * Llat * latent,
                                      bytes_accessed=bytes_accessed),
    )(h, w_ml, b_ml, eps, w_d1, b_d1)


# ----------------------------------------------------------------------------
# Kernels C/D: ConvTranspose1d(K=4, stride=2, padding=1, output_padding=1), channel-last,
# decomposed into even/odd output phases (stride-1, 2 taps each, no zero upsampling):
#   xp = pad(x, 1 left, 1 right) along L
#   y_even[m] = xp[m]   @ w[3] + xp[m+1] @ w[1] + b     m in [0, Lin]
#   y_odd[m]  = xp[m+1] @ w[2] + xp[m+2] @ w[0] + b     m in [0, Lin-1]
#   y[2m] = y_even[m], y[2m+1] = y_odd[m]               Lout = 2*Lin + 1
# ----------------------------------------------------------------------------
def _convT_phases(xp_ref, w_ref, b_ref, Lin, b):
    x0 = xp_ref[b, pl.ds(0, Lin + 1), :]
    x1 = xp_ref[b, pl.ds(1, Lin + 1), :]
    ye = (jnp.dot(x0, w_ref[3], preferred_element_type=jnp.float32)
          + jnp.dot(x1, w_ref[1], preferred_element_type=jnp.float32)
          + b_ref[...])
    x1s = xp_ref[b, pl.ds(1, Lin), :]
    x2 = xp_ref[b, pl.ds(2, Lin), :]
    yo = (jnp.dot(x1s, w_ref[2], preferred_element_type=jnp.float32)
          + jnp.dot(x2, w_ref[0], preferred_element_type=jnp.float32)
          + b_ref[...])
    return ye, yo


def _convT_s2_kernel(xp_ref, w_ref, b_ref, oe_ref, oo_ref, *, relu):
    B, Lin, _ = oo_ref.shape
    for b in range(B):
        ye, yo = _convT_phases(xp_ref, w_ref, b_ref, Lin, b)
        if relu:
            ye = jnp.maximum(ye, 0.0)
            yo = jnp.maximum(yo, 0.0)
        oe_ref[b, :, :] = ye.astype(oe_ref.dtype)
        oo_ref[b, :, :] = yo.astype(oo_ref.dtype)


def convT_s2(xp, w_kcd, bias, relu, out_dtype=jnp.bfloat16):
    B, Lp, Cin = xp.shape
    Lin = Lp - 2
    Cout = w_kcd.shape[2]
    flops = 2 * B * (2 * Lin + 1) * Cin * Cout * 2
    bytes_accessed = int(xp.size * xp.dtype.itemsize + w_kcd.size * w_kcd.dtype.itemsize
                         + bias.size * 4
                         + B * (2 * Lin + 1) * Cout * jnp.dtype(out_dtype).itemsize)
    return pl.pallas_call(
        functools.partial(_convT_s2_kernel, relu=relu),
        out_shape=(jax.ShapeDtypeStruct((B, Lin + 1, Cout), out_dtype),
                   jax.ShapeDtypeStruct((B, Lin, Cout), out_dtype)),
        in_specs=[pl.BlockSpec(memory_space=VMEM)] * 3,
        out_specs=(pl.BlockSpec(memory_space=VMEM),) * 2,
        cost_estimate=pl.CostEstimate(flops=flops, transcendentals=0,
                                      bytes_accessed=bytes_accessed),
    )(xp, w_kcd, bias)


def _convT_s2_loss_kernel(xp_ref, w_ref, b_ref, xe_ref, xo_ref, mu_ref, lv_ref,
                          oe_ref, oo_ref, loss_ref, *, kl_beta):
    B, Lin, C = oo_ref.shape
    L = 2 * Lin + 1
    sq = jnp.float32(0.0)
    kld_sum = jnp.float32(0.0)
    for b in range(B):
        ye, yo = _convT_phases(xp_ref, w_ref, b_ref, Lin, b)      # f32, no ReLU (last layer)
        de = ye - xe_ref[b]
        do = yo - xo_ref[b]
        sq = sq + jnp.sum(de * de) + jnp.sum(do * do)
        oe_ref[b, :, :] = ye
        oo_ref[b, :, :] = yo
        mu = mu_ref[b]
        lv = lv_ref[b]
        kld_sum = kld_sum + jnp.sum(1.0 + lv - mu * mu - jnp.exp(lv))
    recon = sq / float(B * L * C)                                  # F.mse_loss(..., 'mean')
    kld = -0.5 * kld_sum / float(B)                                # mean over batch of per-sample sums
    total = recon + kl_beta * kld
    loss_ref[0] = total
    loss_ref[1] = recon
    loss_ref[2] = kld


def convT_s2_with_loss(xp, w_kcd, bias, x_even, x_odd, mu, log_var, kl_beta):
    B, Lp, Cin = xp.shape
    Lin = Lp - 2
    Cout = w_kcd.shape[2]
    flops = 2 * B * (2 * Lin + 1) * Cin * Cout * 2 + 8 * B * (2 * Lin + 1) * Cout
    bytes_accessed = int(xp.size * xp.dtype.itemsize + w_kcd.size * w_kcd.dtype.itemsize
                         + (x_even.size + x_odd.size + mu.size + log_var.size) * 4
                         + B * (2 * Lin + 1) * Cout * 4)
    return pl.pallas_call(
        functools.partial(_convT_s2_loss_kernel, kl_beta=float(kl_beta)),
        out_shape=(
            jax.ShapeDtypeStruct((B, Lin + 1, Cout), jnp.float32),
            jax.ShapeDtypeStruct((B, Lin, Cout), jnp.float32),
            jax.ShapeDtypeStruct((3,), jnp.float32),               # [total, recon, kld]
        ),
        in_specs=[pl.BlockSpec(memory_space=VMEM)] * 7,
        out_specs=(
            pl.BlockSpec(memory_space=VMEM),
            pl.BlockSpec(memory_space=VMEM),
            pl.BlockSpec(memory_space=SMEM),
        ),
        cost_estimate=pl.CostEstimate(flops=flops, transcendentals=mu.size,
                                      bytes_accessed=bytes_accessed),
    )(xp, w_kcd, bias, x_even, x_odd, mu, log_var)


# ----------------------------------------------------------------------------
# Parameter init (PyTorch layouts / default-style uniform bounds) + kernel-layout prep
# ----------------------------------------------------------------------------
def _conv_init(key, out_c, in_c, k):
    kw, kb = jax.random.split(key)
    bound = 1.0 / float((in_c * k) ** 0.5)
    w = jax.random.uniform(kw, (out_c, in_c, k), jnp.float32, -bound, bound)
    b = jax.random.uniform(kb, (out_c,), jnp.float32, -bound, bound)
    return w, b


def _convT_init(key, in_c, out_c, k):
    kw, kb = jax.random.split(key)
    bound = 1.0 / float((out_c * k) ** 0.5)
    w = jax.random.uniform(kw, (in_c, out_c, k), jnp.float32, -bound, bound)
    b = jax.random.uniform(kb, (out_c,), jnp.float32, -bound, bound)
    return w, b


def init_params(key, input_channels, latent_dim):
    ks = jax.random.split(key, 9)
    p = {}
    p["enc1_w"], p["enc1_b"] = _conv_init(ks[0], 64, input_channels, 4)
    p["enc2_w"], p["enc2_b"] = _conv_init(ks[1], 128, 64, 4)
    p["enc3_w"], p["enc3_b"] = _conv_init(ks[2], 256, 128, 3)
    p["mu_w"], p["mu_b"] = _conv_init(ks[3], latent_dim, 256, 1)
    p["lv_w"], p["lv_b"] = _conv_init(ks[4], latent_dim, 256, 1)
    p["dec1_w"], p["dec1_b"] = _convT_init(ks[5], latent_dim, 256, 1)
    p["dec2_w"], p["dec2_b"] = _convT_init(ks[6], 256, 128, 3)
    p["dec3_w"], p["dec3_b"] = _convT_init(ks[7], 128, 64, 4)
    p["dec4_w"], p["dec4_b"] = _convT_init(ks[8], 64, input_channels, 4)
    return p


def prepare_params(p, dtype=jnp.bfloat16):
    """Convert PyTorch-layout params to the channel-last / tap-major kernel layout (once, outside jit)."""
    conv_w = lambda w: jnp.transpose(w, (2, 1, 0)).astype(dtype)              # (Cout,Cin,K)->(K,Cin,Cout)
    convT_w = lambda w: jnp.transpose(w, (2, 0, 1)).astype(dtype)             # (Cin,Cout,K)->(K,Cin,Cout)
    convT_w_flip = lambda w: jnp.transpose(jnp.flip(w, 2), (2, 0, 1)).astype(dtype)
    b2 = lambda b: b.reshape(1, -1).astype(jnp.float32)

    kp = {}
    # stride-2 K=4 encoder convs -> stride-1 K=2 convs over channel-paired rows
    w1 = conv_w(p["enc1_w"])
    kp["enc1_w"] = w1.reshape(2, 2 * w1.shape[1], w1.shape[2])
    kp["enc1_b"] = b2(p["enc1_b"])
    w2 = conv_w(p["enc2_w"])
    kp["enc2_w"] = w2.reshape(2, 2 * w2.shape[1], w2.shape[2])
    kp["enc2_b"] = b2(p["enc2_b"])
    kp["enc3_w"] = conv_w(p["enc3_w"])
    kp["enc3_b"] = b2(p["enc3_b"])
    # fused mu / log_var 1x1 conv -> single (256, 2*latent) matmul weight
    kp["mulv_w"] = jnp.concatenate([p["mu_w"][:, :, 0].T, p["lv_w"][:, :, 0].T], axis=1).astype(dtype)
    kp["mulv_b"] = jnp.concatenate([p["mu_b"], p["lv_b"]]).reshape(1, -1).astype(jnp.float32)
    # dec1: 1x1 convT == plain (latent, 256) matmul
    kp["dec1_w"] = p["dec1_w"][:, :, 0].astype(dtype)
    kp["dec1_b"] = b2(p["dec1_b"])
    # dec2: stride-1 convT == conv with flipped taps
    kp["dec2_w"] = convT_w_flip(p["dec2_w"])
    kp["dec2_b"] = b2(p["dec2_b"])
    # dec3 / dec4: stride-2 convT, tap-major for the even/odd decomposition
    kp["dec3_w"] = convT_w(p["dec3_w"])
    kp["dec3_b"] = b2(p["dec3_b"])
    kp["dec4_w"] = convT_w(p["dec4_w"])
    kp["dec4_b"] = b2(p["dec4_b"])
    return kp


# ----------------------------------------------------------------------------
# Host-side glue (pads / pure reshapes only — no gathers, scatters or per-layer transposes)
# ----------------------------------------------------------------------------
def _pad_pair_s2(x_nlc, Lout):
    """Prepare a stride-2, K=4, pad-1 conv input as a stride-1 K=2 conv over channel pairs."""
    B, L, C = x_nlc.shape
    xp = jnp.pad(x_nlc, ((0, 0), (1, 2 * Lout + 1 - L), (0, 0)))
    return xp.reshape(B, Lout + 1, 2 * C)           # pure (layout-preserving) reshape


def _pad_l(x_nlc):
    return jnp.pad(x_nlc, ((0, 0), (1, 1), (0, 0)))


def _interleave(ye, yo):
    """ye: (B, n+1, C), yo: (B, n, C) -> (B, 2n+1, C); stack + reshape, no gather."""
    B, np1, C = ye.shape
    n = np1 - 1
    body = jnp.stack([ye[:, :n, :], yo], axis=2).reshape(B, 2 * n, C)
    return jnp.concatenate([body, ye[:, n:, :]], axis=1)


# ----------------------------------------------------------------------------
# Full VAE forward (mirrors VAE.forward)
# ----------------------------------------------------------------------------
def vae_forward(kp, x, eps, kl_beta=1.0):
    B, C, L = x.shape
    x_nlc = jnp.transpose(x, (0, 2, 1))              # (B, L, C) f32, kept for the loss
    xc = x_nlc.astype(jnp.bfloat16)

    # encoder
    L1 = (L + 2 - 4) // 2 + 1
    L2 = (L1 + 2 - 4) // 2 + 1
    assert 4 * L2 + 3 == L, "decoder only reproduces the input length when L ≡ 3 (mod 4)"
    h = conv_nlc(_pad_pair_s2(xc, L1), kp["enc1_w"], kp["enc1_b"], relu=True)
    h = conv_nlc(_pad_pair_s2(h, L2), kp["enc2_w"], kp["enc2_b"], relu=True)
    h = conv_nlc(_pad_l(h), kp["enc3_w"], kp["enc3_b"], relu=True)

    # mu / log_var / reparameterize / dec1 (single fused kernel)
    mu, log_var, d = latent_and_dec1(h, kp["mulv_w"], kp["mulv_b"], eps,
                                     kp["dec1_w"], kp["dec1_b"])

    # decoder
    d = conv_nlc(_pad_l(d), kp["dec2_w"], kp["dec2_b"], relu=True)
    de, do = convT_s2(_pad_l(d), kp["dec3_w"], kp["dec3_b"], relu=True)
    d = _interleave(de, do)                          # (B, 2*L2+1, 64)

    # dec4 + losses fused; loss targets are the even/odd phase slices of x (plain strided slices)
    xe, xo = x_nlc[:, 0::2, :], x_nlc[:, 1::2, :]
    re, ro, losses = convT_s2_with_loss(_pad_l(d), kp["dec4_w"], kp["dec4_b"],
                                        xe, xo, mu, log_var, kl_beta)
    x_recon = jnp.transpose(_interleave(re, ro), (0, 2, 1))      # back to (B, C, L)

    total_loss, recon_loss, kld_loss = losses[0], losses[1], losses[2]
    mu_for_transformer = mu                          # channel-last == mu.permute(0, 2, 1)
    return total_loss, x_recon, recon_loss, kld_loss, mu_for_transformer


if __name__ == "__main__":
    B, C, L = 2, 4, 19          # L ≡ 3 (mod 4) required by the module's own shape algebra
    latent_dim = 8
    kl_beta = 1.0

    key = jax.random.PRNGKey(0)
    kx, keps, kp = jax.random.split(key, 3)

    x = jax.random.normal(kx, (B, C, L), jnp.float32)
    params = prepare_params(init_params(kp, C, latent_dim))

    # latent sequence length after the two stride-2 convs
    L1 = (L + 2 - 4) // 2 + 1
    L2 = (L1 + 2 - 4) // 2 + 1
    # torch.randn_like eps is supplied as an explicit (channel-last) input for determinism
    eps = jax.random.normal(keps, (B, L2, latent_dim), jnp.float32)

    fwd = jax.jit(functools.partial(vae_forward, kl_beta=kl_beta))
    total_loss, x_recon, recon_loss, kld_loss, mu_t = fwd(params, x, eps)
    jax.block_until_ready((total_loss, x_recon, recon_loss, kld_loss, mu_t))

    assert x_recon.shape == (B, C, L)
    assert mu_t.shape == (B, L2, latent_dim)
    print("KERNEL_OK")
</pallas_src>

<mosaic_0001>
module attributes {stable_mosaic.version = 11 : i64} {
  func.func @_conv_nlc_kernel(%arg0: memref<2x5x128xbf16, #tpu.memory_space<vmem>>, %arg1: memref<2x128x128xbf16, #tpu.memory_space<vmem>>, %arg2: memref<1x128xf32, #tpu.memory_space<vmem>>, %arg3: memref<2x4x128xbf16, #tpu.memory_space<vmem>>) attributes {dimension_semantics = [], scalar_prefetch = 0 : i64, scratch_operands = 0 : i64, tpu.core_type = #tpu.core_type<tc>} {
    %c0 = arith.constant 0 : index
    %c0_0 = arith.constant 0 : index
    %c0_1 = arith.constant 0 : index
    %0 = vector.load %arg0[%c0, %c0_0, %c0_1] : memref<2x5x128xbf16, #tpu.memory_space<vmem>>, vector<1x4x128xbf16>
    %1 = vector.shape_cast %0 : vector<1x4x128xbf16> to vector<4x128xbf16>
    %c0_2 = arith.constant 0 : index
    %c0_3 = arith.constant 0 : index
    %c0_4 = arith.constant 0 : index
    %2 = vector.load %arg1[%c0_2, %c0_3, %c0_4] : memref<2x128x128xbf16, #tpu.memory_space<vmem>>, vector<1x128x128xbf16>
    %3 = vector.shape_cast %2 : vector<1x128x128xbf16> to vector<128x128xbf16>
    %cst = arith.constant dense<0.000000e+00> : vector<4x128xf32>
    %4 = tpu.matmul %1, %3, %cst {dimension_numbers = #tpu.dot_dimension_numbers<[1], [0], [0], [1], [0, 0, 1, 1], [], []>} : vector<4x128xbf16>, vector<128x128xbf16>, vector<4x128xf32> -> vector<4x128xf32>
    %c0_5 = arith.constant 0 : index
    %c1 = arith.constant 1 : index
    %c0_6 = arith.constant 0 : index
    %5 = vector.load %arg0[%c0_5, %c1, %c0_6] : memref<2x5x128xbf16, #tpu.memory_space<vmem>>, vector<1x4x128xbf16>
    %6 = vector.shape_cast %5 : vector<1x4x128xbf16> to vector<4x128xbf16>
    %c1_7 = arith.constant 1 : index
    %c0_8 = arith.constant 0 : index
    %c0_9 = arith.constant 0 : index
    %7 = vector.load %arg1[%c1_7, %c0_8, %c0_9] : memref<2x128x128xbf16, #tpu.memory_space<vmem>>, vector<1x128x128xbf16>
    %8 = vector.shape_cast %7 : vector<1x128x128xbf16> to vector<128x128xbf16>
    %cst_10 = arith.constant dense<0.000000e+00> : vector<4x128xf32>
    %9 = tpu.matmul %6, %8, %cst_10 {dimension_numbers = #tpu.dot_dimension_numbers<[1], [0], [0], [1], [0, 0, 1, 1], [], []>} : vector<4x128xbf16>, vector<128x128xbf16>, vector<4x128xf32> -> vector<4x128xf32>
    %10 = arith.addf %4, %9 : vector<4x128xf32>
    %c0_11 = arith.constant 0 : index
    %c0_12 = arith.constant 0 : index
    %11 = vector.load %arg2[%c0_11, %c0_12] : memref<1x128xf32, #tpu.memory_space<vmem>>, vector<1x128xf32>
    %12 = vector.broadcast %11 : vector<1x128xf32> to vector<4x128xf32>
    %13 = arith.addf %10, %12 : vector<4x128xf32>
    %cst_13 = arith.constant 0.000000e+00 : f32
    %14 = vector.broadcast %cst_13 : f32 to vector<4x128xf32>
    %15 = arith.maximumf %13, %14 : vector<4x128xf32>
    %16 = arith.truncf %15 : vector<4x128xf32> to vector<4x128xbf16>
    %c0_14 = arith.constant 0 : index
    %c0_15 = arith.constant 0 : index
    %c0_16 = arith.constant 0 : index
    %17 = vector.load %arg3[%c0_14, %c0_15, %c0_16] : memref<2x4x128xbf16, #tpu.memory_space<vmem>>, vector<1x4x128xbf16>
    %18 = vector.shape_cast %17 : vector<1x4x128xbf16> to vector<4x128xbf16>
    %19 = vector.shape_cast %16 : vector<4x128xbf16> to vector<1x4x128xbf16>
    tpu.vector_store %arg3[%c0_14, %c0_15, %c0_16], %19 {strides = array<i32>} : memref<2x4x128xbf16, #tpu.memory_space<vmem>>, vector<1x4x128xbf16>,
    %c1_17 = arith.constant 1 : index
    %c0_18 = arith.constant 0 : index
    %c0_19 = arith.constant 0 : index
    %20 = vector.load %arg0[%c1_17, %c0_18, %c0_19] : memref<2x5x128xbf16, #tpu.memory_space<vmem>>, vector<1x4x128xbf16>
    %21 = vector.shape_cast %20 : vector<1x4x128xbf16> to vector<4x128xbf16>
    %c0_20 = arith.constant 0 : index
    %c0_21 = arith.constant 0 : index
    %c0_22 = arith.constant 0 : index
    %22 = vector.load %arg1[%c0_20, %c0_21, %c0_22] : memref<2x128x128xbf16, #tpu.memory_space<vmem>>, vector<1x128x128xbf16>
    %23 = vector.shape_cast %22 : vector<1x128x128xbf16> to vector<128x128xbf16>
    %cst_23 = arith.constant dense<0.000000e+00> : vector<4x128xf32>
    %24 = tpu.matmul %21, %23, %cst_23 {dimension_numbers = #tpu.dot_dimension_numbers<[1], [0], [0], [1], [0, 0, 1, 1], [], []>} : vector<4x128xbf16>, vector<128x128xbf16>, vector<4x128xf32> -> vector<4x128xf32>
    %c1_24 = arith.constant 1 : index
    %c1_25 = arith.constant 1 : index
    %c0_26 = arith.constant 0 : index
    %25 = vector.load %arg0[%c1_24, %c1_25, %c0_26] : memref<2x5x128xbf16, #tpu.memory_space<vmem>>, vector<1x4x128xbf16>
    %26 = vector.shape_cast %25 : vector<1x4x128xbf16> to vector<4x128xbf16>
    %c1_27 = arith.constant 1 : index
    %c0_28 = arith.constant 0 : index
    %c0_29 = arith.constant 0 : index
    %27 = vector.load %arg1[%c1_27, %c0_28, %c0_29] : memref<2x128x128xbf16, #tpu.memory_space<vmem>>, vector<1x128x128xbf16>
    %28 = vector.shape_cast %27 : vector<1x128x128xbf16> to vector<128x128xbf16>
    %cst_30 = arith.constant dense<0.000000e+00> : vector<4x128xf32>
    %29 = tpu.matmul %26, %28, %cst_30 {dimension_numbers = #tpu.dot_dimension_numbers<[1], [0], [0], [1], [0, 0, 1, 1], [], []>} : vector<4x128xbf16>, vector<128x128xbf16>, vector<4x128xf32> -> vector<4x128xf32>
    %30 = arith.addf %24, %29 : vector<4x128xf32>
    %c0_31 = arith.constant 0 : index
    %c0_32 = arith.constant 0 : index
    %31 = vector.load %arg2[%c0_31, %c0_32] : memref<1x128xf32, #tpu.memory_space<vmem>>, vector<1x128xf32>
    %32 = vector.broadcast %31 : vector<1x128xf32> to vector<4x128xf32>
    %33 = arith.addf %30, %32 : vector<4x128xf32>
    %cst_33 = arith.constant 0.000000e+00 : f32
    %34 = vector.broadcast %cst_33 : f32 to vector<4x128xf32>
    %35 = arith.maximumf %33, %34 : vector<4x128xf32>
    %36 = arith.truncf %35 : vector<4x128xf32> to vector<4x128xbf16>
    %c1_34 = arith.constant 1 : index
    %c0_35 = arith.constant 0 : index
    %c0_36 = arith.constant 0 : index
    %37 = vector.load %arg3[%c1_34, %c0_35, %c0_36] : memref<2x4x128xbf16, #tpu.memory_space<vmem>>, vector<1x4x128xbf16>
    %38 = vector.shape_cast %37 : vector<1x4x128xbf16> to vector<4x128xbf16>
    %39 = vector.shape_cast %36 : vector<4x128xbf16> to vector<1x4x128xbf16>
    tpu.vector_store %arg3[%c1_34, %c0_35, %c0_36], %39 {strides = array<i32>} : memref<2x4x128xbf16, #tpu.memory_space<vmem>>, vector<1x4x128xbf16>,
    return
  }
}

module attributes {stable_mosaic.version = 11 : i64} {
  func.func @_latent_dec1_kernel(%arg0: memref<2x4x256xbf16, #tpu.memory_space<vmem>>, %arg1: memref<256x16xbf16, #tpu.memory_space<vmem>>, %arg2: memref<1x16xf32, #tpu.memory_space<vmem>>, %arg3: memref<2x4x8xf32, #tpu.memory_space<vmem>>, %arg4: memref<8x256xbf16, #tpu.memory_space<vmem>>, %arg5: memref<1x256xf32, #tpu.memory_space<vmem>>, %arg6: memref<2x4x8xf32, #tpu.memory_space<vmem>>, %arg7: memref<2x4x8xf32, #tpu.memory_space<vmem>>, %arg8: memref<2x4x256xbf16, #tpu.memory_space<vmem>>) attributes {dimension_semantics = [], scalar_prefetch = 0 : i64, scratch_operands = 0 : i64, tpu.core_type = #tpu.core_type<tc>} {
    %c0 = arith.constant 0 : index
    %c0_0 = arith.constant 0 : index
    %c0_1 = arith.constant 0 : index
    %0 = vector.load %arg0[%c0, %c0_0, %c0_1] : memref<2x4x256xbf16, #tpu.memory_space<vmem>>, vector<1x4x256xbf16>
    %1 = vector.shape_cast %0 : vector<1x4x256xbf16> to vector<4x256xbf16>
    %c0_2 = arith.constant 0 : index
    %c0_3 = arith.constant 0 : index
    %2 = vector.load %arg1[%c0_2, %c0_3] : memref<256x16xbf16, #tpu.memory_space<vmem>>, vector<256x16xbf16>
    %cst = arith.constant dense<0.000000e+00> : vector<4x16xf32>
    %3 = tpu.matmul %1, %2, %cst {dimension_numbers = #tpu.dot_dimension_numbers<[1], [0], [0], [1], [0, 0, 1, 1], [], []>} : vector<4x256xbf16>, vector<256x16xbf16>, vector<4x16xf32> -> vector<4x16xf32>
    %c0_4 = arith.constant 0 : index
    %c0_5 = arith.constant 0 : index
    %4 = vector.load %arg2[%c0_4, %c0_5] : memref<1x16xf32, #tpu.memory_space<vmem>>, vector<1x16xf32>
    %5 = vector.broadcast %4 : vector<1x16xf32> to vector<4x16xf32>
    %6 = arith.addf %3, %5 : vector<4x16xf32>
    %7 = vector.extract_strided_slice %6 {offsets = [0, 0], sizes = [4, 8], strides = [1, 1]} : vector<4x16xf32> to vector<4x8xf32>
    %8 = vector.extract_strided_slice %6 {offsets = [0, 8], sizes = [4, 8], strides = [1, 1]} : vector<4x16xf32> to vector<4x8xf32>
    %cst_6 = arith.constant 5.000000e-01 : f32
    %9 = vector.broadcast %cst_6 : f32 to vector<4x8xf32>
    %10 = arith.mulf %9, %8 : vector<4x8xf32>
    %11 = math.exp %10 : vector<4x8xf32>
    %c0_7 = arith.constant 0 : index
    %c0_8 = arith.constant 0 : index
    %c0_9 = arith.constant 0 : index
    %12 = vector.load %arg3[%c0_7, %c0_8, %c0_9] : memref<2x4x8xf32, #tpu.memory_space<vmem>>, vector<1x4x8xf32>
    %13 = vector.shape_cast %12 : vector<1x4x8xf32> to vector<4x8xf32>
    %14 = arith.mulf %13, %11 : vector<4x8xf32>
    %15 = arith.addf %7, %14 : vector<4x8xf32>
    %16 = arith.truncf %15 : vector<4x8xf32> to vector<4x8xbf16>
    %c0_10 = arith.constant 0 : index
    %c0_11 = arith.constant 0 : index
    %17 = vector.load %arg4[%c0_10, %c0_11] : memref<8x256xbf16, #tpu.memory_space<vmem>>, vector<8x256xbf16>
    %cst_12 = arith.constant dense<0.000000e+00> : vector<4x256xf32>
    %18 = tpu.matmul %16, %17, %cst_12 {dimension_numbers = #tpu.dot_dimension_numbers<[1], [0], [0], [1], [0, 0, 1, 1], [], []>} : vector<4x8xbf16>, vector<8x256xbf16>, vector<4x256xf32> -> vector<4x256xf32>
    %c0_13 = arith.constant 0 : index
    %c0_14 = arith.constant 0 : index
    %19 = vector.load %arg5[%c0_13, %c0_14] : memref<1x256xf32, #tpu.memory_space<vmem>>, vector<1x256xf32>
    %20 = vector.broadcast %19 : vector<1x256xf32> to vector<4x256xf32>
    %21 = arith.addf %18, %20 : vector<4x256xf32>
    %cst_15 = arith.constant 0.000000e+00 : f32
    %22 = vector.broadcast %cst_15 : f32 to vector<4x256xf32>
    %23 = arith.maximumf %21, %22 : vector<4x256xf32>
    %c0_16 = arith.constant 0 : index
    %c0_17 = arith.constant 0 : index
    %c0_18 = arith.constant 0 : index
    %24 = vector.load %arg6[%c0_16, %c0_17, %c0_18] : memref<2x4x8xf32, #tpu.memory_space<vmem>>, vector<1x4x8xf32>
    %25 = vector.shape_cast %24 : vector<1x4x8xf32> to vector<4x8xf32>
    %26 = vector.shape_cast %7 : vector<4x8xf32> to vector<1x4x8xf32>
    tpu.vector_store %arg6[%c0_16, %c0_17, %c0_18], %26 {strides = array<i32>} : memref<2x4x8xf32, #tpu.memory_space<vmem>>, vector<1x4x8xf32>,
    %c0_19 = arith.constant 0 : index
    %c0_20 = arith.constant 0 : index
    %c0_21 = arith.constant 0 : index
    %27 = vector.load %arg7[%c0_19, %c0_20, %c0_21] : memref<2x4x8xf32, #tpu.memory_space<vmem>>, vector<1x4x8xf32>
    %28 = vector.shape_cast %27 : vector<1x4x8xf32> to vector<4x8xf32>
    %29 = vector.shape_cast %8 : vector<4x8xf32> to vector<1x4x8xf32>
    tpu.vector_store %arg7[%c0_19, %c0_20, %c0_21], %29 {strides = array<i32>} : memref<2x4x8xf32, #tpu.memory_space<vmem>>, vector<1x4x8xf32>,
    %30 = arith.truncf %23 : vector<4x256xf32> to vector<4x256xbf16>
    %c0_22 = arith.constant 0 : index
    %c0_23 = arith.constant 0 : index
    %c0_24 = arith.constant 0 : index
    %31 = vector.load %arg8[%c0_22, %c0_23, %c0_24] : memref<2x4x256xbf16, #tpu.memory_space<vmem>>, vector<1x4x256xbf16>
    %32 = vector.shape_cast %31 : vector<1x4x256xbf16> to vector<4x256xbf16>
    %33 = vector.shape_cast %30 : vector<4x256xbf16> to vector<1x4x256xbf16>
    tpu.vector_store %arg8[%c0_22, %c0_23, %c0_24], %33 {strides = array<i32>} : memref<2x4x256xbf16, #tpu.memory_space<vmem>>, vector<1x4x256xbf16>,
    %c1 = arith.constant 1 : index
    %c0_25 = arith.constant 0 : index
    %c0_26 = arith.constant 0 : index
    %34 = vector.load %arg0[%c1, %c0_25, %c0_26] : memref<2x4x256xbf16, #tpu.memory_space<vmem>>, vector<1x4x256xbf16>
    %35 = vector.shape_cast %34 : vector<1x4x256xbf16> to vector<4x256xbf16>
    %c0_27 = arith.constant 0 : index
    %c0_28 = arith.constant 0 : index
    %36 = vector.load %arg1[%c0_27, %c0_28] : memref<256x16xbf16, #tpu.memory_space<vmem>>, vector<256x16xbf16>
    %cst_29 = arith.constant dense<0.000000e+00> : vector<4x16xf32>
    %37 = tpu.matmul %35, %36, %cst_29 {dimension_numbers = #tpu.dot_dimension_numbers<[1], [0], [0], [1], [0, 0, 1, 1], [], []>} : vector<4x256xbf16>, vector<256x16xbf16>, vector<4x16xf32> -> vector<4x16xf32>
    %c0_30 = arith.constant 0 : index
    %c0_31 = arith.constant 0 : index
    %38 = vector.load %arg2[%c0_30, %c0_31] : memref<1x16xf32, #tpu.memory_space<vmem>>, vector<1x16xf32>
    %39 = vector.broadcast %38 : vector<1x16xf32> to vector<4x16xf32>
    %40 = arith.addf %37, %39 : vector<4x16xf32>
    %41 = vector.extract_strided_slice %40 {offsets = [0, 0], sizes = [4, 8], strides = [1, 1]} : vector<4x16xf32> to vector<4x8xf32>
    %42 = vector.extract_strided_slice %40 {offsets = [0, 8], sizes = [4, 8], strides = [1, 1]} : vector<4x16xf32> to vector<4x8xf32>
    %cst_32 = arith.constant 5.000000e-01 : f32
    %43 = vector.broadcast %cst_32 : f32 to vector<4x8xf32>
    %44 = arith.mulf %43, %42 : vector<4x8xf32>
    %45 = math.exp %44 : vector<4x8xf32>
    %c1_33 = arith.constant 1 : index
    %c0_34 = arith.constant 0 : index
    %c0_35 = arith.constant 0 : index
    %46 = vector.load %arg3[%c1_33, %c0_34, %c0_35] : memref<2x4x8xf32, #tpu.memory_space<vmem>>, vector<1x4x8xf32>
    %47 = vector.shape_cast %46 : vector<1x4x8xf32> to vector<4x8xf32>
    %48 = arith.mulf %47, %45 : vector<4x8xf32>
    %49 = arith.addf %41, %48 : vector<4x8xf32>
    %50 = arith.truncf %49 : vector<4x8xf32> to vector<4x8xbf16>
    %c0_36 = arith.constant 0 : index
    %c0_37 = arith.constant 0 : index
    %51 = vector.load %arg4[%c0_36, %c0_37] : memref<8x256xbf16, #tpu.memory_space<vmem>>, vector<8x256xbf16>
    %cst_38 = arith.constant dense<0.000000e+00> : vector<4x256xf32>
    %52 = tpu.matmul %50, %51, %cst_38 {dimension_numbers = #tpu.dot_dimension_numbers<[1], [0], [0], [1], [0, 0, 1, 1], [], []>} : vector<4x8xbf16>, vector<8x256xbf16>, vector<4x256xf32> -> vector<4x256xf32>
    %c0_39 = arith.constant 0 : index
    %c0_40 = arith.constant 0 : index
    %53 = vector.load %arg5[%c0_39, %c0_40] : memref<1x256xf32, #tpu.memory_space<vmem>>, vector<1x256xf32>
    %54 = vector.broadcast %53 : vector<1x256xf32> to vector<4x256xf32>
    %55 = arith.addf %52, %54 : vector<4x256xf32>
    %cst_41 = arith.constant 0.000000e+00 : f32
    %56 = vector.broadcast %cst_41 : f32 to vector<4x256xf32>
    %57 = arith.maximumf %55, %56 : vector<4x256xf32>
    %c1_42 = arith.constant 1 : index
    %c0_43 = arith.constant 0 : index
    %c0_44 = arith.constant 0 : index
    %58 = vector.load %arg6[%c1_42, %c0_43, %c0_44] : memref<2x4x8xf32, #tpu.memory_space<vmem>>, vector<1x4x8xf32>
    %59 = vector.shape_cast %58 : vector<1x4x8xf32> to vector<4x8xf32>
    %60 = vector.shape_cast %41 : vector<4x8xf32> to vector<1x4x8xf32>
    tpu.vector_store %arg6[%c1_42, %c0_43, %c0_44], %60 {strides = array<i32>} : memref<2x4x8xf32, #tpu.memory_space<vmem>>, vector<1x4x8xf32>,
    %c1_45 = arith.constant 1 : index
    %c0_46 = arith.constant 0 : index
    %c0_47 = arith.constant 0 : index
    %61 = vector.load %arg7[%c1_45, %c0_46, %c0_47] : memref<2x4x8xf32, #tpu.memory_space<vmem>>, vector<1x4x8xf32>
    %62 = vector.shape_cast %61 : vector<1x4x8xf32> to vector<4x8xf32>
    %63 = vector.shape_cast %42 : vector<4x8xf32> to vector<1x4x8xf32>
    tpu.vector_store %arg7[%c1_45, %c0_46, %c0_47], %63 {strides = array<i32>} : memref<2x4x8xf32, #tpu.memory_space<vmem>>, vector<1x4x8xf32>,
    %64 = arith.truncf %57 : vector<4x256xf32> to vector<4x256xbf16>
    %c1_48 = arith.constant 1 : index
    %c0_49 = arith.constant 0 : index
    %c0_50 = arith.constant 0 : index
    %65 = vector.load %arg8[%c1_48, %c0_49, %c0_50] : memref<2x4x256xbf16, #tpu.memory_space<vmem>>, vector<1x4x256xbf16>
    %66 = vector.shape_cast %65 : vector<1x4x256xbf16> to vector<4x256xbf16>
    %67 = vector.shape_cast %64 : vector<4x256xbf16> to vector<1x4x256xbf16>
    tpu.vector_store %arg8[%c1_48, %c0_49, %c0_50], %67 {strides = array<i32>} : memref<2x4x256xbf16, #tpu.memory_space<vmem>>, vector<1x4x256xbf16>,
    return
  }
}

module attributes {stable_mosaic.version = 11 : i64} {
  func.func @_conv_nlc_kernel(%arg0: memref<2x6x128xbf16, #tpu.memory_space<vmem>>, %arg1: memref<3x128x256xbf16, #tpu.memory_space<vmem>>, %arg2: memref<1x256xf32, #tpu.memory_space<vmem>>, %arg3: memref<2x4x256xbf16, #tpu.memory_space<vmem>>) attributes {dimension_semantics = [], scalar_prefetch = 0 : i64, scratch_operands = 0 : i64, tpu.core_type = #tpu.core_type<tc>} {
    %c0 = arith.constant 0 : index
    %c0_0 = arith.constant 0 : index
    %c0_1 = arith.constant 0 : index
    %0 = vector.load %arg0[%c0, %c0_0, %c0_1] : memref<2x6x128xbf16, #tpu.memory_space<vmem>>, vector<1x4x128xbf16>
    %1 = vector.shape_cast %0 : vector<1x4x128xbf16> to vector<4x128xbf16>
    %c0_2 = arith.constant 0 : index
    %c0_3 = arith.constant 0 : index
    %c0_4 = arith.constant 0 : index
    %2 = vector.load %arg1[%c0_2, %c0_3, %c0_4] : memref<3x128x256xbf16, #tpu.memory_space<vmem>>, vector<1x128x256xbf16>
    %3 = vector.shape_cast %2 : vector<1x128x256xbf16> to vector<128x256xbf16>
    %cst = arith.constant dense<0.000000e+00> : vector<4x256xf32>
    %4 = tpu.matmul %1, %3, %cst {dimension_numbers = #tpu.dot_dimension_numbers<[1], [0], [0], [1], [0, 0, 1, 1], [], []>} : vector<4x128xbf16>, vector<128x256xbf16>, vector<4x256xf32> -> vector<4x256xf32>
    %c0_5 = arith.constant 0 : index
    %c1 = arith.constant 1 : index
    %c0_6 = arith.constant 0 : index
    %5 = vector.load %arg0[%c0_5, %c1, %c0_6] : memref<2x6x128xbf16, #tpu.memory_space<vmem>>, vector<1x4x128xbf16>
    %6 = vector.shape_cast %5 : vector<1x4x128xbf16> to vector<4x128xbf16>
    %c1_7 = arith.constant 1 : index
    %c0_8 = arith.constant 0 : index
    %c0_9 = arith.constant 0 : index
    %7 = vector.load %arg1[%c1_7, %c0_8, %c0_9] : memref<3x128x256xbf16, #tpu.memory_space<vmem>>, vector<1x128x256xbf16>
    %8 = vector.shape_cast %7 : vector<1x128x256xbf16> to vector<128x256xbf16>
    %cst_10 = arith.constant dense<0.000000e+00> : vector<4x256xf32>
    %9 = tpu.matmul %6, %8, %cst_10 {dimension_numbers = #tpu.dot_dimension_numbers<[1], [0], [0], [1], [0, 0, 1, 1], [], []>} : vector<4x128xbf16>, vector<128x256xbf16>, vector<4x256xf32> -> vector<4x256xf32>
    %10 = arith.addf %4, %9 : vector<4x256xf32>
    %c0_11 = arith.constant 0 : index
    %c2 = arith.constant 2 : index
    %c0_12 = arith.constant 0 : index
    %11 = vector.load %arg0[%c0_11, %c2, %c0_12] : memref<2x6x128xbf16, #tpu.memory_space<vmem>>, vector<1x4x128xbf16>
    %12 = vector.shape_cast %11 : vector<1x4x128xbf16> to vector<4x128xbf16>
    %c2_13 = arith.constant 2 : index
    %c0_14 = arith.constant 0 : index
    %c0_15 = arith.constant 0 : index
    %13 = vector.load %arg1[%c2_13, %c0_14, %c0_15] : memref<3x128x256xbf16, #tpu.memory_space<vmem>>, vector<1x128x256xbf16>
    %14 = vector.shape_cast %13 : vector<1x128x256xbf16> to vector<128x256xbf16>
    %cst_16 = arith.constant dense<0.000000e+00> : vector<4x256xf32>
    %15 = tpu.matmul %12, %14, %cst_16 {dimension_numbers = #tpu.dot_dimension_numbers<[1], [0], [0], [1], [0, 0, 1, 1], [], []>} : vector<4x128xbf16>, vector<128x256xbf16>, vector<4x256xf32> -> vector<4x256xf32>
    %16 = arith.addf %10, %15 : vector<4x256xf32>
    %c0_17 = arith.constant 0 : index
    %c0_18 = arith.constant 0 : index
    %17 = vector.load %arg2[%c0_17, %c0_18] : memref<1x256xf32, #tpu.memory_space<vmem>>, vector<1x256xf32>
    %18 = vector.broadcast %17 : vector<1x256xf32> to vector<4x256xf32>
    %19 = arith.addf %16, %18 : vector<4x256xf32>
    %cst_19 = arith.constant 0.000000e+00 : f32
    %20 = vector.broadcast %cst_19 : f32 to vector<4x256xf32>
    %21 = arith.maximumf %19, %20 : vector<4x256xf32>
    %22 = arith.truncf %21 : vector<4x256xf32> to vector<4x256xbf16>
    %c0_20 = arith.constant 0 : index
    %c0_21 = arith.constant 0 : index
    %c0_22 = arith.constant 0 : index
    %23 = vector.load %arg3[%c0_20, %c0_21, %c0_22] : memref<2x4x256xbf16, #tpu.memory_space<vmem>>, vector<1x4x256xbf16>
    %24 = vector.shape_cast %23 : vector<1x4x256xbf16> to vector<4x256xbf16>
    %25 = vector.shape_cast %22 : vector<4x256xbf16> to vector<1x4x256xbf16>
    tpu.vector_store %arg3[%c0_20, %c0_21, %c0_22], %25 {strides = array<i32>} : memref<2x4x256xbf16, #tpu.memory_space<vmem>>, vector<1x4x256xbf16>,
    %c1_23 = arith.constant 1 : index
    %c0_24 = arith.constant 0 : index
    %c0_25 = arith.constant 0 : index
    %26 = vector.load %arg0[%c1_23, %c0_24, %c0_25] : memref<2x6x128xbf16, #tpu.memory_space<vmem>>, vector<1x4x128xbf16>
    %27 = vector.shape_cast %26 : vector<1x4x128xbf16> to vector<4x128xbf16>
    %c0_26 = arith.constant 0 : index
    %c0_27 = arith.constant 0 : index
    %c0_28 = arith.constant 0 : index
    %28 = vector.load %arg1[%c0_26, %c0_27, %c0_28] : memref<3x128x256xbf16, #tpu.memory_space<vmem>>, vector<1x128x256xbf16>
    %29 = vector.shape_cast %28 : vector<1x128x256xbf16> to vector<128x256xbf16>
    %cst_29 = arith.constant dense<0.000000e+00> : vector<4x256xf32>
    %30 = tpu.matmul %27, %29, %cst_29 {dimension_numbers = #tpu.dot_dimension_numbers<[1], [0], [0], [1], [0, 0, 1, 1], [], []>} : vector<4x128xbf16>, vector<128x256xbf16>, vector<4x256xf32> -> vector<4x256xf32>
    %c1_30 = arith.constant 1 : index
    %c1_31 = arith.constant 1 : index
    %c0_32 = arith.constant 0 : index
    %31 = vector.load %arg0[%c1_30, %c1_31, %c0_32] : memref<2x6x128xbf16, #tpu.memory_space<vmem>>, vector<1x4x128xbf16>
    %32 = vector.shape_cast %31 : vector<1x4x128xbf16> to vector<4x128xbf16>
    %c1_33 = arith.constant 1 : index
    %c0_34 = arith.constant 0 : index
    %c0_35 = arith.constant 0 : index
    %33 = vector.load %arg1[%c1_33, %c0_34, %c0_35] : memref<3x128x256xbf16, #tpu.memory_space<vmem>>, vector<1x128x256xbf16>
    %34 = vector.shape_cast %33 : vector<1x128x256xbf16> to vector<128x256xbf16>
    %cst_36 = arith.constant dense<0.000000e+00> : vector<4x256xf32>
    %35 = tpu.matmul %32, %34, %cst_36 {dimension_numbers = #tpu.dot_dimension_numbers<[1], [0], [0], [1], [0, 0, 1, 1], [], []>} : vector<4x128xbf16>, vector<128x256xbf16>, vector<4x256xf32> -> vector<4x256xf32>
    %36 = arith.addf %30, %35 : vector<4x256xf32>
    %c1_37 = arith.constant 1 : index
    %c2_38 = arith.constant 2 : index
    %c0_39 = arith.constant 0 : index
    %37 = vector.load %arg0[%c1_37, %c2_38, %c0_39] : memref<2x6x128xbf16, #tpu.memory_space<vmem>>, vector<1x4x128xbf16>
    %38 = vector.shape_cast %37 : vector<1x4x128xbf16> to vector<4x128xbf16>
    %c2_40 = arith.constant 2 : index
    %c0_41 = arith.constant 0 : index
    %c0_42 = arith.constant 0 : index
    %39 = vector.load %arg1[%c2_40, %c0_41, %c0_42] : memref<3x128x256xbf16, #tpu.memory_space<vmem>>, vector<1x128x256xbf16>
    %40 = vector.shape_cast %39 : vector<1x128x256xbf16> to vector<128x256xbf16>
    %cst_43 = arith.constant dense<0.000000e+00> : vector<4x256xf32>
    %41 = tpu.matmul %38, %40, %cst_43 {dimension_numbers = #tpu.dot_dimension_numbers<[1], [0], [0], [1], [0, 0, 1, 1], [], []>} : vector<4x128xbf16>, vector<128x256xbf16>, vector<4x256xf32> -> vector<4x256xf32>
    %42 = arith.addf %36, %41 : vector<4x256xf32>
    %c0_44 = arith.constant 0 : index
    %c0_45 = arith.constant 0 : index
    %43 = vector.load %arg2[%c0_44, %c0_45] : memref<1x256xf32, #tpu.memory_space<vmem>>, vector<1x256xf32>
    %44 = vector.broadcast %43 : vector<1x256xf32> to vector<4x256xf32>
    %45 = arith.addf %42, %44 : vector<4x256xf32>
    %cst_46 = arith.constant 0.000000e+00 : f32
    %46 = vector.broadcast %cst_46 : f32 to vector<4x256xf32>
    %47 = arith.maximumf %45, %46 : vector<4x256xf32>
    %48 = arith.truncf %47 : vector<4x256xf32> to vector<4x256xbf16>
    %c1_47 = arith.constant 1 : index
    %c0_48 = arith.constant 0 : index
    %c0_49 = arith.constant 0 : index
    %49 = vector.load %arg3[%c1_47, %c0_48, %c0_49] : memref<2x4x256xbf16, #tpu.memory_space<vmem>>, vector<1x4x256xbf16>
    %50 = vector.shape_cast %49 : vector<1x4x256xbf16> to vector<4x256xbf16>
    %51 = vector.shape_cast %48 : vector<4x256xbf16> to vector<1x4x256xbf16>
    tpu.vector_store %arg3[%c1_47, %c0_48, %c0_49], %51 {strides = array<i32>} : memref<2x4x256xbf16, #tpu.memory_space<vmem>>, vector<1x4x256xbf16>,
    return
  }
}

module attributes {stable_mosaic.version = 11 : i64} {
  func.func @_conv_nlc_kernel(%arg0: memref<2x10x8xbf16, #tpu.memory_space<vmem>>, %arg1: memref<2x8x64xbf16, #tpu.memory_space<vmem>>, %arg2: memref<1x64xf32, #tpu.memory_space<vmem>>, %arg3: memref<2x9x64xbf16, #tpu.memory_space<vmem>>) attributes {dimension_semantics = [], scalar_prefetch = 0 : i64, scratch_operands = 0 : i64, tpu.core_type = #tpu.core_type<tc>} {
    %c0 = arith.constant 0 : index
    %c0_0 = arith.constant 0 : index
    %c0_1 = arith.constant 0 : index
    %0 = vector.load %arg0[%c0, %c0_0, %c0_1] : memref<2x10x8xbf16, #tpu.memory_space<vmem>>, vector<1x9x8xbf16>
    %1 = vector.shape_cast %0 : vector<1x9x8xbf16> to vector<9x8xbf16>
    %c0_2 = arith.constant 0 : index
    %c0_3 = arith.constant 0 : index
    %c0_4 = arith.constant 0 : index
    %2 = vector.load %arg1[%c0_2, %c0_3, %c0_4] : memref<2x8x64xbf16, #tpu.memory_space<vmem>>, vector<1x8x64xbf16>
    %3 = vector.shape_cast %2 : vector<1x8x64xbf16> to vector<8x64xbf16>
    %cst = arith.constant dense<0.000000e+00> : vector<9x64xf32>
    %4 = tpu.matmul %1, %3, %cst {dimension_numbers = #tpu.dot_dimension_numbers<[1], [0], [0], [1], [0, 0, 1, 1], [], []>} : vector<9x8xbf16>, vector<8x64xbf16>, vector<9x64xf32> -> vector<9x64xf32>
    %c0_5 = arith.constant 0 : index
    %c1 = arith.constant 1 : index
    %c0_6 = arith.constant 0 : index
    %5 = vector.load %arg0[%c0_5, %c1, %c0_6] : memref<2x10x8xbf16, #tpu.memory_space<vmem>>, vector<1x9x8xbf16>
    %6 = vector.shape_cast %5 : vector<1x9x8xbf16> to vector<9x8xbf16>
    %c1_7 = arith.constant 1 : index
    %c0_8 = arith.constant 0 : index
    %c0_9 = arith.constant 0 : index
    %7 = vector.load %arg1[%c1_7, %c0_8, %c0_9] : memref<2x8x64xbf16, #tpu.memory_space<vmem>>, vector<1x8x64xbf16>
    %8 = vector.shape_cast %7 : vector<1x8x64xbf16> to vector<8x64xbf16>
    %cst_10 = arith.constant dense<0.000000e+00> : vector<9x64xf32>
    %9 = tpu.matmul %6, %8, %cst_10 {dimension_numbers = #tpu.dot_dimension_numbers<[1], [0], [0], [1], [0, 0, 1, 1], [], []>} : vector<9x8xbf16>, vector<8x64xbf16>, vector<9x64xf32> -> vector<9x64xf32>
    %10 = arith.addf %4, %9 : vector<9x64xf32>
    %c0_11 = arith.constant 0 : index
    %c0_12 = arith.constant 0 : index
    %11 = vector.load %arg2[%c0_11, %c0_12] : memref<1x64xf32, #tpu.memory_space<vmem>>, vector<1x64xf32>
    %12 = vector.broadcast %11 : vector<1x64xf32> to vector<9x64xf32>
    %13 = arith.addf %10, %12 : vector<9x64xf32>
    %cst_13 = arith.constant 0.000000e+00 : f32
    %14 = vector.broadcast %cst_13 : f32 to vector<9x64xf32>
    %15 = arith.maximumf %13, %14 : vector<9x64xf32>
    %16 = arith.truncf %15 : vector<9x64xf32> to vector<9x64xbf16>
    %c0_14 = arith.constant 0 : index
    %c0_15 = arith.constant 0 : index
    %c0_16 = arith.constant 0 : index
    %17 = vector.load %arg3[%c0_14, %c0_15, %c0_16] : memref<2x9x64xbf16, #tpu.memory_space<vmem>>, vector<1x9x64xbf16>
    %18 = vector.shape_cast %17 : vector<1x9x64xbf16> to vector<9x64xbf16>
    %19 = vector.shape_cast %16 : vector<9x64xbf16> to vector<1x9x64xbf16>
    tpu.vector_store %arg3[%c0_14, %c0_15, %c0_16], %19 {strides = array<i32>} : memref<2x9x64xbf16, #tpu.memory_space<vmem>>, vector<1x9x64xbf16>,
    %c1_17 = arith.constant 1 : index
    %c0_18 = arith.constant 0 : index
    %c0_19 = arith.constant 0 : index
    %20 = vector.load %arg0[%c1_17, %c0_18, %c0_19] : memref<2x10x8xbf16, #tpu.memory_space<vmem>>, vector<1x9x8xbf16>
    %21 = vector.shape_cast %20 : vector<1x9x8xbf16> to vector<9x8xbf16>
    %c0_20 = arith.constant 0 : index
    %c0_21 = arith.constant 0 : index
    %c0_22 = arith.constant 0 : index
    %22 = vector.load %arg1[%c0_20, %c0_21, %c0_22] : memref<2x8x64xbf16, #tpu.memory_space<vmem>>, vector<1x8x64xbf16>
    %23 = vector.shape_cast %22 : vector<1x8x64xbf16> to vector<8x64xbf16>
    %cst_23 = arith.constant dense<0.000000e+00> : vector<9x64xf32>
    %24 = tpu.matmul %21, %23, %cst_23 {dimension_numbers = #tpu.dot_dimension_numbers<[1], [0], [0], [1], [0, 0, 1, 1], [], []>} : vector<9x8xbf16>, vector<8x64xbf16>, vector<9x64xf32> -> vector<9x64xf32>
    %c1_24 = arith.constant 1 : index
    %c1_25 = arith.constant 1 : index
    %c0_26 = arith.constant 0 : index
    %25 = vector.load %arg0[%c1_24, %c1_25, %c0_26] : memref<2x10x8xbf16, #tpu.memory_space<vmem>>, vector<1x9x8xbf16>
    %26 = vector.shape_cast %25 : vector<1x9x8xbf16> to vector<9x8xbf16>
    %c1_27 = arith.constant 1 : index
    %c0_28 = arith.constant 0 : index
    %c0_29 = arith.constant 0 : index
    %27 = vector.load %arg1[%c1_27, %c0_28, %c0_29] : memref<2x8x64xbf16, #tpu.memory_space<vmem>>, vector<1x8x64xbf16>
    %28 = vector.shape_cast %27 : vector<1x8x64xbf16> to vector<8x64xbf16>
    %cst_30 = arith.constant dense<0.000000e+00> : vector<9x64xf32>
    %29 = tpu.matmul %26, %28, %cst_30 {dimension_numbers = #tpu.dot_dimension_numbers<[1], [0], [0], [1], [0, 0, 1, 1], [], []>} : vector<9x8xbf16>, vector<8x64xbf16>, vector<9x64xf32> -> vector<9x64xf32>
    %30 = arith.addf %24, %29 : vector<9x64xf32>
    %c0_31 = arith.constant 0 : index
    %c0_32 = arith.constant 0 : index
    %31 = vector.load %arg2[%c0_31, %c0_32] : memref<1x64xf32, #tpu.memory_space<vmem>>, vector<1x64xf32>
    %32 = vector.broadcast %31 : vector<1x64xf32> to vector<9x64xf32>
    %33 = arith.addf %30, %32 : vector<9x64xf32>
    %cst_33 = arith.constant 0.000000e+00 : f32
    %34 = vector.broadcast %cst_33 : f32 to vector<9x64xf32>
    %35 = arith.maximumf %33, %34 : vector<9x64xf32>
    %36 = arith.truncf %35 : vector<9x64xf32> to vector<9x64xbf16>
    %c1_34 = arith.constant 1 : index
    %c0_35 = arith.constant 0 : index
    %c0_36 = arith.constant 0 : index
    %37 = vector.load %arg3[%c1_34, %c0_35, %c0_36] : memref<2x9x64xbf16, #tpu.memory_space<vmem>>, vector<1x9x64xbf16>
    %38 = vector.shape_cast %37 : vector<1x9x64xbf16> to vector<9x64xbf16>
    %39 = vector.shape_cast %36 : vector<9x64xbf16> to vector<1x9x64xbf16>
    tpu.vector_store %arg3[%c1_34, %c0_35, %c0_36], %39 {strides = array<i32>} : memref<2x9x64xbf16, #tpu.memory_space<vmem>>, vector<1x9x64xbf16>,
    return
  }
}

module attributes {stable_mosaic.version = 11 : i64} {
  func.func @_conv_nlc_kernel(%arg0: memref<2x6x256xbf16, #tpu.memory_space<vmem>>, %arg1: memref<3x256x128xbf16, #tpu.memory_space<vmem>>, %arg2: memref<1x128xf32, #tpu.memory_space<vmem>>, %arg3: memref<2x4x128xbf16, #tpu.memory_space<vmem>>) attributes {dimension_semantics = [], scalar_prefetch = 0 : i64, scratch_operands = 0 : i64, tpu.core_type = #tpu.core_type<tc>} {
    %c0 = arith.constant 0 : index
    %c0_0 = arith.constant 0 : index
    %c0_1 = arith.constant 0 : index
    %0 = vector.load %arg0[%c0, %c0_0, %c0_1] : memref<2x6x256xbf16, #tpu.memory_space<vmem>>, vector<1x4x256xbf16>
    %1 = vector.shape_cast %0 : vector<1x4x256xbf16> to vector<4x256xbf16>
    %c0_2 = arith.constant 0 : index
    %c0_3 = arith.constant 0 : index
    %c0_4 = arith.constant 0 : index
    %2 = vector.load %arg1[%c0_2, %c0_3, %c0_4] : memref<3x256x128xbf16, #tpu.memory_space<vmem>>, vector<1x256x128xbf16>
    %3 = vector.shape_cast %2 : vector<1x256x128xbf16> to vector<256x128xbf16>
    %cst = arith.constant dense<0.000000e+00> : vector<4x128xf32>
    %4 = tpu.matmul %1, %3, %cst {dimension_numbers = #tpu.dot_dimension_numbers<[1], [0], [0], [1], [0, 0, 1, 1], [], []>} : vector<4x256xbf16>, vector<256x128xbf16>, vector<4x128xf32> -> vector<4x128xf32>
    %c0_5 = arith.constant 0 : index
    %c1 = arith.constant 1 : index
    %c0_6 = arith.constant 0 : index
    %5 = vector.load %arg0[%c0_5, %c1, %c0_6] : memref<2x6x256xbf16, #tpu.memory_space<vmem>>, vector<1x4x256xbf16>
    %6 = vector.shape_cast %5 : vector<1x4x256xbf16> to vector<4x256xbf16>
    %c1_7 = arith.constant 1 : index
    %c0_8 = arith.constant 0 : index
    %c0_9 = arith.constant 0 : index
    %7 = vector.load %arg1[%c1_7, %c0_8, %c0_9] : memref<3x256x128xbf16, #tpu.memory_space<vmem>>, vector<1x256x128xbf16>
    %8 = vector.shape_cast %7 : vector<1x256x128xbf16> to vector<256x128xbf16>
    %cst_10 = arith.constant dense<0.000000e+00> : vector<4x128xf32>
    %9 = tpu.matmul %6, %8, %cst_10 {dimension_numbers = #tpu.dot_dimension_numbers<[1], [0], [0], [1], [0, 0, 1, 1], [], []>} : vector<4x256xbf16>, vector<256x128xbf16>, vector<4x128xf32> -> vector<4x128xf32>
    %10 = arith.addf %4, %9 : vector<4x128xf32>
    %c0_11 = arith.constant 0 : index
    %c2 = arith.constant 2 : index
    %c0_12 = arith.constant 0 : index
    %11 = vector.load %arg0[%c0_11, %c2, %c0_12] : memref<2x6x256xbf16, #tpu.memory_space<vmem>>, vector<1x4x256xbf16>
    %12 = vector.shape_cast %11 : vector<1x4x256xbf16> to vector<4x256xbf16>
    %c2_13 = arith.constant 2 : index
    %c0_14 = arith.constant 0 : index
    %c0_15 = arith.constant 0 : index
    %13 = vector.load %arg1[%c2_13, %c0_14, %c0_15] : memref<3x256x128xbf16, #tpu.memory_space<vmem>>, vector<1x256x128xbf16>
    %14 = vector.shape_cast %13 : vector<1x256x128xbf16> to vector<256x128xbf16>
    %cst_16 = arith.constant dense<0.000000e+00> : vector<4x128xf32>
    %15 = tpu.matmul %12, %14, %cst_16 {dimension_numbers = #tpu.dot_dimension_numbers<[1], [0], [0], [1], [0, 0, 1, 1], [], []>} : vector<4x256xbf16>, vector<256x128xbf16>, vector<4x128xf32> -> vector<4x128xf32>
    %16 = arith.addf %10, %15 : vector<4x128xf32>
    %c0_17 = arith.constant 0 : index
    %c0_18 = arith.constant 0 : index
    %17 = vector.load %arg2[%c0_17, %c0_18] : memref<1x128xf32, #tpu.memory_space<vmem>>, vector<1x128xf32>
    %18 = vector.broadcast %17 : vector<1x128xf32> to vector<4x128xf32>
    %19 = arith.addf %16, %18 : vector<4x128xf32>
    %cst_19 = arith.constant 0.000000e+00 : f32
    %20 = vector.broadcast %cst_19 : f32 to vector<4x128xf32>
    %21 = arith.maximumf %19, %20 : vector<4x128xf32>
    %22 = arith.truncf %21 : vector<4x128xf32> to vector<4x128xbf16>
    %c0_20 = arith.constant 0 : index
    %c0_21 = arith.constant 0 : index
    %c0_22 = arith.constant 0 : index
    %23 = vector.load %arg3[%c0_20, %c0_21, %c0_22] : memref<2x4x128xbf16, #tpu.memory_space<vmem>>, vector<1x4x128xbf16>
    %24 = vector.shape_cast %23 : vector<1x4x128xbf16> to vector<4x128xbf16>
    %25 = vector.shape_cast %22 : vector<4x128xbf16> to vector<1x4x128xbf16>
    tpu.vector_store %arg3[%c0_20, %c0_21, %c0_22], %25 {strides = array<i32>} : memref<2x4x128xbf16, #tpu.memory_space<vmem>>, vector<1x4x128xbf16>,
    %c1_23 = arith.constant 1 : index
    %c0_24 = arith.constant 0 : index
    %c0_25 = arith.constant 0 : index
    %26 = vector.load %arg0[%c1_23, %c0_24, %c0_25] : memref<2x6x256xbf16, #tpu.memory_space<vmem>>, vector<1x4x256xbf16>
    %27 = vector.shape_cast %26 : vector<1x4x256xbf16> to vector<4x256xbf16>
    %c0_26 = arith.constant 0 : index
    %c0_27 = arith.constant 0 : index
    %c0_28 = arith.constant 0 : index
    %28 = vector.load %arg1[%c0_26, %c0_27, %c0_28] : memref<3x256x128xbf16, #tpu.memory_space<vmem>>, vector<1x256x128xbf16>
    %29 = vector.shape_cast %28 : vector<1x256x128xbf16> to vector<256x128xbf16>
    %cst_29 = arith.constant dense<0.000000e+00> : vector<4x128xf32>
    %30 = tpu.matmul %27, %29, %cst_29 {dimension_numbers = #tpu.dot_dimension_numbers<[1], [0], [0], [1], [0, 0, 1, 1], [], []>} : vector<4x256xbf16>, vector<256x128xbf16>, vector<4x128xf32> -> vector<4x128xf32>
    %c1_30 = arith.constant 1 : index
    %c1_31 = arith.constant 1 : index
    %c0_32 = arith.constant 0 : index
    %31 = vector.load %arg0[%c1_30, %c1_31, %c0_32] : memref<2x6x256xbf16, #tpu.memory_space<vmem>>, vector<1x4x256xbf16>
    %32 = vector.shape_cast %31 : vector<1x4x256xbf16> to vector<4x256xbf16>
    %c1_33 = arith.constant 1 : index
    %c0_34 = arith.constant 0 : index
    %c0_35 = arith.constant 0 : index
    %33 = vector.load %arg1[%c1_33, %c0_34, %c0_35] : memref<3x256x128xbf16, #tpu.memory_space<vmem>>, vector<1x256x128xbf16>
    %34 = vector.shape_cast %33 : vector<1x256x128xbf16> to vector<256x128xbf16>
    %cst_36 = arith.constant dense<0.000000e+00> : vector<4x128xf32>
    %35 = tpu.matmul %32, %34, %cst_36 {dimension_numbers = #tpu.dot_dimension_numbers<[1], [0], [0], [1], [0, 0, 1, 1], [], []>} : vector<4x256xbf16>, vector<256x128xbf16>, vector<4x128xf32> -> vector<4x128xf32>
    %36 = arith.addf %30, %35 : vector<4x128xf32>
    %c1_37 = arith.constant 1 : index
    %c2_38 = arith.constant 2 : index
    %c0_39 = arith.constant 0 : index
    %37 = vector.load %arg0[%c1_37, %c2_38, %c0_39] : memref<2x6x256xbf16, #tpu.memory_space<vmem>>, vector<1x4x256xbf16>
    %38 = vector.shape_cast %37 : vector<1x4x256xbf16> to vector<4x256xbf16>
    %c2_40 = arith.constant 2 : index
    %c0_41 = arith.constant 0 : index
    %c0_42 = arith.constant 0 : index
    %39 = vector.load %arg1[%c2_40, %c0_41, %c0_42] : memref<3x256x128xbf16, #tpu.memory_space<vmem>>, vector<1x256x128xbf16>
    %40 = vector.shape_cast %39 : vector<1x256x128xbf16> to vector<256x128xbf16>
    %cst_43 = arith.constant dense<0.000000e+00> : vector<4x128xf32>
    %41 = tpu.matmul %38, %40, %cst_43 {dimension_numbers = #tpu.dot_dimension_numbers<[1], [0], [0], [1], [0, 0, 1, 1], [], []>} : vector<4x256xbf16>, vector<256x128xbf16>, vector<4x128xf32> -> vector<4x128xf32>
    %42 = arith.addf %36, %41 : vector<4x128xf32>
    %c0_44 = arith.constant 0 : index
    %c0_45 = arith.constant 0 : index
    %43 = vector.load %arg2[%c0_44, %c0_45] : memref<1x128xf32, #tpu.memory_space<vmem>>, vector<1x128xf32>
    %44 = vector.broadcast %43 : vector<1x128xf32> to vector<4x128xf32>
    %45 = arith.addf %42, %44 : vector<4x128xf32>
    %cst_46 = arith.constant 0.000000e+00 : f32
    %46 = vector.broadcast %cst_46 : f32 to vector<4x128xf32>
    %47 = arith.maximumf %45, %46 : vector<4x128xf32>
    %48 = arith.truncf %47 : vector<4x128xf32> to vector<4x128xbf16>
    %c1_47 = arith.constant 1 : index
    %c0_48 = arith.constant 0 : index
    %c0_49 = arith.constant 0 : index
    %49 = vector.load %arg3[%c1_47, %c0_48, %c0_49] : memref<2x4x128xbf16, #tpu.memory_space<vmem>>, vector<1x4x128xbf16>
    %50 = vector.shape_cast %49 : vector<1x4x128xbf16> to vector<4x128xbf16>
    %51 = vector.shape_cast %48 : vector<4x128xbf16> to vector<1x4x128xbf16>
    tpu.vector_store %arg3[%c1_47, %c0_48, %c0_49], %51 {strides = array<i32>} : memref<2x4x128xbf16, #tpu.memory_space<vmem>>, vector<1x4x128xbf16>,
    return
  }
}

module attributes {stable_mosaic.version = 11 : i64} {
  func.func @_convT_s2_kernel(%arg0: memref<2x6x128xbf16, #tpu.memory_space<vmem>>, %arg1: memref<4x128x64xbf16, #tpu.memory_space<vmem>>, %arg2: memref<1x64xf32, #tpu.memory_space<vmem>>, %arg3: memref<2x5x64xbf16, #tpu.memory_space<vmem>>, %arg4: memref<2x4x64xbf16, #tpu.memory_space<vmem>>) attributes {dimension_semantics = [], scalar_prefetch = 0 : i64, scratch_operands = 0 : i64, tpu.core_type = #tpu.core_type<tc>} {
    %c0 = arith.constant 0 : index
    %c0_0 = arith.constant 0 : index
    %c0_1 = arith.constant 0 : index
    %0 = vector.load %arg0[%c0, %c0_0, %c0_1] : memref<2x6x128xbf16, #tpu.memory_space<vmem>>, vector<1x5x128xbf16>
    %1 = vector.shape_cast %0 : vector<1x5x128xbf16> to vector<5x128xbf16>
    %c0_2 = arith.constant 0 : index
    %c1 = arith.constant 1 : index
    %c0_3 = arith.constant 0 : index
    %2 = vector.load %arg0[%c0_2, %c1, %c0_3] : memref<2x6x128xbf16, #tpu.memory_space<vmem>>, vector<1x5x128xbf16>
    %3 = vector.shape_cast %2 : vector<1x5x128xbf16> to vector<5x128xbf16>
    %c3 = arith.constant 3 : index
    %c0_4 = arith.constant 0 : index
    %c0_5 = arith.constant 0 : index
    %4 = vector.load %arg1[%c3, %c0_4, %c0_5] : memref<4x128x64xbf16, #tpu.memory_space<vmem>>, vector<1x128x64xbf16>
    %5 = vector.shape_cast %4 : vector<1x128x64xbf16> to vector<128x64xbf16>
    %cst = arith.constant dense<0.000000e+00> : vector<5x64xf32>
    %6 = tpu.matmul %1, %5, %cst {dimension_numbers = #tpu.dot_dimension_numbers<[1], [0], [0], [1], [0, 0, 1, 1], [], []>} : vector<5x128xbf16>, vector<128x64xbf16>, vector<5x64xf32> -> vector<5x64xf32>
    %c1_6 = arith.constant 1 : index
    %c0_7 = arith.constant 0 : index
    %c0_8 = arith.constant 0 : index
    %7 = vector.load %arg1[%c1_6, %c0_7, %c0_8] : memref<4x128x64xbf16, #tpu.memory_space<vmem>>, vector<1x128x64xbf16>
    %8 = vector.shape_cast %7 : vector<1x128x64xbf16> to vector<128x64xbf16>
    %cst_9 = arith.constant dense<0.000000e+00> : vector<5x64xf32>
    %9 = tpu.matmul %3, %8, %cst_9 {dimension_numbers = #tpu.dot_dimension_numbers<[1], [0], [0], [1], [0, 0, 1, 1], [], []>} : vector<5x128xbf16>, vector<128x64xbf16>, vector<5x64xf32> -> vector<5x64xf32>
    %10 = arith.addf %6, %9 : vector<5x64xf32>
    %c0_10 = arith.constant 0 : index
    %c0_11 = arith.constant 0 : index
    %11 = vector.load %arg2[%c0_10, %c0_11] : memref<1x64xf32, #tpu.memory_space<vmem>>, vector<1x64xf32>
    %12 = vector.broadcast %11 : vector<1x64xf32> to vector<5x64xf32>
    %13 = arith.addf %10, %12 : vector<5x64xf32>
    %c0_12 = arith.constant 0 : index
    %c1_13 = arith.constant 1 : index
    %c0_14 = arith.constant 0 : index
    %14 = vector.load %arg0[%c0_12, %c1_13, %c0_14] : memref<2x6x128xbf16, #tpu.memory_space<vmem>>, vector<1x4x128xbf16>
    %15 = vector.shape_cast %14 : vector<1x4x128xbf16> to vector<4x128xbf16>
    %c0_15 = arith.constant 0 : index
    %c2 = arith.constant 2 : index
    %c0_16 = arith.constant 0 : index
    %16 = vector.load %arg0[%c0_15, %c2, %c0_16] : memref<2x6x128xbf16, #tpu.memory_space<vmem>>, vector<1x4x128xbf16>
    %17 = vector.shape_cast %16 : vector<1x4x128xbf16> to vector<4x128xbf16>
    %c2_17 = arith.constant 2 : index
    %c0_18 = arith.constant 0 : index
    %c0_19 = arith.constant 0 : index
    %18 = vector.load %arg1[%c2_17, %c0_18, %c0_19] : memref<4x128x64xbf16, #tpu.memory_space<vmem>>, vector<1x128x64xbf16>
    %19 = vector.shape_cast %18 : vector<1x128x64xbf16> to vector<128x64xbf16>
    %cst_20 = arith.constant dense<0.000000e+00> : vector<4x64xf32>
    %20 = tpu.matmul %15, %19, %cst_20 {dimension_numbers = #tpu.dot_dimension_numbers<[1], [0], [0], [1], [0, 0, 1, 1], [], []>} : vector<4x128xbf16>, vector<128x64xbf16>, vector<4x64xf32> -> vector<4x64xf32>
    %c0_21 = arith.constant 0 : index
    %c0_22 = arith.constant 0 : index
    %c0_23 = arith.constant 0 : index
    %21 = vector.load %arg1[%c0_21, %c0_22, %c0_23] : memref<4x128x64xbf16, #tpu.memory_space<vmem>>, vector<1x128x64xbf16>
    %22 = vector.shape_cast %21 : vector<1x128x64xbf16> to vector<128x64xbf16>
    %cst_24 = arith.constant dense<0.000000e+00> : vector<4x64xf32>
    %23 = tpu.matmul %17, %22, %cst_24 {dimension_numbers = #tpu.dot_dimension_numbers<[1], [0], [0], [1], [0, 0, 1, 1], [], []>} : vector<4x128xbf16>, vector<128x64xbf16>, vector<4x64xf32> -> vector<4x64xf32>
    %24 = arith.addf %20, %23 : vector<4x64xf32>
    %c0_25 = arith.constant 0 : index
    %c0_26 = arith.constant 0 : index
    %25 = vector.load %arg2[%c0_25, %c0_26] : memref<1x64xf32, #tpu.memory_space<vmem>>, vector<1x64xf32>
    %26 = vector.broadcast %25 : vector<1x64xf32> to vector<4x64xf32>
    %27 = arith.addf %24, %26 : vector<4x64xf32>
    %cst_27 = arith.constant 0.000000e+00 : f32
    %28 = vector.broadcast %cst_27 : f32 to vector<5x64xf32>
    %29 = arith.maximumf %13, %28 : vector<5x64xf32>
    %cst_28 = arith.constant 0.000000e+00 : f32
    %30 = vector.broadcast %cst_28 : f32 to vector<4x64xf32>
    %31 = arith.maximumf %27, %30 : vector<4x64xf32>
    %32 = arith.truncf %29 : vector<5x64xf32> to vector<5x64xbf16>
    %c0_29 = arith.constant 0 : index
    %c0_30 = arith.constant 0 : index
    %c0_31 = arith.constant 0 : index
    %33 = vector.load %arg3[%c0_29, %c0_30, %c0_31] : memref<2x5x64xbf16, #tpu.memory_space<vmem>>, vector<1x5x64xbf16>
    %34 = vector.shape_cast %33 : vector<1x5x64xbf16> to vector<5x64xbf16>
    %35 = vector.shape_cast %32 : vector<5x64xbf16> to vector<1x5x64xbf16>
    tpu.vector_store %arg3[%c0_29, %c0_30, %c0_31], %35 {strides = array<i32>} : memref<2x5x64xbf16, #tpu.memory_space<vmem>>, vector<1x5x64xbf16>,
    %36 = arith.truncf %31 : vector<4x64xf32> to vector<4x64xbf16>
    %c0_32 = arith.constant 0 : index
    %c0_33 = arith.constant 0 : index
    %c0_34 = arith.constant 0 : index
    %37 = vector.load %arg4[%c0_32, %c0_33, %c0_34] : memref<2x4x64xbf16, #tpu.memory_space<vmem>>, vector<1x4x64xbf16>
    %38 = vector.shape_cast %37 : vector<1x4x64xbf16> to vector<4x64xbf16>
    %39 = vector.shape_cast %36 : vector<4x64xbf16> to vector<1x4x64xbf16>
    tpu.vector_store %arg4[%c0_32, %c0_33, %c0_34], %39 {strides = array<i32>} : memref<2x4x64xbf16, #tpu.memory_space<vmem>>, vector<1x4x64xbf16>,
    %c1_35 = arith.constant 1 : index
    %c0_36 = arith.constant 0 : index
    %c0_37 = arith.constant 0 : index
    %40 = vector.load %arg0[%c1_35, %c0_36, %c0_37] : memref<2x6x128xbf16, #tpu.memory_space<vmem>>, vector<1x5x128xbf16>
    %41 = vector.shape_cast %40 : vector<1x5x128xbf16> to vector<5x128xbf16>
    %c1_38 = arith.constant 1 : index
    %c1_39 = arith.constant 1 : index
    %c0_40 = arith.constant 0 : index
    %42 = vector.load %arg0[%c1_38, %c1_39, %c0_40] : memref<2x6x128xbf16, #tpu.memory_space<vmem>>, vector<1x5x128xbf16>
    %43 = vector.shape_cast %42 : vector<1x5x128xbf16> to vector<5x128xbf16>
    %c3_41 = arith.constant 3 : index
    %c0_42 = arith.constant 0 : index
    %c0_43 = arith.constant 0 : index
    %44 = vector.load %arg1[%c3_41, %c0_42, %c0_43] : memref<4x128x64xbf16, #tpu.memory_space<vmem>>, vector<1x128x64xbf16>
    %45 = vector.shape_cast %44 : vector<1x128x64xbf16> to vector<128x64xbf16>
    %cst_44 = arith.constant dense<0.000000e+00> : vector<5x64xf32>
    %46 = tpu.matmul %41, %45, %cst_44 {dimension_numbers = #tpu.dot_dimension_numbers<[1], [0], [0], [1], [0, 0, 1, 1], [], []>} : vector<5x128xbf16>, vector<128x64xbf16>, vector<5x64xf32> -> vector<5x64xf32>
    %c1_45 = arith.constant 1 : index
    %c0_46 = arith.constant 0 : index
    %c0_47 = arith.constant 0 : index
    %47 = vector.load %arg1[%c1_45, %c0_46, %c0_47] : memref<4x128x64xbf16, #tpu.memory_space<vmem>>, vector<1x128x64xbf16>
    %48 = vector.shape_cast %47 : vector<1x128x64xbf16> to vector<128x64xbf16>
    %cst_48 = arith.constant dense<0.000000e+00> : vector<5x64xf32>
    %49 = tpu.matmul %43, %48, %cst_48 {dimension_numbers = #tpu.dot_dimension_numbers<[1], [0], [0], [1], [0, 0, 1, 1], [], []>} : vector<5x128xbf16>, vector<128x64xbf16>, vector<5x64xf32> -> vector<5x64xf32>
    %50 = arith.addf %46, %49 : vector<5x64xf32>
    %c0_49 = arith.constant 0 : index
    %c0_50 = arith.constant 0 : index
    %51 = vector.load %arg2[%c0_49, %c0_50] : memref<1x64xf32, #tpu.memory_space<vmem>>, vector<1x64xf32>
    %52 = vector.broadcast %51 : vector<1x64xf32> to vector<5x64xf32>
    %53 = arith.addf %50, %52 : vector<5x64xf32>
    %c1_51 = arith.constant 1 : index
    %c1_52 = arith.constant 1 : index
    %c0_53 = arith.constant 0 : index
    %54 = vector.load %arg0[%c1_51, %c1_52, %c0_53] : memref<2x6x128xbf16, #tpu.memory_space<vmem>>, vector<1x4x128xbf16>
    %55 = vector.shape_cast %54 : vector<1x4x128xbf16> to vector<4x128xbf16>
    %c1_54 = arith.constant 1 : index
    %c2_55 = arith.constant 2 : index
    %c0_56 = arith.constant 0 : index
    %56 = vector.load %arg0[%c1_54, %c2_55, %c0_56] : memref<2x6x128xbf16, #tpu.memory_space<vmem>>, vector<1x4x128xbf16>
    %57 = vector.shape_cast %56 : vector<1x4x128xbf16> to vector<4x128xbf16>
    %c2_57 = arith.constant 2 : index
    %c0_58 = arith.constant 0 : index
    %c0_59 = arith.constant 0 : index
    %58 = vector.load %arg1[%c2_57, %c0_58, %c0_59] : memref<4x128x64xbf16, #tpu.memory_space<vmem>>, vector<1x128x64xbf16>
    %59 = vector.shape_cast %58 : vector<1x128x64xbf16> to vector<128x64xbf16>
    %cst_60 = arith.constant dense<0.000000e+00> : vector<4x64xf32>
    %60 = tpu.matmul %55, %59, %cst_60 {dimension_numbers = #tpu.dot_dimension_numbers<[1], [0], [0], [1], [0, 0, 1, 1], [], []>} : vector<4x128xbf16>, vector<128x64xbf16>, vector<4x64xf32> -> vector<4x64xf32>
    %c0_61 = arith.constant 0 : index
    %c0_62 = arith.constant 0 : index
    %c0_63 = arith.constant 0 : index
    %61 = vector.load %arg1[%c0_61, %c0_62, %c0_63] : memref<4x128x64xbf16, #tpu.memory_space<vmem>>, vector<1x128x64xbf16>
    %62 = vector.shape_cast %61 : vector<1x128x64xbf16> to vector<128x64xbf16>
    %cst_64 = arith.constant dense<0.000000e+00> : vector<4x64xf32>
    %63 = tpu.matmul %57, %62, %cst_64 {dimension_numbers = #tpu.dot_dimension_numbers<[1], [0], [0], [1], [0, 0, 1, 1], [], []>} : vector<4x128xbf16>, vector<128x64xbf16>, vector<4x64xf32> -> vector<4x64xf32>
    %64 = arith.addf %60, %63 : vector<4x64xf32>
    %c0_65 = arith.constant 0 : index
    %c0_66 = arith.constant 0 : index
    %65 = vector.load %arg2[%c0_65, %c0_66] : memref<1x64xf32, #tpu.memory_space<vmem>>, vector<1x64xf32>
    %66 = vector.broadcast %65 : vector<1x64xf32> to vector<4x64xf32>
    %67 = arith.addf %64, %66 : vector<4x64xf32>
    %cst_67 = arith.constant 0.000000e+00 : f32
    %68 = vector.broadcast %cst_67 : f32 to vector<5x64xf32>
    %69 = arith.maximumf %53, %68 : vector<5x64xf32>
    %cst_68 = arith.constant 0.000000e+00 : f32
    %70 = vector.broadcast %cst_68 : f32 to vector<4x64xf32>
    %71 = arith.maximumf %67, %70 : vector<4x64xf32>
    %72 = arith.truncf %69 : vector<5x64xf32> to vector<5x64xbf16>
    %c1_69 = arith.constant 1 : index
    %c0_70 = arith.constant 0 : index
    %c0_71 = arith.constant 0 : index
    %73 = vector.load %arg3[%c1_69, %c0_70, %c0_71] : memref<2x5x64xbf16, #tpu.memory_space<vmem>>, vector<1x5x64xbf16>
    %74 = vector.shape_cast %73 : vector<1x5x64xbf16> to vector<5x64xbf16>
    %75 = vector.shape_cast %72 : vector<5x64xbf16> to vector<1x5x64xbf16>
    tpu.vector_store %arg3[%c1_69, %c0_70, %c0_71], %75 {strides = array<i32>} : memref<2x5x64xbf16, #tpu.memory_space<vmem>>, vector<1x5x64xbf16>,
    %76 = arith.truncf %71 : vector<4x64xf32> to vector<4x64xbf16>
    %c1_72 = arith.constant 1 : index
    %c0_73 = arith.constant 0 : index
    %c0_74 = arith.constant 0 : index
    %77 = vector.load %arg4[%c1_72, %c0_73, %c0_74] : memref<2x4x64xbf16, #tpu.memory_space<vmem>>, vector<1x4x64xbf16>
    %78 = vector.shape_cast %77 : vector<1x4x64xbf16> to vector<4x64xbf16>
    %79 = vector.shape_cast %76 : vector<4x64xbf16> to vector<1x4x64xbf16>
    tpu.vector_store %arg4[%c1_72, %c0_73, %c0_74], %79 {strides = array<i32>} : memref<2x4x64xbf16, #tpu.memory_space<vmem>>, vector<1x4x64xbf16>,
    return
  }
}

module attributes {stable_mosaic.version = 11 : i64} {
  func.func @_convT_s2_loss_kernel(%arg0: memref<2x11x64xbf16, #tpu.memory_space<vmem>>, %arg1: memref<4x64x4xbf16, #tpu.memory_space<vmem>>, %arg2: memref<1x4xf32, #tpu.memory_space<vmem>>, %arg3: memref<2x10x4xf32, #tpu.memory_space<vmem>>, %arg4: memref<2x9x4xf32, #tpu.memory_space<vmem>>, %arg5: memref<2x4x8xf32, #tpu.memory_space<vmem>>, %arg6: memref<2x4x8xf32, #tpu.memory_space<vmem>>, %arg7: memref<2x10x4xf32, #tpu.memory_space<vmem>>, %arg8: memref<2x9x4xf32, #tpu.memory_space<vmem>>, %arg9: memref<3xf32, #tpu.memory_space<smem>>) attributes {dimension_semantics = [], scalar_prefetch = 0 : i64, scratch_operands = 0 : i64, tpu.core_type = #tpu.core_type<tc>} {
    %c0 = arith.constant 0 : index
    %c0_0 = arith.constant 0 : index
    %c0_1 = arith.constant 0 : index
    %0 = vector.load %arg0[%c0, %c0_0, %c0_1] : memref<2x11x64xbf16, #tpu.memory_space<vmem>>, vector<1x10x64xbf16>
    %1 = vector.shape_cast %0 : vector<1x10x64xbf16> to vector<10x64xbf16>
    %c0_2 = arith.constant 0 : index
    %c1 = arith.constant 1 : index
    %c0_3 = arith.constant 0 : index
    %2 = vector.load %arg0[%c0_2, %c1, %c0_3] : memref<2x11x64xbf16, #tpu.memory_space<vmem>>, vector<1x10x64xbf16>
    %3 = vector.shape_cast %2 : vector<1x10x64xbf16> to vector<10x64xbf16>
    %c3 = arith.constant 3 : index
    %c0_4 = arith.constant 0 : index
    %c0_5 = arith.constant 0 : index
    %4 = vector.load %arg1[%c3, %c0_4, %c0_5] : memref<4x64x4xbf16, #tpu.memory_space<vmem>>, vector<1x64x4xbf16>
    %5 = vector.shape_cast %4 : vector<1x64x4xbf16> to vector<64x4xbf16>
    %cst = arith.constant dense<0.000000e+00> : vector<10x4xf32>
    %6 = tpu.matmul %1, %5, %cst {dimension_numbers = #tpu.dot_dimension_numbers<[1], [0], [0], [1], [0, 0, 1, 1], [], []>} : vector<10x64xbf16>, vector<64x4xbf16>, vector<10x4xf32> -> vector<10x4xf32>
    %c1_6 = arith.constant 1 : index
    %c0_7 = arith.constant 0 : index
    %c0_8 = arith.constant 0 : index
    %7 = vector.load %arg1[%c1_6, %c0_7, %c0_8] : memref<4x64x4xbf16, #tpu.memory_space<vmem>>, vector<1x64x4xbf16>
    %8 = vector.shape_cast %7 : vector<1x64x4xbf16> to vector<64x4xbf16>
    %cst_9 = arith.constant dense<0.000000e+00> : vector<10x4xf32>
    %9 = tpu.matmul %3, %8, %cst_9 {dimension_numbers = #tpu.dot_dimension_numbers<[1], [0], [0], [1], [0, 0, 1, 1], [], []>} : vector<10x64xbf16>, vector<64x4xbf16>, vector<10x4xf32> -> vector<10x4xf32>
    %10 = arith.addf %6, %9 : vector<10x4xf32>
    %c0_10 = arith.constant 0 : index
    %c0_11 = arith.constant 0 : index
    %11 = vector.load %arg2[%c0_10, %c0_11] : memref<1x4xf32, #tpu.memory_space<vmem>>, vector<1x4xf32>
    %12 = vector.broadcast %11 : vector<1x4xf32> to vector<10x4xf32>
    %13 = arith.addf %10, %12 : vector<10x4xf32>
    %c0_12 = arith.constant 0 : index
    %c1_13 = arith.constant 1 : index
    %c0_14 = arith.constant 0 : index
    %14 = vector.load %arg0[%c0_12, %c1_13, %c0_14] : memref<2x11x64xbf16, #tpu.memory_space<vmem>>, vector<1x9x64xbf16>
    %15 = vector.shape_cast %14 : vector<1x9x64xbf16> to vector<9x64xbf16>
    %c0_15 = arith.constant 0 : index
    %c2 = arith.constant 2 : index
    %c0_16 = arith.constant 0 : index
    %16 = vector.load %arg0[%c0_15, %c2, %c0_16] : memref<2x11x64xbf16, #tpu.memory_space<vmem>>, vector<1x9x64xbf16>
    %17 = vector.shape_cast %16 : vector<1x9x64xbf16> to vector<9x64xbf16>
    %c2_17 = arith.constant 2 : index
    %c0_18 = arith.constant 0 : index
    %c0_19 = arith.constant 0 : index
    %18 = vector.load %arg1[%c2_17, %c0_18, %c0_19] : memref<4x64x4xbf16, #tpu.memory_space<vmem>>, vector<1x64x4xbf16>
    %19 = vector.shape_cast %18 : vector<1x64x4xbf16> to vector<64x4xbf16>
    %cst_20 = arith.constant dense<0.000000e+00> : vector<9x4xf32>
    %20 = tpu.matmul %15, %19, %cst_20 {dimension_numbers = #tpu.dot_dimension_numbers<[1], [0], [0], [1], [0, 0, 1, 1], [], []>} : vector<9x64xbf16>, vector<64x4xbf16>, vector<9x4xf32> -> vector<9x4xf32>
    %c0_21 = arith.constant 0 : index
    %c0_22 = arith.constant 0 : index
    %c0_23 = arith.constant 0 : index
    %21 = vector.load %arg1[%c0_21, %c0_22, %c0_23] : memref<4x64x4xbf16, #tpu.memory_space<vmem>>, vector<1x64x4xbf16>
    %22 = vector.shape_cast %21 : vector<1x64x4xbf16> to vector<64x4xbf16>
    %cst_24 = arith.constant dense<0.000000e+00> : vector<9x4xf32>
    %23 = tpu.matmul %17, %22, %cst_24 {dimension_numbers = #tpu.dot_dimension_numbers<[1], [0], [0], [1], [0, 0, 1, 1], [], []>} : vector<9x64xbf16>, vector<64x4xbf16>, vector<9x4xf32> -> vector<9x4xf32>
    %24 = arith.addf %20, %23 : vector<9x4xf32>
    %c0_25 = arith.constant 0 : index
    %c0_26 = arith.constant 0 : index
    %25 = vector.load %arg2[%c0_25, %c0_26] : memref<1x4xf32, #tpu.memory_space<vmem>>, vector<1x4xf32>
    %26 = vector.broadcast %25 : vector<1x4xf32> to vector<9x4xf32>
    %27 = arith.addf %24, %26 : vector<9x4xf32>
    %c0_27 = arith.constant 0 : index
    %c0_28 = arith.constant 0 : index
    %c0_29 = arith.constant 0 : index
    %28 = vector.load %arg3[%c0_27, %c0_28, %c0_29] : memref<2x10x4xf32, #tpu.memory_space<vmem>>, vector<1x10x4xf32>
    %29 = vector.shape_cast %28 : vector<1x10x4xf32> to vector<10x4xf32>
    %30 = arith.subf %13, %29 : vector<10x4xf32>
    %c0_30 = arith.constant 0 : index
    %c0_31 = arith.constant 0 : index
    %c0_32 = arith.constant 0 : index
    %31 = vector.load %arg4[%c0_30, %c0_31, %c0_32] : memref<2x9x4xf32, #tpu.memory_space<vmem>>, vector<1x9x4xf32>
    %32 = vector.shape_cast %31 : vector<1x9x4xf32> to vector<9x4xf32>
    %33 = arith.subf %27, %32 : vector<9x4xf32>
    %34 = arith.mulf %30, %30 : vector<10x4xf32>
    %35 = vector.shape_cast %34 : vector<10x4xf32> to vector<1x10x4xf32>
    %cst_33 = arith.constant dense<0.000000e+00> : vector<1xf32>
    %36 = vector.multi_reduction <add>, %35, %cst_33 [1, 2] : vector<1x10x4xf32> to vector<1xf32>
    %37 = vector.shape_cast %36 : vector<1xf32> to vector<1x1x1xf32>
    %38 = vector.extract %37[0, 0, 0] : f32 from vector<1x1x1xf32>
    %cst_34 = arith.constant 0.000000e+00 : f32
    %39 = arith.addf %cst_34, %38 : f32
    %40 = arith.mulf %33, %33 : vector<9x4xf32>
    %41 = vector.shape_cast %40 : vector<9x4xf32> to vector<1x9x4xf32>
    %cst_35 = arith.constant dense<0.000000e+00> : vector<1xf32>
    %42 = vector.multi_reduction <add>, %41, %cst_35 [1, 2] : vector<1x9x4xf32> to vector<1xf32>
    %43 = vector.shape_cast %42 : vector<1xf32> to vector<1x1x1xf32>
    %44 = vector.extract %43[0, 0, 0] : f32 from vector<1x1x1xf32>
    %45 = arith.addf %39, %44 : f32
    %c0_36 = arith.constant 0 : index
    %c0_37 = arith.constant 0 : index
    %c0_38 = arith.constant 0 : index
    %46 = vector.load %arg7[%c0_36, %c0_37, %c0_38] : memref<2x10x4xf32, #tpu.memory_space<vmem>>, vector<1x10x4xf32>
    %47 = vector.shape_cast %46 : vector<1x10x4xf32> to vector<10x4xf32>
    %48 = vector.shape_cast %13 : vector<10x4xf32> to vector<1x10x4xf32>
    tpu.vector_store %arg7[%c0_36, %c0_37, %c0_38], %48 {strides = array<i32>} : memref<2x10x4xf32, #tpu.memory_space<vmem>>, vector<1x10x4xf32>,
    %c0_39 = arith.constant 0 : index
    %c0_40 = arith.constant 0 : index
    %c0_41 = arith.constant 0 : index
    %49 = vector.load %arg8[%c0_39, %c0_40, %c0_41] : memref<2x9x4xf32, #tpu.memory_space<vmem>>, vector<1x9x4xf32>
    %50 = vector.shape_cast %49 : vector<1x9x4xf32> to vector<9x4xf32>
    %51 = vector.shape_cast %27 : vector<9x4xf32> to vector<1x9x4xf32>
    tpu.vector_store %arg8[%c0_39, %c0_40, %c0_41], %51 {strides = array<i32>} : memref<2x9x4xf32, #tpu.memory_space<vmem>>, vector<1x9x4xf32>,
    %c0_42 = arith.constant 0 : index
    %c0_43 = arith.constant 0 : index
    %c0_44 = arith.constant 0 : index
    %52 = vector.load %arg5[%c0_42, %c0_43, %c0_44] : memref<2x4x8xf32, #tpu.memory_space<vmem>>, vector<1x4x8xf32>
    %53 = vector.shape_cast %52 : vector<1x4x8xf32> to vector<4x8xf32>
    %c0_45 = arith.constant 0 : index
    %c0_46 = arith.constant 0 : index
    %c0_47 = arith.constant 0 : index
    %54 = vector.load %arg6[%c0_45, %c0_46, %c0_47] : memref<2x4x8xf32, #tpu.memory_space<vmem>>, vector<1x4x8xf32>
    %55 = vector.shape_cast %54 : vector<1x4x8xf32> to vector<4x8xf32>
    %cst_48 = arith.constant 1.000000e+00 : f32
    %56 = vector.broadcast %cst_48 : f32 to vector<4x8xf32>
    %57 = arith.addf %56, %55 : vector<4x8xf32>
    %58 = arith.mulf %53, %53 : vector<4x8xf32>
    %59 = arith.subf %57, %58 : vector<4x8xf32>
    %60 = math.exp %55 : vector<4x8xf32>
    %61 = arith.subf %59, %60 : vector<4x8xf32>
    %62 = vector.shape_cast %61 : vector<4x8xf32> to vector<1x4x8xf32>
    %cst_49 = arith.constant dense<0.000000e+00> : vector<1xf32>
    %63 = vector.multi_reduction <add>, %62, %cst_49 [1, 2] : vector<1x4x8xf32> to vector<1xf32>
    %64 = vector.shape_cast %63 : vector<1xf32> to vector<1x1x1xf32>
    %65 = vector.extract %64[0, 0, 0] : f32 from vector<1x1x1xf32>
    %cst_50 = arith.constant 0.000000e+00 : f32
    %66 = arith.addf %cst_50, %65 : f32
    %c1_51 = arith.constant 1 : index
    %c0_52 = arith.constant 0 : index
    %c0_53 = arith.constant 0 : index
    %67 = vector.load %arg0[%c1_51, %c0_52, %c0_53] : memref<2x11x64xbf16, #tpu.memory_space<vmem>>, vector<1x10x64xbf16>
    %68 = vector.shape_cast %67 : vector<1x10x64xbf16> to vector<10x64xbf16>
    %c1_54 = arith.constant 1 : index
    %c1_55 = arith.constant 1 : index
    %c0_56 = arith.constant 0 : index
    %69 = vector.load %arg0[%c1_54, %c1_55, %c0_56] : memref<2x11x64xbf16, #tpu.memory_space<vmem>>, vector<1x10x64xbf16>
    %70 = vector.shape_cast %69 : vector<1x10x64xbf16> to vector<10x64xbf16>
    %c3_57 = arith.constant 3 : index
    %c0_58 = arith.constant 0 : index
    %c0_59 = arith.constant 0 : index
    %71 = vector.load %arg1[%c3_57, %c0_58, %c0_59] : memref<4x64x4xbf16, #tpu.memory_space<vmem>>, vector<1x64x4xbf16>
    %72 = vector.shape_cast %71 : vector<1x64x4xbf16> to vector<64x4xbf16>
    %cst_60 = arith.constant dense<0.000000e+00> : vector<10x4xf32>
    %73 = tpu.matmul %68, %72, %cst_60 {dimension_numbers = #tpu.dot_dimension_numbers<[1], [0], [0], [1], [0, 0, 1, 1], [], []>} : vector<10x64xbf16>, vector<64x4xbf16>, vector<10x4xf32> -> vector<10x4xf32>
    %c1_61 = arith.constant 1 : index
    %c0_62 = arith.constant 0 : index
    %c0_63 = arith.constant 0 : index
    %74 = vector.load %arg1[%c1_61, %c0_62, %c0_63] : memref<4x64x4xbf16, #tpu.memory_space<vmem>>, vector<1x64x4xbf16>
    %75 = vector.shape_cast %74 : vector<1x64x4xbf16> to vector<64x4xbf16>
    %cst_64 = arith.constant dense<0.000000e+00> : vector<10x4xf32>
    %76 = tpu.matmul %70, %75, %cst_64 {dimension_numbers = #tpu.dot_dimension_numbers<[1], [0], [0], [1], [0, 0, 1, 1], [], []>} : vector<10x64xbf16>, vector<64x4xbf16>, vector<10x4xf32> -> vector<10x4xf32>
    %77 = arith.addf %73, %76 : vector<10x4xf32>
    %c0_65 = arith.constant 0 : index
    %c0_66 = arith.constant 0 : index
    %78 = vector.load %arg2[%c0_65, %c0_66] : memref<1x4xf32, #tpu.memory_space<vmem>>, vector<1x4xf32>
    %79 = vector.broadcast %78 : vector<1x4xf32> to vector<10x4xf32>
    %80 = arith.addf %77, %79 : vector<10x4xf32>
    %c1_67 = arith.constant 1 : index
    %c1_68 = arith.constant 1 : index
    %c0_69 = arith.constant 0 : index
    %81 = vector.load %arg0[%c1_67, %c1_68, %c0_69] : memref<2x11x64xbf16, #tpu.memory_space<vmem>>, vector<1x9x64xbf16>
    %82 = vector.shape_cast %81 : vector<1x9x64xbf16> to vector<9x64xbf16>
    %c1_70 = arith.constant 1 : index
    %c2_71 = arith.constant 2 : index
    %c0_72 = arith.constant 0 : index
    %83 = vector.load %arg0[%c1_70, %c2_71, %c0_72] : memref<2x11x64xbf16, #tpu.memory_space<vmem>>, vector<1x9x64xbf16>
    %84 = vector.shape_cast %83 : vector<1x9x64xbf16> to vector<9x64xbf16>
    %c2_73 = arith.constant 2 : index
    %c0_74 = arith.constant 0 : index
    %c0_75 = arith.constant 0 : index
    %85 = vector.load %arg1[%c2_73, %c0_74, %c0_75] : memref<4x64x4xbf16, #tpu.memory_space<vmem>>, vector<1x64x4xbf16>
    %86 = vector.shape_cast %85 : vector<1x64x4xbf16> to vector<64x4xbf16>
    %cst_76 = arith.constant dense<0.000000e+00> : vector<9x4xf32>
    %87 = tpu.matmul %82, %86, %cst_76 {dimension_numbers = #tpu.dot_dimension_numbers<[1], [0], [0], [1], [0, 0, 1, 1], [], []>} : vector<9x64xbf16>, vector<64x4xbf16>, vector<9x4xf32> -> vector<9x4xf32>
    %c0_77 = arith.constant 0 : index
    %c0_78 = arith.constant 0 : index
    %c0_79 = arith.constant 0 : index
    %88 = vector.load %arg1[%c0_77, %c0_78, %c0_79] : memref<4x64x4xbf16, #tpu.memory_space<vmem>>, vector<1x64x4xbf16>
    %89 = vector.shape_cast %88 : vector<1x64x4xbf16> to vector<64x4xbf16>
    %cst_80 = arith.constant dense<0.000000e+00> : vector<9x4xf32>
    %90 = tpu.matmul %84, %89, %cst_80 {dimension_numbers = #tpu.dot_dimension_numbers<[1], [0], [0], [1], [0, 0, 1, 1], [], []>} : vector<9x64xbf16>, vector<64x4xbf16>, vector<9x4xf32> -> vector<9x4xf32>
    %91 = arith.addf %87, %90 : vector<9x4xf32>
    %c0_81 = arith.constant 0 : index
    %c0_82 = arith.constant 0 : index
    %92 = vector.load %arg2[%c0_81, %c0_82] : memref<1x4xf32, #tpu.memory_space<vmem>>, vector<1x4xf32>
    %93 = vector.broadcast %92 : vector<1x4xf32> to vector<9x4xf32>
    %94 = arith.addf %91, %93 : vector<9x4xf32>
    %c1_83 = arith.constant 1 : index
    %c0_84 = arith.constant 0 : index
    %c0_85 = arith.constant 0 : index
    %95 = vector.load %arg3[%c1_83, %c0_84, %c0_85] : memref<2x10x4xf32, #tpu.memory_space<vmem>>, vector<1x10x4xf32>
    %96 = vector.shape_cast %95 : vector<1x10x4xf32> to vector<10x4xf32>
    %97 = arith.subf %80, %96 : vector<10x4xf32>
    %c1_86 = arith.constant 1 : index
    %c0_87 = arith.constant 0 : index
    %c0_88 = arith.constant 0 : index
    %98 = vector.load %arg4[%c1_86, %c0_87, %c0_88] : memref<2x9x4xf32, #tpu.memory_space<vmem>>, vector<1x9x4xf32>
    %99 = vector.shape_cast %98 : vector<1x9x4xf32> to vector<9x4xf32>
    %100 = arith.subf %94, %99 : vector<9x4xf32>
    %101 = arith.mulf %97, %97 : vector<10x4xf32>
    %102 = vector.shape_cast %101 : vector<10x4xf32> to vector<1x10x4xf32>
    %cst_89 = arith.constant dense<0.000000e+00> : vector<1xf32>
    %103 = vector.multi_reduction <add>, %102, %cst_89 [1, 2] : vector<1x10x4xf32> to vector<1xf32>
    %104 = vector.shape_cast %103 : vector<1xf32> to vector<1x1x1xf32>
    %105 = vector.extract %104[0, 0, 0] : f32 from vector<1x1x1xf32>
    %106 = arith.addf %45, %105 : f32
    %107 = arith.mulf %100, %100 : vector<9x4xf32>
    %108 = vector.shape_cast %107 : vector<9x4xf32> to vector<1x9x4xf32>
    %cst_90 = arith.constant dense<0.000000e+00> : vector<1xf32>
    %109 = vector.multi_reduction <add>, %108, %cst_90 [1, 2] : vector<1x9x4xf32> to vector<1xf32>
    %110 = vector.shape_cast %109 : vector<1xf32> to vector<1x1x1xf32>
    %111 = vector.extract %110[0, 0, 0] : f32 from vector<1x1x1xf32>
    %112 = arith.addf %106, %111 : f32
    %c1_91 = arith.constant 1 : index
    %c0_92 = arith.constant 0 : index
    %c0_93 = arith.constant 0 : index
    %113 = vector.load %arg7[%c1_91, %c0_92, %c0_93] : memref<2x10x4xf32, #tpu.memory_space<vmem>>, vector<1x10x4xf32>
    %114 = vector.shape_cast %113 : vector<1x10x4xf32> to vector<10x4xf32>
    %115 = vector.shape_cast %80 : vector<10x4xf32> to vector<1x10x4xf32>
    tpu.vector_store %arg7[%c1_91, %c0_92, %c0_93], %115 {strides = array<i32>} : memref<2x10x4xf32, #tpu.memory_space<vmem>>, vector<1x10x4xf32>,
    %c1_94 = arith.constant 1 : index
    %c0_95 = arith.constant 0 : index
    %c0_96 = arith.constant 0 : index
    %116 = vector.load %arg8[%c1_94, %c0_95, %c0_96] : memref<2x9x4xf32, #tpu.memory_space<vmem>>, vector<1x9x4xf32>
    %117 = vector.shape_cast %116 : vector<1x9x4xf32> to vector<9x4xf32>
    %118 = vector.shape_cast %94 : vector<9x4xf32> to vector<1x9x4xf32>
    tpu.vector_store %arg8[%c1_94, %c0_95, %c0_96], %118 {strides = array<i32>} : memref<2x9x4xf32, #tpu.memory_space<vmem>>, vector<1x9x4xf32>,
    %c1_97 = arith.constant 1 : index
    %c0_98 = arith.constant 0 : index
    %c0_99 = arith.constant 0 : index
    %119 = vector.load %arg5[%c1_97, %c0_98, %c0_99] : memref<2x4x8xf32, #tpu.memory_space<vmem>>, vector<1x4x8xf32>
    %120 = vector.shape_cast %119 : vector<1x4x8xf32> to vector<4x8xf32>
    %c1_100 = arith.constant 1 : index
    %c0_101 = arith.constant 0 : index
    %c0_102 = arith.constant 0 : index
    %121 = vector.load %arg6[%c1_100, %c0_101, %c0_102] : memref<2x4x8xf32, #tpu.memory_space<vmem>>, vector<1x4x8xf32>
    %122 = vector.shape_cast %121 : vector<1x4x8xf32> to vector<4x8xf32>
    %cst_103 = arith.constant 1.000000e+00 : f32
    %123 = vector.broadcast %cst_103 : f32 to vector<4x8xf32>
    %124 = arith.addf %123, %122 : vector<4x8xf32>
    %125 = arith.mulf %120, %120 : vector<4x8xf32>
    %126 = arith.subf %124, %125 : vector<4x8xf32>
    %127 = math.exp %122 : vector<4x8xf32>
    %128 = arith.subf %126, %127 : vector<4x8xf32>
    %129 = vector.shape_cast %128 : vector<4x8xf32> to vector<1x4x8xf32>
    %cst_104 = arith.constant dense<0.000000e+00> : vector<1xf32>
    %130 = vector.multi_reduction <add>, %129, %cst_104 [1, 2] : vector<1x4x8xf32> to vector<1xf32>
    %131 = vector.shape_cast %130 : vector<1xf32> to vector<1x1x1xf32>
    %132 = vector.extract %131[0, 0, 0] : f32 from vector<1x1x1xf32>
    %133 = arith.addf %66, %132 : f32
    %cst_105 = arith.constant 1.520000e+02 : f32
    %134 = arith.divf %112, %cst_105 : f32
    %cst_106 = arith.constant -5.000000e-01 : f32
    %135 = arith.mulf %cst_106, %133 : f32
    %cst_107 = arith.constant 2.000000e+00 : f32
    %136 = arith.divf %135, %cst_107 : f32
    %cst_108 = arith.constant 1.000000e+00 : f32
    %137 = arith.mulf %cst_108, %136 : f32
    %138 = arith.addf %134, %137 : f32
    %c0_109 = arith.constant 0 : index
    %139 = memref.load %arg9[%c0_109] : memref<3xf32, #tpu.memory_space<smem>>
    memref.store %138, %arg9[%c0_109] : memref<3xf32, #tpu.memory_space<smem>>
    %c1_110 = arith.constant 1 : index
    %140 = memref.load %arg9[%c1_110] : memref<3xf32, #tpu.memory_space<smem>>
    memref.store %134, %arg9[%c1_110] : memref<3xf32, #tpu.memory_space<smem>>
    %c2_111 = arith.constant 2 : index
    %141 = memref.load %arg9[%c2_111] : memref<3xf32, #tpu.memory_space<smem>>
    memref.store %136, %arg9[%c2_111] : memref<3xf32, #tpu.memory_space<smem>>
    return
  }
}

</mosaic_0001>

<llo_original>
// kernel: vae_forward.7
$region0: #{vae_forward.7}
  #allocation0 [shape = 'u32[]', space=smem, size = 0x4, offset = 0x4, fixed_abs, tag = 'smem constant byte address 0x4 - core index']
  #allocation1 [shape = 'u32[72,128]{1,0:T(1,128)}', space=vmem, size = 0x9000, scoped, tag = 'internal scratch']
  %s0 = inlined_call_operand.vmem [shape: bf16[2,10,8], index: 0, kind: input, shape index: {}]
  %s1 = inlined_call_operand.vmem [shape: bf16[2,8,64], index: 1, kind: input, shape index: {}]
  %s2 = inlined_call_operand.vmem [shape: f32[1,64], index: 2, kind: input, shape index: {}]
  %s3 = inlined_call_operand.vmem [shape: bf16[2,9,64], index: 3, kind: output, shape index: {}]
  %s4 = sld [smem:[#allocation0]]
  $region22: #{vae_forward.7} parent=0
    _
  %s6 = ssub.s32 1, %s4
  %s7 = scalar_select 0, %s6, %s4
  // Predicated region
  $region2: #{vae_forward.7} parent=0 // pred_check
    _
  $region3: #{vae_forward.7} parent=0 // pred_check_branch
    %9 = sbr.rel (0) target = $region5
  $region4: #{vae_forward.7} parent=0 // pred_region
    _
  $region5: #{vae_forward.7} parent=0 // pred_fallthru
    _
  // Predicated region
  $region6: #{vae_forward.7} parent=0 // pred_check
    _
  $region7: #{vae_forward.7} parent=0 // pred_check_branch
    %11 = sbr.rel (0) target = $region9
  $region8: #{vae_forward.7} parent=0 // pred_region
    _
  $region9: #{vae_forward.7} parent=0 // pred_fallthru
    _
  // Predicated region
  $region10: #{vae_forward.7} parent=0 // pred_check
    _
  $region11: #{vae_forward.7} parent=0 // pred_check_branch
    %13 = sbr.rel (0) target = $region13
  $region12: #{vae_forward.7} parent=0 // pred_region
    _
  $region13: #{vae_forward.7} parent=0 // pred_fallthru
    _
  %v15 = vld [vmem:[%s0] sm:$0xf]
  %v16 = vld [vmem:[%s0 + $0x4] sm:$0x1]
  %v17 = vld [vmem:[%s1] sm:$0xf]
  %s18 = scalar_lea.vmem %s1, 4
  %v19 = vld [vmem:[%s18] sm:$0xf]
  %v22 = vunpack.c.l.b16 %v15
  %v23 = vunpack.c.l.b16 %v16
  %v24 = vpack.c.b16 %v23, %v22
  %v26 = vshrl.u32 %v24, 16
  %v28 = vshll.u32 %v24, 16
  %v30 = vrot.slane %v28, 1
  %v31 = vor.u32 %v26, %v30
  %vm32 = vcmask 64512
  %v34 = vsel %vm32, %v31, 0
  %vm36 = vcmask 1043456
  %v38 = vsel %vm36, %v19, 0
  %40 = vmatpush.bf16.msra.mxu0 0
  %41 = vmatpush.bf16.msra.mxu0 0
  %42 = vmatpush.bf16.msra.mxu0 0
  %43 = vmatpush.bf16.msra.mxu0 0
  %44 = vmatpush.bf16.msra.mxu0 0
  %45 = vmatpush.bf16.msra.mxu0 0
  %46 = vmatpush.bf16.msra.mxu0 0
  %47 = vmatpush.bf16.msra.mxu0 %v38
  %48 = vmatmul.bf16.gmra.mxu0 %v34
  %v49 = vpop.f32.mrf.mxu0
  %v50 = vadd.f32 0.0, %v49
  %v51 = vpop.f32.mrf.mxu0
  %v52 = vadd.f32 0.0, %v51
  %53 = vdwg.mxu0
  %v54 = vsel %vm32, %v24, 0
  %v57 = vsel %vm36, %v17, 0
  %59 = vmatpush.bf16.msra.mxu0 0
  %60 = vmatpush.bf16.msra.mxu0 0
  %61 = vmatpush.bf16.msra.mxu0 0
  %62 = vmatpush.bf16.msra.mxu0 0
  %63 = vmatpush.bf16.msra.mxu0 0
  %64 = vmatpush.bf16.msra.mxu0 0
  %65 = vmatpush.bf16.msra.mxu0 0
  %66 = vmatpush.bf16.msra.mxu0 %v57
  %67 = vmatmul.bf16.gmra.mxu0 %v54
  %v68 = vpop.f32.mrf.mxu0
  %v69 = vadd.f32 %v50, %v68
  %v70 = vpop.f32.mrf.mxu0
  %v71 = vadd.f32 %v52, %v70
  %72 = vdwg.mxu0
  %v73 = vld [vmem:[%s2] sm:$0x1]
  %v75 = vperm.slane %v73, 0
  %v77 = vadd.f32 %v69, %v75
  %v78 = vadd.f32 %v71, %v75
  %v79 = vmax.f32 %v77, 0.0
  %v80 = vmax.f32 %v78, 0.0
  %v81 = vpack.c.bf16 %v79, %v79
  %v82 = vpack.c.bf16 %v80, %v80
  %vm83 = vcmask 519168
  %84 = vst.msk [vmem:[%s3] sm:$0xf] %vm83, %v81
  %vm85 = vcmask 516096
  %vm86 = vsmask.f32 256
  %vm87 = vmand %vm85, %vm86
  %v88 = vld [vmem:[%s3 + $0x4] sm:$0x1]
  %v89 = vsel %vm87, %v82, %v88
  %90 = vst [vmem:[%s3 + $0x4] sm:$0x1] %v89
  %s91 = scalar_lea.vmem %s0, 8
  %v92 = vld [vmem:[%s91] sm:$0xf]
  %v93 = vld [vmem:[%s91 + $0x4] sm:$0x1]
  %v94 = vld [vmem:[%s1] sm:$0xf]
  %v95 = vld [vmem:[%s18] sm:$0xf]
  %v98 = vunpack.c.l.b16 %v92
  %v99 = vunpack.c.l.b16 %v93
  %v100 = vpack.c.b16 %v99, %v98
  %v102 = vshrl.u32 %v100, 16
  %v104 = vshll.u32 %v100, 16
  %v106 = vrot.slane %v104, 1
  %v107 = vor.u32 %v102, %v106
  %v109 = vsel %vm32, %v107, 0
  %v112 = vsel %vm36, %v95, 0
  %114 = vmatpush.bf16.msra.mxu0 0
  %115 = vmatpush.bf16.msra.mxu0 0
  %116 = vmatpush.bf16.msra.mxu0 0
  %117 = vmatpush.bf16.msra.mxu0 0
  %118 = vmatpush.bf16.msra.mxu0 0
  %119 = vmatpush.bf16.msra.mxu0 0
  %120 = vmatpush.bf16.msra.mxu0 0
  %121 = vmatpush.bf16.msra.mxu0 %v112
  %122 = vmatmul.bf16.gmra.mxu0 %v109
  %v123 = vpop.f32.mrf.mxu0
  %v124 = vadd.f32 0.0, %v123
  %v125 = vpop.f32.mrf.mxu0
  %v126 = vadd.f32 0.0, %v125
  %127 = vdwg.mxu0
  %v128 = vsel %vm32, %v100, 0
  %v131 = vsel %vm36, %v94, 0
  %133 = vmatpush.bf16.msra.mxu0 0
  %134 = vmatpush.bf16.msra.mxu0 0
  %135 = vmatpush.bf16.msra.mxu0 0
  %136 = vmatpush.bf16.msra.mxu0 0
  %137 = vmatpush.bf16.msra.mxu0 0
  %138 = vmatpush.bf16.msra.mxu0 0
  %139 = vmatpush.bf16.msra.mxu0 0
  %140 = vmatpush.bf16.msra.mxu0 %v131
  %141 = vmatmul.bf16.gmra.mxu0 %v128
  %v142 = vpop.f32.mrf.mxu0
  %v143 = vadd.f32 %v124, %v142
  %v144 = vpop.f32.mrf.mxu0
  %v145 = vadd.f32 %v126, %v144
  %146 = vdwg.mxu0
  %v147 = vld [vmem:[%s2] sm:$0x1]
  %v149 = vperm.slane %v147, 0
  %v151 = vadd.f32 %v143, %v149
  %v152 = vadd.f32 %v145, %v149
  %v153 = vmax.f32 %v151, 0.0
  %v154 = vmax.f32 %v152, 0.0
  %v155 = vpack.c.bf16 %v153, %v153
  %v156 = vpack.c.bf16 %v154, %v154
  %s157 = scalar_lea.vmem %s3, 8
  %158 = vst.msk [vmem:[%s157] sm:$0xf] %vm83, %v155
  %v159 = vld [vmem:[%s157 + $0x4] sm:$0x1]
  %v160 = vsel %vm87, %v156, %v159
  %161 = vst [vmem:[%s157 + $0x4] sm:$0x1] %v160
  // Predicated region
  $region14: #{vae_forward.7} parent=0 // pred_check
    _
  $region15: #{vae_forward.7} parent=0 // pred_check_branch
    %163 = sbr.rel (0) target = $region17
  $region16: #{vae_forward.7} parent=0 // pred_region
    _
  $region17: #{vae_forward.7} parent=0 // pred_fallthru
    _
  // Predicated region
  $region18: #{vae_forward.7} parent=0 // pred_check
    _
  $region19: #{vae_forward.7} parent=0 // pred_check_branch
    %165 = sbr.rel (0) target = $region21
  $region20: #{vae_forward.7} parent=0 // pred_region
    _
  $region21: #{vae_forward.7} parent=0 // pred_fallthru
    _

// kernel: vae_forward.10
$region0: #{vae_forward.10}
  #allocation0 [shape = 'u32[]', space=smem, size = 0x4, offset = 0x4, fixed_abs, tag = 'smem constant byte address 0x4 - core index']
  #allocation1 [shape = 'u32[72,128]{1,0:T(1,128)}', space=vmem, size = 0x9000, scoped, tag = 'internal scratch']
  %s0 = inlined_call_operand.vmem [shape: bf16[2,4,256], index: 0, kind: input, shape index: {}]
  %s1 = inlined_call_operand.vmem [shape: bf16[256,16], index: 1, kind: input, shape index: {}]
  %s2 = inlined_call_operand.vmem [shape: f32[1,16], index: 2, kind: input, shape index: {}]
  %s3 = inlined_call_operand.vmem [shape: f32[2,4,8], index: 3, kind: input, shape index: {}]
  %s4 = inlined_call_operand.vmem [shape: bf16[8,256], index: 4, kind: input, shape index: {}]
  %s5 = inlined_call_operand.vmem [shape: f32[1,256], index: 5, kind: input, shape index: {}]
  %s6 = inlined_call_operand.vmem [shape: f32[2,4,8], index: 6, kind: output, shape index: {0}]
  %s7 = inlined_call_operand.vmem [shape: f32[2,4,8], index: 7, kind: output, shape index: {1}]
  %s8 = inlined_call_operand.vmem [shape: bf16[2,4,256], index: 8, kind: output, shape index: {2}]
  %9 = xla_tuple %s6, %s7, %s8
  %s10 = sld [smem:[#allocation0]]
  $region50: #{vae_forward.10} parent=0
    _
  %s12 = ssub.s32 1, %s10
  %s13 = scalar_select 0, %s12, %s10
  // Predicated region
  $region2: #{vae_forward.10} parent=0 // pred_check
    _
  $region3: #{vae_forward.10} parent=0 // pred_check_branch
    %15 = sbr.rel (0) target = $region5
  $region4: #{vae_forward.10} parent=0 // pred_region
    _
  $region5: #{vae_forward.10} parent=0 // pred_fallthru
    _
  // Predicated region
  $region6: #{vae_forward.10} parent=0 // pred_check
    _
  $region7: #{vae_forward.10} parent=0 // pred_check_branch
    %17 = sbr.rel (0) target = $region9
  $region8: #{vae_forward.10} parent=0 // pred_region
    _
  $region9: #{vae_forward.10} parent=0 // pred_fallthru
    _
  // Predicated region
  $region10: #{vae_forward.10} parent=0 // pred_check
    _
  $region11: #{vae_forward.10} parent=0 // pred_check_branch
    %19 = sbr.rel (0) target = $region13
  $region12: #{vae_forward.10} parent=0 // pred_region
    _
  $region13: #{vae_forward.10} parent=0 // pred_fallthru
    _
  // Predicated region
  $region14: #{vae_forward.10} parent=0 // pred_check
    _
  $region15: #{vae_forward.10} parent=0 // pred_check_branch
    %21 = sbr.rel (0) target = $region17
  $region16: #{vae_forward.10} parent=0 // pred_region
    _
  $region17: #{vae_forward.10} parent=0 // pred_fallthru
    _
  // Predicated region
  $region18: #{vae_forward.10} parent=0 // pred_check
    _
  $region19: #{vae_forward.10} parent=0 // pred_check_branch
    %23 = sbr.rel (0) target = $region21
  $region20: #{vae_forward.10} parent=0 // pred_region
    _
  $region21: #{vae_forward.10} parent=0 // pred_fallthru
    _
  // Predicated region
  $region22: #{vae_forward.10} parent=0 // pred_check
    _
  $region23: #{vae_forward.10} parent=0 // pred_check_branch
    %25 = sbr.rel (0) target = $region25
  $region24: #{vae_forward.10} parent=0 // pred_region
    _
  $region25: #{vae_forward.10} parent=0 // pred_fallthru
    _
  %v27 = vld [vmem:[%s0] sm:$0xf]
  %v28 = vld [vmem:[%s1] sm:$0xf]
  %v29 = vld [vmem:[%s1 + $0x4] sm:$0xf]
  %v30 = vld [vmem:[%s1 + $0x8] sm:$0xf]
  %v31 = vld [vmem:[%s1 + $0xc] sm:$0xf]
  %v32 = vld [vmem:[%s1 + $0x10] sm:$0xf]
  %v33 = vld [vmem:[%s1 + $0x14] sm:$0xf]
  %v34 = vld [vmem:[%s1 + $0x18] sm:$0xf]
  %v35 = vld [vmem:[%s1 + $0x1c] sm:$0xf]
  %v36 = vld [vmem:[%s1 + $0x20] sm:$0xf]
  %v37 = vld [vmem:[%s1 + $0x24] sm:$0xf]
  %v38 = vld [vmem:[%s1 + $0x28] sm:$0xf]
  %v39 = vld [vmem:[%s1 + $0x2c] sm:$0xf]
  %v40 = vld [vmem:[%s1 + $0x30] sm:$0xf]
  %v41 = vld [vmem:[%s1 + $0x34] sm:$0xf]
  %v42 = vld [vmem:[%s1 + $0x38] sm:$0xf]
  %v43 = vld [vmem:[%s1 + $0x3c] sm:$0xf]
  %v44 = vld [vmem:[%s1 + $0x40] sm:$0xf]
  %v45 = vld [vmem:[%s1 + $0x44] sm:$0xf]
  %v46 = vld [vmem:[%s1 + $0x48] sm:$0xf]
  %v47 = vld [vmem:[%s1 + $0x4c] sm:$0xf]
  %v48 = vld [vmem:[%s1 + $0x50] sm:$0xf]
  %v49 = vld [vmem:[%s1 + $0x54] sm:$0xf]
  %v50 = vld [vmem:[%s1 + $0x58] sm:$0xf]
  %v51 = vld [vmem:[%s1 + $0x5c] sm:$0xf]
  %v52 = vld [vmem:[%s1 + $0x60] sm:$0xf]
  %v53 = vld [vmem:[%s1 + $0x64] sm:$0xf]
  %v54 = vld [vmem:[%s1 + $0x68] sm:$0xf]
  %v55 = vld [vmem:[%s1 + $0x6c] sm:$0xf]
  %v56 = vld [vmem:[%s1 + $0x70] sm:$0xf]
  %v57 = vld [vmem:[%s1 + $0x74] sm:$0xf]
  %v58 = vld [vmem:[%s1 + $0x78] sm:$0xf]
  %v59 = vld [vmem:[%s1 + $0x7c] sm:$0xf]
  %v60 = vld [vmem:[%s2] sm:$0x1]
  %v62 = vperm.slane %v60, 0
  %65 = vst [vmem:[#allocation1] ss:$4 sm:$0xff] %v27
  %v66 = vld.sshfl [vmem:[#allocation1] sm:$0xff pattern:$0x73625140]
  %v67 = vld.sshfl [vmem:[#allocation1 + $0x8] sm:$0xff pattern:$0x73625140]
  %v102 = vunpack.c.l.b16 %v28
  %v103 = vunpack.c.l.b16 %v29
  %v104 = vunpack.c.l.b16 %v30
  %v105 = vunpack.c.l.b16 %v31
  %v106 = vunpack.c.l.b16 %v32
  %v107 = vunpack.c.l.b16 %v33
  %v108 = vunpack.c.l.b16 %v34
  %v109 = vunpack.c.l.b16 %v35
  %v110 = vunpack.c.l.b16 %v36
  %v111 = vunpack.c.l.b16 %v37
  %v112 = vunpack.c.l.b16 %v38
  %v113 = vunpack.c.l.b16 %v39
  %v114 = vunpack.c.l.b16 %v40
  %v115 = vunpack.c.l.b16 %v41
  %v116 = vunpack.c.l.b16 %v42
  %v117 = vunpack.c.l.b16 %v43
  %v118 = vunpack.c.l.b16 %v44
  %v119 = vunpack.c.l.b16 %v45
  %v120 = vunpack.c.l.b16 %v46
  %v121 = vunpack.c.l.b16 %v47
  %v122 = vunpack.c.l.b16 %v48
  %v123 = vunpack.c.l.b16 %v49
  %v124 = vunpack.c.l.b16 %v50
  %v125 = vunpack.c.l.b16 %v51
  %v126 = vunpack.c.l.b16 %v52
  %v127 = vunpack.c.l.b16 %v53
  %v128 = vunpack.c.l.b16 %v54
  %v129 = vunpack.c.l.b16 %v55
  %v130 = vunpack.c.l.b16 %v56
  %v131 = vunpack.c.l.b16 %v57
  %v132 = vunpack.c.l.b16 %v58
  %v133 = vunpack.c.l.b16 %v59
  %v134 = vpack.c.b16 %v103, %v102
  %v135 = vpack.c.b16 %v105, %v104
  %v136 = vpack.c.b16 %v107, %v106
  %v137 = vpack.c.b16 %v109, %v108
  %v138 = vpack.c.b16 %v111, %v110
  %v139 = vpack.c.b16 %v113, %v112
  %v140 = vpack.c.b16 %v115, %v114
  %v141 = vpack.c.b16 %v117, %v116
  %v142 = vpack.c.b16 %v119, %v118
  %v143 = vpack.c.b16 %v121, %v120
  %v144 = vpack.c.b16 %v123, %v122
  %v145 = vpack.c.b16 %v125, %v124
  %v146 = vpack.c.b16 %v127, %v126
  %v147 = vpack.c.b16 %v129, %v128
  %v148 = vpack.c.b16 %v131, %v130
  %v149 = vpack.c.b16 %v133, %v132
  %166 = vmatpush.bf16.msra.mxu0 %v141
  %167 = vmatpush.bf16.msra.mxu0 %v140
  %168 = vmatpush.bf16.msra.mxu0 %v139
  %169 = vmatpush.bf16.msra.mxu0 %v138
  %170 = vmatpush.bf16.msra.mxu0 %v137
  %171 = vmatpush.bf16.msra.mxu0 %v136
  %172 = vmatpush.bf16.msra.mxu0 %v135
  %173 = vmatpush.bf16.msra.mxu0 %v134
  %174 = vmatmul.bf16.gmra.mxu0 %v66
  %v175 = vpop.f32.mrf.mxu0
  %v176 = vadd.f32 %v62, %v175
  %v177 = vpop.f32.mrf.mxu0
  %178 = vdwg.mxu0
  %179 = vmatpush.bf16.msra.mxu0 %v149
  %180 = vmatpush.bf16.msra.mxu0 %v148
  %181 = vmatpush.bf16.msra.mxu0 %v147
  %182 = vmatpush.bf16.msra.mxu0 %v146
  %183 = vmatpush.bf16.msra.mxu0 %v145
  %184 = vmatpush.bf16.msra.mxu0 %v144
  %185 = vmatpush.bf16.msra.mxu0 %v143
  %186 = vmatpush.bf16.msra.mxu0 %v142
  %187 = vmatmul.bf16.gmra.mxu0 %v67
  %v188 = vpop.f32.mrf.mxu0
  %v189 = vadd.f32 %v176, %v188
  %v190 = vpop.f32.mrf.mxu0
  %191 = vdwg.mxu0
  %v192 = vmul.f32 %v189, 0.5
  %v193 = vmul.f32 %v192, 1.442695
  %v194 = vpow.pop %v193
  %v195 = vld [vmem:[%s3] sm:$0xf]
  %197 = vrot.lane.b32.xlu0 %v194, 120
  %v198 = vpop.permute.xlu0 %197
  %v200 = vmul.f32 %v195, %v198
  %v201 = vadd.f32 %v189, %v200
  %v202 = vpack.c.bf16 %v201, %v201
  %v203 = vld [vmem:[%s4] sm:$0xff]
  %v204 = vld [vmem:[%s5] sm:$0x3]
  %v206 = vperm.slane %v204, 0
  %v207 = vperm.slane %v204, 1
  %v211 = vunpack.c.l.b16 %v203
  %v212 = vunpack.c.h.b16 %v203
  %v213 = vpack.c.b16 %v211, %v211
  %v214 = vpack.c.b16 %v212, %v212
  %vm215 = vcmask 64512
  %v217 = vsel %vm215, %v202, 0
  %vm219 = vcmask 1043456
  %v221 = vsel %vm219, %v213, 0
  %v224 = vsel %vm219, %v214, 0
  %226 = vmatpush.bf16.msra.mxu0 0
  %227 = vmatpush.bf16.msra.mxu0 0
  %228 = vmatpush.bf16.msra.mxu0 0
  %229 = vmatpush.bf16.msra.mxu0 0
  %230 = vmatpush.bf16.msra.mxu0 0
  %231 = vmatpush.bf16.msra.mxu0 0
  %232 = vmatpush.bf16.msra.mxu0 0
  %233 = vmatpush.bf16.msra.mxu0 %v221
  %234 = vmatmul.bf16.gmra.mxu0 %v217
  %v235 = vpop.f32.mrf.mxu0
  %v236 = vadd.f32 %v206, %v235
  %v237 = vpop.f32.mrf.mxu0
  %238 = vdwg.mxu0
  %239 = vmatpush.bf16.msra.mxu0 0
  %240 = vmatpush.bf16.msra.mxu0 0
  %241 = vmatpush.bf16.msra.mxu0 0
  %242 = vmatpush.bf16.msra.mxu0 0
  %243 = vmatpush.bf16.msra.mxu0 0
  %244 = vmatpush.bf16.msra.mxu0 0
  %245 = vmatpush.bf16.msra.mxu0 0
  %246 = vmatpush.bf16.msra.mxu0 %v224
  %247 = vmatmul.bf16.gmra.mxu0 %v217
  %v248 = vpop.f32.mrf.mxu0
  %v249 = vadd.f32 %v207, %v248
  %v250 = vpop.f32.mrf.mxu0
  %251 = vdwg.mxu0
  %v252 = vmax.f32 %v236, 0.0
  %v253 = vmax.f32 %v249, 0.0
  %vm254 = vcmask 60416
  %255 = vst.msk [vmem:[%s6] sm:$0xf] %vm254, %v189
  %257 = vrot.lane.b32.xlu0 %v189, 120
  %v258 = vpop.permute.xlu0 %257
  %260 = vst.msk [vmem:[%s7] sm:$0xf] %vm254, %v258
  %v261 = vpack.c.bf16 %v253, %v252
  %v263 = vrot.slane %v261, 2
  %vm264 = vcmask 1041408
  %v267 = vsel %vm264, %v261, %v263
  %269 = vst [vmem:[%s8] sm:$0xf] %v267
  %s270 = scalar_lea.vmem %s0, 4
  %v271 = vld [vmem:[%s270] sm:$0xf]
  %v272 = vld [vmem:[%s1] sm:$0xf]
  %v273 = vld [vmem:[%s1 + $0x4] sm:$0xf]
  %v274 = vld [vmem:[%s1 + $0x8] sm:$0xf]
  %v275 = vld [vmem:[%s1 + $0xc] sm:$0xf]
  %v276 = vld [vmem:[%s1 + $0x10] sm:$0xf]
  %v277 = vld [vmem:[%s1 + $0x14] sm:$0xf]
  %v278 = vld [vmem:[%s1 + $0x18] sm:$0xf]
  %v279 = vld [vmem:[%s1 + $0x1c] sm:$0xf]
  %v280 = vld [vmem:[%s1 + $0x20] sm:$0xf]
  %v281 = vld [vmem:[%s1 + $0x24] sm:$0xf]
  %v282 = vld [vmem:[%s1 + $0x28] sm:$0xf]
  %v283 = vld [vmem:[%s1 + $0x2c] sm:$0xf]
  %v284 = vld [vmem:[%s1 + $0x30] sm:$0xf]
  %v285 = vld [vmem:[%s1 + $0x34] sm:$0xf]
  %v286 = vld [vmem:[%s1 + $0x38] sm:$0xf]
  %v287 = vld [vmem:[%s1 + $0x3c] sm:$0xf]
  %v288 = vld [vmem:[%s1 + $0x40] sm:$0xf]
  %v289 = vld [vmem:[%s1 + $0x44] sm:$0xf]
  %v290 = vld [vmem:[%s1 + $0x48] sm:$0xf]
  %v291 = vld [vmem:[%s1 + $0x4c] sm:$0xf]
  %v292 = vld [vmem:[%s1 + $0x50] sm:$0xf]
  %v293 = vld [vmem:[%s1 + $0x54] sm:$0xf]
  %v294 = vld [vmem:[%s1 + $0x58] sm:$0xf]
  %v295 = vld [vmem:[%s1 + $0x5c] sm:$0xf]
  %v296 = vld [vmem:[%s1 + $0x60] sm:$0xf]
  %v297 = vld [vmem:[%s1 + $0x64] sm:$0xf]
  %v298 = vld [vmem:[%s1 + $0x68] sm:$0xf]
  %v299 = vld [vmem:[%s1 + $0x6c] sm:$0xf]
  %v300 = vld [vmem:[%s1 + $0x70] sm:$0xf]
  %v301 = vld [vmem:[%s1 + $0x74] sm:$0xf]
  %v302 = vld [vmem:[%s1 + $0x78] sm:$0xf]
  %v303 = vld [vmem:[%s1 + $0x7c] sm:$0xf]
  %v304 = vld [vmem:[%s2] sm:$0x1]
  %v306 = vperm.slane %v304, 0
  %309 = vst [vmem:[#allocation1] ss:$4 sm:$0xff] %v271
  %v310 = vld.sshfl [vmem:[#allocation1] sm:$0xff pattern:$0x73625140]
  %v311 = vld.sshfl [vmem:[#allocation1 + $0x8] sm:$0xff pattern:$0x73625140]
  %v346 = vunpack.c.l.b16 %v272
  %v347 = vunpack.c.l.b16 %v273
  %v348 = vunpack.c.l.b16 %v274
  %v349 = vunpack.c.l.b16 %v275
  %v350 = vunpack.c.l.b16 %v276
  %v351 = vunpack.c.l.b16 %v277
  %v352 = vunpack.c.l.b16 %v278
  %v353 = vunpack.c.l.b16 %v279
  %v354 = vunpack.c.l.b16 %v280
  %v355 = vunpack.c.l.b16 %v281
  %v356 = vunpack.c.l.b16 %v282
  %v357 = vunpack.c.l.b16 %v283
  %v358 = vunpack.c.l.b16 %v284
  %v359 = vunpack.c.l.b16 %v285
  %v360 = vunpack.c.l.b16 %v286
  %v361 = vunpack.c.l.b16 %v287
  %v362 = vunpack.c.l.b16 %v288
  %v363 = vunpack.c.l.b16 %v289
  %v364 = vunpack.c.l.b16 %v290
  %v365 = vunpack.c.l.b16 %v291
  %v366 = vunpack.c.l.b16 %v292
  %v367 = vunpack.c.l.b16 %v293
  %v368 = vunpack.c.l.b16 %v294
  %v369 = vunpack.c.l.b16 %v295
  %v370 = vunpack.c.l.b16 %v296
  %v371 = vunpack.c.l.b16 %v297
  %v372 = vunpack.c.l.b16 %v298
  %v373 = vunpack.c.l.b16 %v299
  %v374 = vunpack.c.l.b16 %v300
  %v375 = vunpack.c.l.b16 %v301
  %v376 = vunpack.c.l.b16 %v302
  %v377 = vunpack.c.l.b16 %v303
  %v378 = vpack.c.b16 %v347, %v346
  %v379 = vpack.c.b16 %v349, %v348
  %v380 = vpack.c.b16 %v351, %v350
  %v381 = vpack.c.b16 %v353, %v352
  %v382 = vpack.c.b16 %v355, %v354
  %v383 = vpack.c.b16 %v357, %v356
  %v384 = vpack.c.b16 %v359, %v358
  %v385 = vpack.c.b16 %v361, %v360
  %v386 = vpack.c.b16 %v363, %v362
  %v387 = vpack.c.b16 %v365, %v364
  %v388 = vpack.c.b16 %v367, %v366
  %v389 = vpack.c.b16 %v369, %v368
  %v390 = vpack.c.b16 %v371, %v370
  %v391 = vpack.c.b16 %v373, %v372
  %v392 = vpack.c.b16 %v375, %v374
  %v393 = vpack.c.b16 %v377, %v376
  %410 = vmatpush.bf16.msra.mxu0 %v385
  %411 = vmatpush.bf16.msra.mxu0 %v384
  %412 = vmatpush.bf16.msra.mxu0 %v383
  %413 = vmatpush.bf16.msra.mxu0 %v382
  %414 = vmatpush.bf16.msra.mxu0 %v381
  %415 = vmatpush.bf16.msra.mxu0 %v380
  %416 = vmatpush.bf16.msra.mxu0 %v379
  %417 = vmatpush.bf16.msra.mxu0 %v378
  %418 = vmatmul.bf16.gmra.mxu0 %v310
  %v419 = vpop.f32.mrf.mxu0
  %v420 = vadd.f32 %v306, %v419
  %v421 = vpop.f32.mrf.mxu0
  %422 = vdwg.mxu0
  %423 = vmatpush.bf16.msra.mxu0 %v393
  %424 = vmatpush.bf16.msra.mxu0 %v392
  %425 = vmatpush.bf16.msra.mxu0 %v391
  %426 = vmatpush.bf16.msra.mxu0 %v390
  %427 = vmatpush.bf16.msra.mxu0 %v389
  %428 = vmatpush.bf16.msra.mxu0 %v388
  %429 = vmatpush.bf16.msra.mxu0 %v387
  %430 = vmatpush.bf16.msra.mxu0 %v386
  %431 = vmatmul.bf16.gmra.mxu0 %v311
  %v432 = vpop.f32.mrf.mxu0
  %v433 = vadd.f32 %v420, %v432
  %v434 = vpop.f32.mrf.mxu0
  %435 = vdwg.mxu0
  %v436 = vmul.f32 %v433, 0.5
  %v437 = vmul.f32 %v436, 1.442695
  %v438 = vpow.pop %v437
  %s439 = scalar_lea.vmem %s3, 4
  %v440 = vld [vmem:[%s439] sm:$0xf]
  %442 = vrot.lane.b32.xlu0 %v438, 120
  %v443 = vpop.permute.xlu0 %442
  %v445 = vmul.f32 %v440, %v443
  %v446 = vadd.f32 %v433, %v445
  %v447 = vpack.c.bf16 %v446, %v446
  %v448 = vld [vmem:[%s4] sm:$0xff]
  %v449 = vld [vmem:[%s5] sm:$0x3]
  %v451 = vperm.slane %v449, 0
  %v452 = vperm.slane %v449, 1
  %v456 = vunpack.c.l.b16 %v448
  %v457 = vunpack.c.h.b16 %v448
  %v458 = vpack.c.b16 %v456, %v456
  %v459 = vpack.c.b16 %v457, %v457
  %v461 = vsel %vm215, %v447, 0
  %v464 = vsel %vm219, %v458, 0
  %v467 = vsel %vm219, %v459, 0
  %469 = vmatpush.bf16.msra.mxu0 0
  %470 = vmatpush.bf16.msra.mxu0 0
  %471 = vmatpush.bf16.msra.mxu0 0
  %472 = vmatpush.bf16.msra.mxu0 0
  %473 = vmatpush.bf16.msra.mxu0 0
  %474 = vmatpush.bf16.msra.mxu0 0
  %475 = vmatpush.bf16.msra.mxu0 0
  %476 = vmatpush.bf16.msra.mxu0 %v464
  %477 = vmatmul.bf16.gmra.mxu0 %v461
  %v478 = vpop.f32.mrf.mxu0
  %v479 = vadd.f32 %v451, %v478
  %v480 = vpop.f32.mrf.mxu0
  %481 = vdwg.mxu0
  %482 = vmatpush.bf16.msra.mxu0 0
  %483 = vmatpush.bf16.msra.mxu0 0
  %484 = vmatpush.bf16.msra.mxu0 0
  %485 = vmatpush.bf16.msra.mxu0 0
  %486 = vmatpush.bf16.msra.mxu0 0
  %487 = vmatpush.bf16.msra.mxu0 0
  %488 = vmatpush.bf16.msra.mxu0 0
  %489 = vmatpush.bf16.msra.mxu0 %v467
  %490 = vmatmul.bf16.gmra.mxu0 %v461
  %v491 = vpop.f32.mrf.mxu0
  %v492 = vadd.f32 %v452, %v491
  %v493 = vpop.f32.mrf.mxu0
  %494 = vdwg.mxu0
  %v495 = vmax.f32 %v479, 0.0
  %v496 = vmax.f32 %v492, 0.0
  %s497 = scalar_lea.vmem %s6, 4
  %498 = vst.msk [vmem:[%s497] sm:$0xf] %vm254, %v433
  %500 = vrot.lane.b32.xlu0 %v433, 120
  %v501 = vpop.permute.xlu0 %500
  %s503 = scalar_lea.vmem %s7, 4
  %504 = vst.msk [vmem:[%s503] sm:$0xf] %vm254, %v501
  %v505 = vpack.c.bf16 %v496, %v495
  %v507 = vrot.slane %v505, 2
  %v510 = vsel %vm264, %v505, %v507
  %s512 = scalar_lea.vmem %s8, 4
  %513 = vst [vmem:[%s512] sm:$0xf] %v510
  // Predicated region
  $region26: #{vae_forward.10} parent=0 // pred_check
    _
  $region27: #{vae_forward.10} parent=0 // pred_check_branch
    %515 = sbr.rel (0) target = $region29
  $region28: #{vae_forward.10} parent=0 // pred_region
    _
  $region29: #{vae_forward.10} parent=0 // pred_fallthru
    _
  // Predicated region
  $region30: #{vae_forward.10} parent=0 // pred_check
    _
  $region31: #{vae_forward.10} parent=0 // pred_check_branch
    %517 = sbr.rel (0) target = $region33
  $region32: #{vae_forward.10} parent=0 // pred_region
    _
  $region33: #{vae_forward.10} parent=0 // pred_fallthru
    _
  // Predicated region
  $region34: #{vae_forward.10} parent=0 // pred_check
    _
  $region35: #{vae_forward.10} parent=0 // pred_check_branch
    %519 = sbr.rel (0) target = $region37
  $region36: #{vae_forward.10} parent=0 // pred_region
    _
  $region37: #{vae_forward.10} parent=0 // pred_fallthru
    _
  // Predicated region
  $region38: #{vae_forward.10} parent=0 // pred_check
    _
  $region39: #{vae_forward.10} parent=0 // pred_check_branch
    %521 = sbr.rel (0) target = $region41
  $region40: #{vae_forward.10} parent=0 // pred_region
    _
  $region41: #{vae_forward.10} parent=0 // pred_fallthru
    _
  // Predicated region
  $region42: #{vae_forward.10} parent=0 // pred_check
    _
  $region43: #{vae_forward.10} parent=0 // pred_check_branch
    %523 = sbr.rel (0) target = $region45
  $region44: #{vae_forward.10} parent=0 // pred_region
    _
  $region45: #{vae_forward.10} parent=0 // pred_fallthru
    _
  // Predicated region
  $region46: #{vae_forward.10} parent=0 // pred_check
    _
  $region47: #{vae_forward.10} parent=0 // pred_check_branch
    %525 = sbr.rel (0) target = $region49
  $region48: #{vae_forward.10} parent=0 // pred_region
    _
  $region49: #{vae_forward.10} parent=0 // pred_fallthru
    _

// kernel: vae_forward.8
$region0: #{vae_forward.8}
  #allocation0 [shape = 'u32[]', space=smem, size = 0x4, offset = 0x4, fixed_abs, tag = 'smem constant byte address 0x4 - core index']
  #allocation1 [shape = 'u32[72,128]{1,0:T(1,128)}', space=vmem, size = 0x9000, scoped, tag = 'internal scratch']
  %s0 = inlined_call_operand.vmem [shape: bf16[2,5,128], index: 0, kind: input, shape index: {}]
  %s1 = inlined_call_operand.hbm [shape: bf16[2,128,128], index: 1, kind: input, shape index: {}]
  %s2 = inlined_call_operand.vmem [shape: f32[1,128], index: 2, kind: input, shape index: {}]
  %s3 = inlined_call_operand.vmem [shape: bf16[2,4,128], index: 3, kind: output, shape index: {}]
  %s4 = sld [smem:[#allocation0]]
  $region26: #{vae_forward.8} parent=0
    _
  %s6 = ssub.s32 1, %s4
  %s7 = scalar_select 0, %s6, %s4
  $region1: #{vae_forward.8} parent=0
    #allocation2 [shape = 'u8[65536]{0}', space=vmem, size = 0x10000, scoped, tag = 'input window, operand 1, single buffered']
    #allocation3 [shape = 's32[1]{0}', space=sflag, size = 0x4, scoped, tag = 'scoped memory for vae_forward.8']
    %8 = vsyncpa [#allocation3], 0
    // Predicated region
    $region2: #{vae_forward.8} parent=1 // pred_check
      _
    $region3: #{vae_forward.8} parent=1 // pred_check_branch
      %10 = sbr.rel (0) target = $region5
    $region4: #{vae_forward.8} parent=1 // pred_region
      _
    $region5: #{vae_forward.8} parent=1 // pred_fallthru
      _
    // Predicated region
    $region6: #{vae_forward.8} parent=1 // pred_check
      _
    $region7: #{vae_forward.8} parent=1 // pred_check_branch
      %12 = sbr.rel (0) target = $region9
    $region8: #{vae_forward.8} parent=1 // pred_region
      %14 = vsyncadd [#allocation3], 0
      %s15 = sshll.u32 %s1, 4
      %s16 = int_to_ptr.hbm [resolvable:$true] %s15
      %s17 = sshll.u32 [#allocation2], 4
      %s18 = int_to_ptr.vmem [resolvable:$true] %s17
      %23 = dma.hbm_to_vmem [thread:$0]  %s16, 2048, %s18, [#allocation3], 64, 64, 4
    $region9: #{vae_forward.8} parent=1 // pred_fallthru
      _
    // Predicated region
    $region10: #{vae_forward.8} parent=1 // pred_check
      _
    $region11: #{vae_forward.8} parent=1 // pred_check_branch
      %25 = sbr.rel (0) target = $region13
    $region12: #{vae_forward.8} parent=1 // pred_region
      _
    $region13: #{vae_forward.8} parent=1 // pred_fallthru
      _
    // Predicated region
    $region14: #{vae_forward.8} parent=1 // pred_check
      _
    $region15: #{vae_forward.8} parent=1 // pred_check_branch
      %27 = sbr.rel (0) target = $region17
    $region16: #{vae_forward.8} parent=1 // pred_region
      %29 = dma.done [#allocation3], 2048
    $region17: #{vae_forward.8} parent=1 // pred_fallthru
      _
    %v30 = vld [vmem:[%s0] sm:$0x3]
    %v31 = vld [vmem:[#allocation2] sm:$0xf]
    %v32 = vld [vmem:[#allocation2 + $0x4] sm:$0xf]
    %v33 = vld [vmem:[#allocation2 + $0x8] sm:$0xf]
    %v34 = vld [vmem:[#allocation2 + $0xc] sm:$0xf]
    %v35 = vld [vmem:[#allocation2 + $0x10] sm:$0xf]
    %v36 = vld [vmem:[#allocation2 + $0x14] sm:$0xf]
    %v37 = vld [vmem:[#allocation2 + $0x18] sm:$0xf]
    %v38 = vld [vmem:[#allocation2 + $0x1c] sm:$0xf]
    %v39 = vld [vmem:[#allocation2 + $0x20] sm:$0xf]
    %v40 = vld [vmem:[#allocation2 + $0x24] sm:$0xf]
    %v41 = vld [vmem:[#allocation2 + $0x28] sm:$0xf]
    %v42 = vld [vmem:[#allocation2 + $0x2c] sm:$0xf]
    %v43 = vld [vmem:[#allocation2 + $0x30] sm:$0xf]
    %v44 = vld [vmem:[#allocation2 + $0x34] sm:$0xf]
    %v45 = vld [vmem:[#allocation2 + $0x38] sm:$0xf]
    %v46 = vld [vmem:[#allocation2 + $0x3c] sm:$0xf]
    %v47 = vld [vmem:[%s0] sm:$0x7]
    %s48 = scalar_lea.vmem [#allocation2], 64
    %v49 = vld [vmem:[%s48] sm:$0xf]
    %v50 = vld [vmem:[%s48 + $0x4] sm:$0xf]
    %v51 = vld [vmem:[%s48 + $0x8] sm:$0xf]
    %v52 = vld [vmem:[%s48 + $0xc] sm:$0xf]
    %v53 = vld [vmem:[%s48 + $0x10] sm:$0xf]
    %v54 = vld [vmem:[%s48 + $0x14] sm:$0xf]
    %v55 = vld [vmem:[%s48 + $0x18] sm:$0xf]
    %v56 = vld [vmem:[%s48 + $0x1c] sm:$0xf]
    %v57 = vld [vmem:[%s48 + $0x20] sm:$0xf]
    %v58 = vld [vmem:[%s48 + $0x24] sm:$0xf]
    %v59 = vld [vmem:[%s48 + $0x28] sm:$0xf]
    %v60 = vld [vmem:[%s48 + $0x2c] sm:$0xf]
    %v61 = vld [vmem:[%s48 + $0x30] sm:$0xf]
    %v62 = vld [vmem:[%s48 + $0x34] sm:$0xf]
    %v63 = vld [vmem:[%s48 + $0x38] sm:$0xf]
    %v64 = vld [vmem:[%s48 + $0x3c] sm:$0xf]
    %v66 = vunpack.c.l.b16 %v47
    %v67 = vpack.c.b16 %v66, %v66
    %v69 = vshrl.u32 %v67, 16
    %v71 = vshll.u32 %v67, 16
    %v73 = vrot.slane %v71, 1
    %v74 = vor.u32 %v69, %v73
    %v92 = vunpack.c.l.b16 %v49
    %v93 = vunpack.c.l.b16 %v50
    %v94 = vunpack.c.l.b16 %v51
    %v95 = vunpack.c.l.b16 %v52
    %v96 = vunpack.c.l.b16 %v53
    %v97 = vunpack.c.l.b16 %v54
    %v98 = vunpack.c.l.b16 %v55
    %v99 = vunpack.c.l.b16 %v56
    %v100 = vunpack.c.l.b16 %v57
    %v101 = vunpack.c.l.b16 %v58
    %v102 = vunpack.c.l.b16 %v59
    %v103 = vunpack.c.l.b16 %v60
    %v104 = vunpack.c.l.b16 %v61
    %v105 = vunpack.c.l.b16 %v62
    %v106 = vunpack.c.l.b16 %v63
    %v107 = vunpack.c.l.b16 %v64
    %v108 = vpack.c.b16 %v93, %v92
    %v109 = vpack.c.b16 %v95, %v94
    %v110 = vpack.c.b16 %v97, %v96
    %v111 = vpack.c.b16 %v99, %v98
    %v112 = vpack.c.b16 %v101, %v100
    %v113 = vpack.c.b16 %v103, %v102
    %v114 = vpack.c.b16 %v105, %v104
    %v115 = vpack.c.b16 %v107, %v106
    %124 = vmatpush.bf16.msra.mxu0 %v115
    %125 = vmatpush.bf16.msra.mxu0 %v114
    %126 = vmatpush.bf16.msra.mxu0 %v113
    %127 = vmatpush.bf16.msra.mxu0 %v112
    %128 = vmatpush.bf16.msra.mxu0 %v111
    %129 = vmatpush.bf16.msra.mxu0 %v110
    %130 = vmatpush.bf16.msra.mxu0 %v109
    %131 = vmatpush.bf16.msra.mxu0 %v108
    %132 = vmatmul.bf16.gmra.mxu0 %v74
    %v133 = vpop.f32.mrf.mxu0
    %v134 = vadd.f32 0.0, %v133
    %v135 = vpop.f32.mrf.mxu0
    %136 = vdwg.mxu0
    %v153 = vunpack.c.l.b16 %v31
    %v154 = vunpack.c.l.b16 %v32
    %v155 = vunpack.c.l.b16 %v33
    %v156 = vunpack.c.l.b16 %v34
    %v157 = vunpack.c.l.b16 %v35
    %v158 = vunpack.c.l.b16 %v36
    %v159 = vunpack.c.l.b16 %v37
    %v160 = vunpack.c.l.b16 %v38
    %v161 = vunpack.c.l.b16 %v39
    %v162 = vunpack.c.l.b16 %v40
    %v163 = vunpack.c.l.b16 %v41
    %v164 = vunpack.c.l.b16 %v42
    %v165 = vunpack.c.l.b16 %v43
    %v166 = vunpack.c.l.b16 %v44
    %v167 = vunpack.c.l.b16 %v45
    %v168 = vunpack.c.l.b16 %v46
    %v169 = vpack.c.b16 %v154, %v153
    %v170 = vpack.c.b16 %v156, %v155
    %v171 = vpack.c.b16 %v158, %v157
    %v172 = vpack.c.b16 %v160, %v159
    %v173 = vpack.c.b16 %v162, %v161
    %v174 = vpack.c.b16 %v164, %v163
    %v175 = vpack.c.b16 %v166, %v165
    %v176 = vpack.c.b16 %v168, %v167
    %185 = vmatpush.bf16.msra.mxu0 %v176
    %186 = vmatpush.bf16.msra.mxu0 %v175
    %187 = vmatpush.bf16.msra.mxu0 %v174
    %188 = vmatpush.bf16.msra.mxu0 %v173
    %189 = vmatpush.bf16.msra.mxu0 %v172
    %190 = vmatpush.bf16.msra.mxu0 %v171
    %191 = vmatpush.bf16.msra.mxu0 %v170
    %192 = vmatpush.bf16.msra.mxu0 %v169
    %193 = vmatmul.bf16.gmra.mxu0 %v30
    %v194 = vpop.f32.mrf.mxu0
    %v195 = vadd.f32 %v134, %v194
    %v196 = vpop.f32.mrf.mxu0
    %197 = vdwg.mxu0
    %v198 = vld [vmem:[%s2] sm:$0x1]
    %v200 = vperm.slane %v198, 0
    %v202 = vadd.f32 %v195, %v200
    %v203 = vmax.f32 %v202, 0.0
    %v204 = vpack.c.bf16 %v203, %v203
    %205 = vst [vmem:[%s3] sm:$0x3] %v204
    %s206 = scalar_lea.vmem %s0, 4
    %v207 = vld [vmem:[%s206] sm:$0x3]
    %v208 = vld [vmem:[#allocation2] sm:$0xf]
    %v209 = vld [vmem:[#allocation2 + $0x4] sm:$0xf]
    %v210 = vld [vmem:[#allocation2 + $0x8] sm:$0xf]
    %v211 = vld [vmem:[#allocation2 + $0xc] sm:$0xf]
    %v212 = vld [vmem:[#allocation2 + $0x10] sm:$0xf]
    %v213 = vld [vmem:[#allocation2 + $0x14] sm:$0xf]
    %v214 = vld [vmem:[#allocation2 + $0x18] sm:$0xf]
    %v215 = vld [vmem:[#allocation2 + $0x1c] sm:$0xf]
    %v216 = vld [vmem:[#allocation2 + $0x20] sm:$0xf]
    %v217 = vld [vmem:[#allocation2 + $0x24] sm:$0xf]
    %v218 = vld [vmem:[#allocation2 + $0x28] sm:$0xf]
    %v219 = vld [vmem:[#allocation2 + $0x2c] sm:$0xf]
    %v220 = vld [vmem:[#allocation2 + $0x30] sm:$0xf]
    %v221 = vld [vmem:[#allocation2 + $0x34] sm:$0xf]
    %v222 = vld [vmem:[#allocation2 + $0x38] sm:$0xf]
    %v223 = vld [vmem:[#allocation2 + $0x3c] sm:$0xf]
    %v224 = vld [vmem:[%s206] sm:$0x7]
    %v225 = vld [vmem:[%s48] sm:$0xf]
    %v226 = vld [vmem:[%s48 + $0x4] sm:$0xf]
    %v227 = vld [vmem:[%s48 + $0x8] sm:$0xf]
    %v228 = vld [vmem:[%s48 + $0xc] sm:$0xf]
    %v229 = vld [vmem:[%s48 + $0x10] sm:$0xf]
    %v230 = vld [vmem:[%s48 + $0x14] sm:$0xf]
    %v231 = vld [vmem:[%s48 + $0x18] sm:$0xf]
    %v232 = vld [vmem:[%s48 + $0x1c] sm:$0xf]
    %v233 = vld [vmem:[%s48 + $0x20] sm:$0xf]
    %v234 = vld [vmem:[%s48 + $0x24] sm:$0xf]
    %v235 = vld [vmem:[%s48 + $0x28] sm:$0xf]
    %v236 = vld [vmem:[%s48 + $0x2c] sm:$0xf]
    %v237 = vld [vmem:[%s48 + $0x30] sm:$0xf]
    %v238 = vld [vmem:[%s48 + $0x34] sm:$0xf]
    %v239 = vld [vmem:[%s48 + $0x38] sm:$0xf]
    %v240 = vld [vmem:[%s48 + $0x3c] sm:$0xf]
    %v242 = vunpack.c.l.b16 %v224
    %v243 = vpack.c.b16 %v242, %v242
    %v245 = vshrl.u32 %v243, 16
    %v247 = vshll.u32 %v243, 16
    %v249 = vrot.slane %v247, 1
    %v250 = vor.u32 %v245, %v249
    %v268 = vunpack.c.l.b16 %v225
    %v269 = vunpack.c.l.b16 %v226
    %v270 = vunpack.c.l.b16 %v227
    %v271 = vunpack.c.l.b16 %v228
    %v272 = vunpack.c.l.b16 %v229
    %v273 = vunpack.c.l.b16 %v230
    %v274 = vunpack.c.l.b16 %v231
    %v275 = vunpack.c.l.b16 %v232
    %v276 = vunpack.c.l.b16 %v233
    %v277 = vunpack.c.l.b16 %v234
    %v278 = vunpack.c.l.b16 %v235
    %v279 = vunpack.c.l.b16 %v236
    %v280 = vunpack.c.l.b16 %v237
    %v281 = vunpack.c.l.b16 %v238
    %v282 = vunpack.c.l.b16 %v239
    %v283 = vunpack.c.l.b16 %v240
    %v284 = vpack.c.b16 %v269, %v268
    %v285 = vpack.c.b16 %v271, %v270
    %v286 = vpack.c.b16 %v273, %v272
    %v287 = vpack.c.b16 %v275, %v274
    %v288 = vpack.c.b16 %v277, %v276
    %v289 = vpack.c.b16 %v279, %v278
    %v290 = vpack.c.b16 %v281, %v280
    %v291 = vpack.c.b16 %v283, %v282
    %300 = vmatpush.bf16.msra.mxu0 %v291
    %301 = vmatpush.bf16.msra.mxu0 %v290
    %302 = vmatpush.bf16.msra.mxu0 %v289
    %303 = vmatpush.bf16.msra.mxu0 %v288
    %304 = vmatpush.bf16.msra.mxu0 %v287
    %305 = vmatpush.bf16.msra.mxu0 %v286
    %306 = vmatpush.bf16.msra.mxu0 %v285
    %307 = vmatpush.bf16.msra.mxu0 %v284
    %308 = vmatmul.bf16.gmra.mxu0 %v250
    %v309 = vpop.f32.mrf.mxu0
    %v310 = vadd.f32 0.0, %v309
    %v311 = vpop.f32.mrf.mxu0
    %312 = vdwg.mxu0
    %v329 = vunpack.c.l.b16 %v208
    %v330 = vunpack.c.l.b16 %v209
    %v331 = vunpack.c.l.b16 %v210
    %v332 = vunpack.c.l.b16 %v211
    %v333 = vunpack.c.l.b16 %v212
    %v334 = vunpack.c.l.b16 %v213
    %v335 = vunpack.c.l.b16 %v214
    %v336 = vunpack.c.l.b16 %v215
    %v337 = vunpack.c.l.b16 %v216
    %v338 = vunpack.c.l.b16 %v217
    %v339 = vunpack.c.l.b16 %v218
    %v340 = vunpack.c.l.b16 %v219
    %v341 = vunpack.c.l.b16 %v220
    %v342 = vunpack.c.l.b16 %v221
    %v343 = vunpack.c.l.b16 %v222
    %v344 = vunpack.c.l.b16 %v223
    %v345 = vpack.c.b16 %v330, %v329
    %v346 = vpack.c.b16 %v332, %v331
    %v347 = vpack.c.b16 %v334, %v333
    %v348 = vpack.c.b16 %v336, %v335
    %v349 = vpack.c.b16 %v338, %v337
    %v350 = vpack.c.b16 %v340, %v339
    %v351 = vpack.c.b16 %v342, %v341
    %v352 = vpack.c.b16 %v344, %v343
    %361 = vmatpush.bf16.msra.mxu0 %v352
    %362 = vmatpush.bf16.msra.mxu0 %v351
    %363 = vmatpush.bf16.msra.mxu0 %v350
    %364 = vmatpush.bf16.msra.mxu0 %v349
    %365 = vmatpush.bf16.msra.mxu0 %v348
    %366 = vmatpush.bf16.msra.mxu0 %v347
    %367 = vmatpush.bf16.msra.mxu0 %v346
    %368 = vmatpush.bf16.msra.mxu0 %v345
    %369 = vmatmul.bf16.gmra.mxu0 %v207
    %v370 = vpop.f32.mrf.mxu0
    %v371 = vadd.f32 %v310, %v370
    %v372 = vpop.f32.mrf.mxu0
    %373 = vdwg.mxu0
    %v374 = vld [vmem:[%s2] sm:$0x1]
    %v376 = vperm.slane %v374, 0
    %v378 = vadd.f32 %v371, %v376
    %v379 = vmax.f32 %v378, 0.0
    %v380 = vpack.c.bf16 %v379, %v379
    %s381 = scalar_lea.vmem %s3, 2
    %382 = vst [vmem:[%s381] sm:$0x3] %v380
    // Predicated region
    $region18: #{vae_forward.8} parent=1 // pred_check
      _
    $region19: #{vae_forward.8} parent=1 // pred_check_branch
      %384 = sbr.rel (0) target = $region21
    $region20: #{vae_forward.8} parent=1 // pred_region
      _
    $region21: #{vae_forward.8} parent=1 // pred_fallthru
      _
    // Predicated region
    $region22: #{vae_forward.8} parent=1 // pred_check
      _
    $region23: #{vae_forward.8} parent=1 // pred_check_branch
      %386 = sbr.rel (0) target = $region25
    $region24: #{vae_forward.8} parent=1 // pred_region
      _
    $region25: #{vae_forward.8} parent=1 // pred_fallthru
      _
    %387 = vsyncpa [#allocation3], 1

// kernel: vae_forward.9
$region0: #{vae_forward.9}
  #allocation0 [shape = 'u32[]', space=smem, size = 0x4, offset = 0x4, fixed_abs, tag = 'smem constant byte address 0x4 - core index']
  #allocation1 [shape = 'u32[72,128]{1,0:T(1,128)}', space=vmem, size = 0x9000, scoped, tag = 'internal scratch']
  %s0 = inlined_call_operand.vmem [shape: bf16[2,6,128], index: 0, kind: input, shape index: {}]
  %s1 = inlined_call_operand.vmem [shape: bf16[3,128,256], index: 1, kind: input, shape index: {}]
  %s2 = inlined_call_operand.vmem [shape: f32[1,256], index: 2, kind: input, shape index: {}]
  %s3 = inlined_call_operand.vmem [shape: bf16[2,4,256], index: 3, kind: output, shape index: {}]
  %s4 = sld [smem:[#allocation0]]
  $region22: #{vae_forward.9} parent=0
    _
  %s6 = ssub.s32 1, %s4
  %s7 = scalar_select 0, %s6, %s4
  // Predicated region
  $region2: #{vae_forward.9} parent=0 // pred_check
    _
  $region3: #{vae_forward.9} parent=0 // pred_check_branch
    %9 = sbr.rel (0) target = $region5
  $region4: #{vae_forward.9} parent=0 // pred_region
    _
  $region5: #{vae_forward.9} parent=0 // pred_fallthru
    _
  // Predicated region
  $region6: #{vae_forward.9} parent=0 // pred_check
    _
  $region7: #{vae_forward.9} parent=0 // pred_check_branch
    %11 = sbr.rel (0) target = $region9
  $region8: #{vae_forward.9} parent=0 // pred_region
    _
  $region9: #{vae_forward.9} parent=0 // pred_fallthru
    _
  // Predicated region
  $region10: #{vae_forward.9} parent=0 // pred_check
    _
  $region11: #{vae_forward.9} parent=0 // pred_check_branch
    %13 = sbr.rel (0) target = $region13
  $region12: #{vae_forward.9} parent=0 // pred_region
    _
  $region13: #{vae_forward.9} parent=0 // pred_fallthru
    _
  %v14 = vld [vmem:[%s0] sm:$0x3]
  %v15 = vld [vmem:[%s1] sm:$0xff]
  %v16 = vld [vmem:[%s1 + $0x8] sm:$0xff]
  %v17 = vld [vmem:[%s1 + $0x10] sm:$0xff]
  %v18 = vld [vmem:[%s1 + $0x18] sm:$0xff]
  %v19 = vld [vmem:[%s1 + $0x20] sm:$0xff]
  %v20 = vld [vmem:[%s1 + $0x28] sm:$0xff]
  %v21 = vld [vmem:[%s1 + $0x30] sm:$0xff]
  %v22 = vld [vmem:[%s1 + $0x38] sm:$0xff]
  %v23 = vld [vmem:[%s1 + $0x40] sm:$0xff]
  %v24 = vld [vmem:[%s1 + $0x48] sm:$0xff]
  %v25 = vld [vmem:[%s1 + $0x50] sm:$0xff]
  %v26 = vld [vmem:[%s1 + $0x58] sm:$0xff]
  %v27 = vld [vmem:[%s1 + $0x60] sm:$0xff]
  %v28 = vld [vmem:[%s1 + $0x68] sm:$0xff]
  %v29 = vld [vmem:[%s1 + $0x70] sm:$0xff]
  %v30 = vld [vmem:[%s1 + $0x78] sm:$0xff]
  %v31 = vld [vmem:[%s0] sm:$0x7]
  %s32 = scalar_lea.vmem %s1, 128
  %v33 = vld [vmem:[%s32] sm:$0xff]
  %v34 = vld [vmem:[%s32 + $0x8] sm:$0xff]
  %v35 = vld [vmem:[%s32 + $0x10] sm:$0xff]
  %v36 = vld [vmem:[%s32 + $0x18] sm:$0xff]
  %v37 = vld [vmem:[%s32 + $0x20] sm:$0xff]
  %v38 = vld [vmem:[%s32 + $0x28] sm:$0xff]
  %v39 = vld [vmem:[%s32 + $0x30] sm:$0xff]
  %v40 = vld [vmem:[%s32 + $0x38] sm:$0xff]
  %v41 = vld [vmem:[%s32 + $0x40] sm:$0xff]
  %v42 = vld [vmem:[%s32 + $0x48] sm:$0xff]
  %v43 = vld [vmem:[%s32 + $0x50] sm:$0xff]
  %v44 = vld [vmem:[%s32 + $0x58] sm:$0xff]
  %v45 = vld [vmem:[%s32 + $0x60] sm:$0xff]
  %v46 = vld [vmem:[%s32 + $0x68] sm:$0xff]
  %v47 = vld [vmem:[%s32 + $0x70] sm:$0xff]
  %v48 = vld [vmem:[%s32 + $0x78] sm:$0xff]
  %v50 = vunpack.c.l.b16 %v31
  %v51 = vpack.c.b16 %v50, %v50
  %v53 = vshrl.u32 %v51, 16
  %v55 = vshll.u32 %v51, 16
  %v57 = vrot.slane %v55, 1
  %v58 = vor.u32 %v53, %v57
  %v76 = vunpack.c.l.b16 %v33
  %v77 = vunpack.c.h.b16 %v33
  %v78 = vunpack.c.l.b16 %v34
  %v79 = vunpack.c.h.b16 %v34
  %v80 = vunpack.c.l.b16 %v35
  %v81 = vunpack.c.h.b16 %v35
  %v82 = vunpack.c.l.b16 %v36
  %v83 = vunpack.c.h.b16 %v36
  %v84 = vunpack.c.l.b16 %v37
  %v85 = vunpack.c.h.b16 %v37
  %v86 = vunpack.c.l.b16 %v38
  %v87 = vunpack.c.h.b16 %v38
  %v88 = vunpack.c.l.b16 %v39
  %v89 = vunpack.c.h.b16 %v39
  %v90 = vunpack.c.l.b16 %v40
  %v91 = vunpack.c.h.b16 %v40
  %v92 = vunpack.c.l.b16 %v41
  %v93 = vunpack.c.h.b16 %v41
  %v94 = vunpack.c.l.b16 %v42
  %v95 = vunpack.c.h.b16 %v42
  %v96 = vunpack.c.l.b16 %v43
  %v97 = vunpack.c.h.b16 %v43
  %v98 = vunpack.c.l.b16 %v44
  %v99 = vunpack.c.h.b16 %v44
  %v100 = vunpack.c.l.b16 %v45
  %v101 = vunpack.c.h.b16 %v45
  %v102 = vunpack.c.l.b16 %v46
  %v103 = vunpack.c.h.b16 %v46
  %v104 = vunpack.c.l.b16 %v47
  %v105 = vunpack.c.h.b16 %v47
  %v106 = vunpack.c.l.b16 %v48
  %v107 = vunpack.c.h.b16 %v48
  %v108 = vpack.c.b16 %v78, %v76
  %v109 = vpack.c.b16 %v79, %v77
  %v110 = vpack.c.b16 %v82, %v80
  %v111 = vpack.c.b16 %v83, %v81
  %v112 = vpack.c.b16 %v86, %v84
  %v113 = vpack.c.b16 %v87, %v85
  %v114 = vpack.c.b16 %v90, %v88
  %v115 = vpack.c.b16 %v91, %v89
  %v116 = vpack.c.b16 %v94, %v92
  %v117 = vpack.c.b16 %v95, %v93
  %v118 = vpack.c.b16 %v98, %v96
  %v119 = vpack.c.b16 %v99, %v97
  %v120 = vpack.c.b16 %v102, %v100
  %v121 = vpack.c.b16 %v103, %v101
  %v122 = vpack.c.b16 %v106, %v104
  %v123 = vpack.c.b16 %v107, %v105
  %140 = vmatpush.bf16.msra.mxu0 %v122
  %141 = vmatpush.bf16.msra.mxu0 %v120
  %142 = vmatpush.bf16.msra.mxu0 %v118
  %143 = vmatpush.bf16.msra.mxu0 %v116
  %144 = vmatpush.bf16.msra.mxu0 %v114
  %145 = vmatpush.bf16.msra.mxu0 %v112
  %146 = vmatpush.bf16.msra.mxu0 %v110
  %147 = vmatpush.bf16.msra.mxu0 %v108
  %148 = vmatmul.bf16.gmra.mxu0 %v58
  %v149 = vpop.f32.mrf.mxu0
  %v150 = vadd.f32 0.0, %v149
  %v151 = vpop.f32.mrf.mxu0
  %152 = vdwg.mxu0
  %153 = vmatpush.bf16.msra.mxu0 %v123
  %154 = vmatpush.bf16.msra.mxu0 %v121
  %155 = vmatpush.bf16.msra.mxu0 %v119
  %156 = vmatpush.bf16.msra.mxu0 %v117
  %157 = vmatpush.bf16.msra.mxu0 %v115
  %158 = vmatpush.bf16.msra.mxu0 %v113
  %159 = vmatpush.bf16.msra.mxu0 %v111
  %160 = vmatpush.bf16.msra.mxu0 %v109
  %161 = vmatmul.bf16.gmra.mxu0 %v58
  %v162 = vpop.f32.mrf.mxu0
  %v163 = vadd.f32 0.0, %v162
  %v164 = vpop.f32.mrf.mxu0
  %165 = vdwg.mxu0
  %v182 = vunpack.c.l.b16 %v15
  %v183 = vunpack.c.h.b16 %v15
  %v184 = vunpack.c.l.b16 %v16
  %v185 = vunpack.c.h.b16 %v16
  %v186 = vunpack.c.l.b16 %v17
  %v187 = vunpack.c.h.b16 %v17
  %v188 = vunpack.c.l.b16 %v18
  %v189 = vunpack.c.h.b16 %v18
  %v190 = vunpack.c.l.b16 %v19
  %v191 = vunpack.c.h.b16 %v19
  %v192 = vunpack.c.l.b16 %v20
  %v193 = vunpack.c.h.b16 %v20
  %v194 = vunpack.c.l.b16 %v21
  %v195 = vunpack.c.h.b16 %v21
  %v196 = vunpack.c.l.b16 %v22
  %v197 = vunpack.c.h.b16 %v22
  %v198 = vunpack.c.l.b16 %v23
  %v199 = vunpack.c.h.b16 %v23
  %v200 = vunpack.c.l.b16 %v24
  %v201 = vunpack.c.h.b16 %v24
  %v202 = vunpack.c.l.b16 %v25
  %v203 = vunpack.c.h.b16 %v25
  %v204 = vunpack.c.l.b16 %v26
  %v205 = vunpack.c.h.b16 %v26
  %v206 = vunpack.c.l.b16 %v27
  %v207 = vunpack.c.h.b16 %v27
  %v208 = vunpack.c.l.b16 %v28
  %v209 = vunpack.c.h.b16 %v28
  %v210 = vunpack.c.l.b16 %v29
  %v211 = vunpack.c.h.b16 %v29
  %v212 = vunpack.c.l.b16 %v30
  %v213 = vunpack.c.h.b16 %v30
  %v214 = vpack.c.b16 %v184, %v182
  %v215 = vpack.c.b16 %v185, %v183
  %v216 = vpack.c.b16 %v188, %v186
  %v217 = vpack.c.b16 %v189, %v187
  %v218 = vpack.c.b16 %v192, %v190
  %v219 = vpack.c.b16 %v193, %v191
  %v220 = vpack.c.b16 %v196, %v194
  %v221 = vpack.c.b16 %v197, %v195
  %v222 = vpack.c.b16 %v200, %v198
  %v223 = vpack.c.b16 %v201, %v199
  %v224 = vpack.c.b16 %v204, %v202
  %v225 = vpack.c.b16 %v205, %v203
  %v226 = vpack.c.b16 %v208, %v206
  %v227 = vpack.c.b16 %v209, %v207
  %v228 = vpack.c.b16 %v212, %v210
  %v229 = vpack.c.b16 %v213, %v211
  %246 = vmatpush.bf16.msra.mxu0 %v228
  %247 = vmatpush.bf16.msra.mxu0 %v226
  %248 = vmatpush.bf16.msra.mxu0 %v224
  %249 = vmatpush.bf16.msra.mxu0 %v222
  %250 = vmatpush.bf16.msra.mxu0 %v220
  %251 = vmatpush.bf16.msra.mxu0 %v218
  %252 = vmatpush.bf16.msra.mxu0 %v216
  %253 = vmatpush.bf16.msra.mxu0 %v214
  %254 = vmatmul.bf16.gmra.mxu0 %v14
  %v255 = vpop.f32.mrf.mxu0
  %v256 = vadd.f32 %v150, %v255
  %v257 = vpop.f32.mrf.mxu0
  %258 = vdwg.mxu0
  %259 = vmatpush.bf16.msra.mxu0 %v229
  %260 = vmatpush.bf16.msra.mxu0 %v227
  %261 = vmatpush.bf16.msra.mxu0 %v225
  %262 = vmatpush.bf16.msra.mxu0 %v223
  %263 = vmatpush.bf16.msra.mxu0 %v221
  %264 = vmatpush.bf16.msra.mxu0 %v219
  %265 = vmatpush.bf16.msra.mxu0 %v217
  %266 = vmatpush.bf16.msra.mxu0 %v215
  %267 = vmatmul.bf16.gmra.mxu0 %v14
  %v268 = vpop.f32.mrf.mxu0
  %v269 = vadd.f32 %v163, %v268
  %v270 = vpop.f32.mrf.mxu0
  %271 = vdwg.mxu0
  %v272 = vld [vmem:[%s0] sm:$0x6]
  %s273 = scalar_lea.vmem %s1, 256
  %v274 = vld [vmem:[%s273] sm:$0xff]
  %v275 = vld [vmem:[%s273 + $0x8] sm:$0xff]
  %v276 = vld [vmem:[%s273 + $0x10] sm:$0xff]
  %v277 = vld [vmem:[%s273 + $0x18] sm:$0xff]
  %v278 = vld [vmem:[%s273 + $0x20] sm:$0xff]
  %v279 = vld [vmem:[%s273 + $0x28] sm:$0xff]
  %v280 = vld [vmem:[%s273 + $0x30] sm:$0xff]
  %v281 = vld [vmem:[%s273 + $0x38] sm:$0xff]
  %v282 = vld [vmem:[%s273 + $0x40] sm:$0xff]
  %v283 = vld [vmem:[%s273 + $0x48] sm:$0xff]
  %v284 = vld [vmem:[%s273 + $0x50] sm:$0xff]
  %v285 = vld [vmem:[%s273 + $0x58] sm:$0xff]
  %v286 = vld [vmem:[%s273 + $0x60] sm:$0xff]
  %v287 = vld [vmem:[%s273 + $0x68] sm:$0xff]
  %v288 = vld [vmem:[%s273 + $0x70] sm:$0xff]
  %v289 = vld [vmem:[%s273 + $0x78] sm:$0xff]
  %v291 = vunpack.c.l.b16 %v272
  %v292 = vpack.c.b16 %v291, %v291
  %v293 = vrot.slane %v292, 1
  %v311 = vunpack.c.l.b16 %v274
  %v312 = vunpack.c.h.b16 %v274
  %v313 = vunpack.c.l.b16 %v275
  %v314 = vunpack.c.h.b16 %v275
  %v315 = vunpack.c.l.b16 %v276
  %v316 = vunpack.c.h.b16 %v276
  %v317 = vunpack.c.l.b16 %v277
  %v318 = vunpack.c.h.b16 %v277
  %v319 = vunpack.c.l.b16 %v278
  %v320 = vunpack.c.h.b16 %v278
  %v321 = vunpack.c.l.b16 %v279
  %v322 = vunpack.c.h.b16 %v279
  %v323 = vunpack.c.l.b16 %v280
  %v324 = vunpack.c.h.b16 %v280
  %v325 = vunpack.c.l.b16 %v281
  %v326 = vunpack.c.h.b16 %v281
  %v327 = vunpack.c.l.b16 %v282
  %v328 = vunpack.c.h.b16 %v282
  %v329 = vunpack.c.l.b16 %v283
  %v330 = vunpack.c.h.b16 %v283
  %v331 = vunpack.c.l.b16 %v284
  %v332 = vunpack.c.h.b16 %v284
  %v333 = vunpack.c.l.b16 %v285
  %v334 = vunpack.c.h.b16 %v285
  %v335 = vunpack.c.l.b16 %v286
  %v336 = vunpack.c.h.b16 %v286
  %v337 = vunpack.c.l.b16 %v287
  %v338 = vunpack.c.h.b16 %v287
  %v339 = vunpack.c.l.b16 %v288
  %v340 = vunpack.c.h.b16 %v288
  %v341 = vunpack.c.l.b16 %v289
  %v342 = vunpack.c.h.b16 %v289
  %v343 = vpack.c.b16 %v313, %v311
  %v344 = vpack.c.b16 %v314, %v312
  %v345 = vpack.c.b16 %v317, %v315
  %v346 = vpack.c.b16 %v318, %v316
  %v347 = vpack.c.b16 %v321, %v319
  %v348 = vpack.c.b16 %v322, %v320
  %v349 = vpack.c.b16 %v325, %v323
  %v350 = vpack.c.b16 %v326, %v324
  %v351 = vpack.c.b16 %v329, %v327
  %v352 = vpack.c.b16 %v330, %v328
  %v353 = vpack.c.b16 %v333, %v331
  %v354 = vpack.c.b16 %v334, %v332
  %v355 = vpack.c.b16 %v337, %v335
  %v356 = vpack.c.b16 %v338, %v336
  %v357 = vpack.c.b16 %v341, %v339
  %v358 = vpack.c.b16 %v342, %v340
  %375 = vmatpush.bf16.msra.mxu0 %v357
  %376 = vmatpush.bf16.msra.mxu0 %v355
  %377 = vmatpush.bf16.msra.mxu0 %v353
  %378 = vmatpush.bf16.msra.mxu0 %v351
  %379 = vmatpush.bf16.msra.mxu0 %v349
  %380 = vmatpush.bf16.msra.mxu0 %v347
  %381 = vmatpush.bf16.msra.mxu0 %v345
  %382 = vmatpush.bf16.msra.mxu0 %v343
  %383 = vmatmul.bf16.gmra.mxu0 %v293
  %v384 = vpop.f32.mrf.mxu0
  %v385 = vadd.f32 0.0, %v384
  %v386 = vpop.f32.mrf.mxu0
  %387 = vdwg.mxu0
  %388 = vmatpush.bf16.msra.mxu0 %v358
  %389 = vmatpush.bf16.msra.mxu0 %v356
  %390 = vmatpush.bf16.msra.mxu0 %v354
  %391 = vmatpush.bf16.msra.mxu0 %v352
  %392 = vmatpush.bf16.msra.mxu0 %v350
  %393 = vmatpush.bf16.msra.mxu0 %v348
  %394 = vmatpush.bf16.msra.mxu0 %v346
  %395 = vmatpush.bf16.msra.mxu0 %v344
  %396 = vmatmul.bf16.gmra.mxu0 %v293
  %v397 = vpop.f32.mrf.mxu0
  %v398 = vadd.f32 0.0, %v397
  %v399 = vpop.f32.mrf.mxu0
  %400 = vdwg.mxu0
  %v401 = vadd.f32 %v256, %v385
  %v402 = vadd.f32 %v269, %v398
  %v403 = vld [vmem:[%s2] sm:$0x3]
  %v405 = vperm.slane %v403, 0
  %v406 = vperm.slane %v403, 1
  %v409 = vadd.f32 %v401, %v405
  %v410 = vadd.f32 %v402, %v406
  %v411 = vmax.f32 %v409, 0.0
  %v412 = vmax.f32 %v410, 0.0
  %v413 = vpack.c.bf16 %v412, %v411
  %v415 = vrot.slane %v413, 2
  %vm416 = vcmask 1041408
  %v419 = vsel %vm416, %v413, %v415
  %421 = vst [vmem:[%s3] sm:$0xf] %v419
  %s422 = scalar_lea.vmem %s0, 4
  %v423 = vld [vmem:[%s422] sm:$0x3]
  %v424 = vld [vmem:[%s1] sm:$0xff]
  %v425 = vld [vmem:[%s1 + $0x8] sm:$0xff]
  %v426 = vld [vmem:[%s1 + $0x10] sm:$0xff]
  %v427 = vld [vmem:[%s1 + $0x18] sm:$0xff]
  %v428 = vld [vmem:[%s1 + $0x20] sm:$0xff]
  %v429 = vld [vmem:[%s1 + $0x28] sm:$0xff]
  %v430 = vld [vmem:[%s1 + $0x30] sm:$0xff]
  %v431 = vld [vmem:[%s1 + $0x38] sm:$0xff]
  %v432 = vld [vmem:[%s1 + $0x40] sm:$0xff]
  %v433 = vld [vmem:[%s1 + $0x48] sm:$0xff]
  %v434 = vld [vmem:[%s1 + $0x50] sm:$0xff]
  %v435 = vld [vmem:[%s1 + $0x58] sm:$0xff]
  %v436 = vld [vmem:[%s1 + $0x60] sm:$0xff]
  %v437 = vld [vmem:[%s1 + $0x68] sm:$0xff]
  %v438 = vld [vmem:[%s1 + $0x70] sm:$0xff]
  %v439 = vld [vmem:[%s1 + $0x78] sm:$0xff]
  %v440 = vld [vmem:[%s422] sm:$0x7]
  %v441 = vld [vmem:[%s32] sm:$0xff]
  %v442 = vld [vmem:[%s32 + $0x8] sm:$0xff]
  %v443 = vld [vmem:[%s32 + $0x10] sm:$0xff]
  %v444 = vld [vmem:[%s32 + $0x18] sm:$0xff]
  %v445 = vld [vmem:[%s32 + $0x20] sm:$0xff]
  %v446 = vld [vmem:[%s32 + $0x28] sm:$0xff]
  %v447 = vld [vmem:[%s32 + $0x30] sm:$0xff]
  %v448 = vld [vmem:[%s32 + $0x38] sm:$0xff]
  %v449 = vld [vmem:[%s32 + $0x40] sm:$0xff]
  %v450 = vld [vmem:[%s32 + $0x48] sm:$0xff]
  %v451 = vld [vmem:[%s32 + $0x50] sm:$0xff]
  %v452 = vld [vmem:[%s32 + $0x58] sm:$0xff]
  %v453 = vld [vmem:[%s32 + $0x60] sm:$0xff]
  %v454 = vld [vmem:[%s32 + $0x68] sm:$0xff]
  %v455 = vld [vmem:[%s32 + $0x70] sm:$0xff]
  %v456 = vld [vmem:[%s32 + $0x78] sm:$0xff]
  %v458 = vunpack.c.l.b16 %v440
  %v459 = vpack.c.b16 %v458, %v458
  %v461 = vshrl.u32 %v459, 16
  %v463 = vshll.u32 %v459, 16
  %v465 = vrot.slane %v463, 1
  %v466 = vor.u32 %v461, %v465
  %v484 = vunpack.c.l.b16 %v441
  %v485 = vunpack.c.h.b16 %v441
  %v486 = vunpack.c.l.b16 %v442
  %v487 = vunpack.c.h.b16 %v442
  %v488 = vunpack.c.l.b16 %v443
  %v489 = vunpack.c.h.b16 %v443
  %v490 = vunpack.c.l.b16 %v444
  %v491 = vunpack.c.h.b16 %v444
  %v492 = vunpack.c.l.b16 %v445
  %v493 = vunpack.c.h.b16 %v445
  %v494 = vunpack.c.l.b16 %v446
  %v495 = vunpack.c.h.b16 %v446
  %v496 = vunpack.c.l.b16 %v447
  %v497 = vunpack.c.h.b16 %v447
  %v498 = vunpack.c.l.b16 %v448
  %v499 = vunpack.c.h.b16 %v448
  %v500 = vunpack.c.l.b16 %v449
  %v501 = vunpack.c.h.b16 %v449
  %v502 = vunpack.c.l.b16 %v450
  %v503 = vunpack.c.h.b16 %v450
  %v504 = vunpack.c.l.b16 %v451
  %v505 = vunpack.c.h.b16 %v451
  %v506 = vunpack.c.l.b16 %v452
  %v507 = vunpack.c.h.b16 %v452
  %v508 = vunpack.c.l.b16 %v453
  %v509 = vunpack.c.h.b16 %v453
  %v510 = vunpack.c.l.b16 %v454
  %v511 = vunpack.c.h.b16 %v454
  %v512 = vunpack.c.l.b16 %v455
  %v513 = vunpack.c.h.b16 %v455
  %v514 = vunpack.c.l.b16 %v456
  %v515 = vunpack.c.h.b16 %v456
  %v516 = vpack.c.b16 %v486, %v484
  %v517 = vpack.c.b16 %v487, %v485
  %v518 = vpack.c.b16 %v490, %v488
  %v519 = vpack.c.b16 %v491, %v489
  %v520 = vpack.c.b16 %v494, %v492
  %v521 = vpack.c.b16 %v495, %v493
  %v522 = vpack.c.b16 %v498, %v496
  %v523 = vpack.c.b16 %v499, %v497
  %v524 = vpack.c.b16 %v502, %v500
  %v525 = vpack.c.b16 %v503, %v501
  %v526 = vpack.c.b16 %v506, %v504
  %v527 = vpack.c.b16 %v507, %v505
  %v528 = vpack.c.b16 %v510, %v508
  %v529 = vpack.c.b16 %v511, %v509
  %v530 = vpack.c.b16 %v514, %v512
  %v531 = vpack.c.b16 %v515, %v513
  %548 = vmatpush.bf16.msra.mxu0 %v530
  %549 = vmatpush.bf16.msra.mxu0 %v528
  %550 = vmatpush.bf16.msra.mxu0 %v526
  %551 = vmatpush.bf16.msra.mxu0 %v524
  %552 = vmatpush.bf16.msra.mxu0 %v522
  %553 = vmatpush.bf16.msra.mxu0 %v520
  %554 = vmatpush.bf16.msra.mxu0 %v518
  %555 = vmatpush.bf16.msra.mxu0 %v516
  %556 = vmatmul.bf16.gmra.mxu0 %v466
  %v557 = vpop.f32.mrf.mxu0
  %v558 = vadd.f32 0.0, %v557
  %v559 = vpop.f32.mrf.mxu0
  %560 = vdwg.mxu0
  %561 = vmatpush.bf16.msra.mxu0 %v531
  %562 = vmatpush.bf16.msra.mxu0 %v529
  %563 = vmatpush.bf16.msra.mxu0 %v527
  %564 = vmatpush.bf16.msra.mxu0 %v525
  %565 = vmatpush.bf16.msra.mxu0 %v523
  %566 = vmatpush.bf16.msra.mxu0 %v521
  %567 = vmatpush.bf16.msra.mxu0 %v519
  %568 = vmatpush.bf16.msra.mxu0 %v517
  %569 = vmatmul.bf16.gmra.mxu0 %v466
  %v570 = vpop.f32.mrf.mxu0
  %v571 = vadd.f32 0.0, %v570
  %v572 = vpop.f32.mrf.mxu0
  %573 = vdwg.mxu0
  %v590 = vunpack.c.l.b16 %v424
  %v591 = vunpack.c.h.b16 %v424
  %v592 = vunpack.c.l.b16 %v425
  %v593 = vunpack.c.h.b16 %v425
  %v594 = vunpack.c.l.b16 %v426
  %v595 = vunpack.c.h.b16 %v426
  %v596 = vunpack.c.l.b16 %v427
  %v597 = vunpack.c.h.b16 %v427
  %v598 = vunpack.c.l.b16 %v428
  %v599 = vunpack.c.h.b16 %v428
  %v600 = vunpack.c.l.b16 %v429
  %v601 = vunpack.c.h.b16 %v429
  %v602 = vunpack.c.l.b16 %v430
  %v603 = vunpack.c.h.b16 %v430
  %v604 = vunpack.c.l.b16 %v431
  %v605 = vunpack.c.h.b16 %v431
  %v606 = vunpack.c.l.b16 %v432
  %v607 = vunpack.c.h.b16 %v432
  %v608 = vunpack.c.l.b16 %v433
  %v609 = vunpack.c.h.b16 %v433
  %v610 = vunpack.c.l.b16 %v434
  %v611 = vunpack.c.h.b16 %v434
  %v612 = vunpack.c.l.b16 %v435
  %v613 = vunpack.c.h.b16 %v435
  %v614 = vunpack.c.l.b16 %v436
  %v615 = vunpack.c.h.b16 %v436
  %v616 = vunpack.c.l.b16 %v437
  %v617 = vunpack.c.h.b16 %v437
  %v618 = vunpack.c.l.b16 %v438
  %v619 = vunpack.c.h.b16 %v438
  %v620 = vunpack.c.l.b16 %v439
  %v621 = vunpack.c.h.b16 %v439
  %v622 = vpack.c.b16 %v592, %v590
  %v623 = vpack.c.b16 %v593, %v591
  %v624 = vpack.c.b16 %v596, %v594
  %v625 = vpack.c.b16 %v597, %v595
  %v626 = vpack.c.b16 %v600, %v598
  %v627 = vpack.c.b16 %v601, %v599
  %v628 = vpack.c.b16 %v604, %v602
  %v629 = vpack.c.b16 %v605, %v603
  %v630 = vpack.c.b16 %v608, %v606
  %v631 = vpack.c.b16 %v609, %v607
  %v632 = vpack.c.b16 %v612, %v610
  %v633 = vpack.c.b16 %v613, %v611
  %v634 = vpack.c.b16 %v616, %v614
  %v635 = vpack.c.b16 %v617, %v615
  %v636 = vpack.c.b16 %v620, %v618
  %v637 = vpack.c.b16 %v621, %v619
  %654 = vmatpush.bf16.msra.mxu0 %v636
  %655 = vmatpush.bf16.msra.mxu0 %v634
  %656 = vmatpush.bf16.msra.mxu0 %v632
  %657 = vmatpush.bf16.msra.mxu0 %v630
  %658 = vmatpush.bf16.msra.mxu0 %v628
  %659 = vmatpush.bf16.msra.mxu0 %v626
  %660 = vmatpush.bf16.msra.mxu0 %v624
  %661 = vmatpush.bf16.msra.mxu0 %v622
  %662 = vmatmul.bf16.gmra.mxu0 %v423
  %v663 = vpop.f32.mrf.mxu0
  %v664 = vadd.f32 %v558, %v663
  %v665 = vpop.f32.mrf.mxu0
  %666 = vdwg.mxu0
  %667 = vmatpush.bf16.msra.mxu0 %v637
  %668 = vmatpush.bf16.msra.mxu0 %v635
  %669 = vmatpush.bf16.msra.mxu0 %v633
  %670 = vmatpush.bf16.msra.mxu0 %v631
  %671 = vmatpush.bf16.msra.mxu0 %v629
  %672 = vmatpush.bf16.msra.mxu0 %v627
  %673 = vmatpush.bf16.msra.mxu0 %v625
  %674 = vmatpush.bf16.msra.mxu0 %v623
  %675 = vmatmul.bf16.gmra.mxu0 %v423
  %v676 = vpop.f32.mrf.mxu0
  %v677 = vadd.f32 %v571, %v676
  %v678 = vpop.f32.mrf.mxu0
  %679 = vdwg.mxu0
  %v680 = vld [vmem:[%s422] sm:$0x6]
  %v681 = vld [vmem:[%s273] sm:$0xff]
  %v682 = vld [vmem:[%s273 + $0x8] sm:$0xff]
  %v683 = vld [vmem:[%s273 + $0x10] sm:$0xff]
  %v684 = vld [vmem:[%s273 + $0x18] sm:$0xff]
  %v685 = vld [vmem:[%s273 + $0x20] sm:$0xff]
  %v686 = vld [vmem:[%s273 + $0x28] sm:$0xff]
  %v687 = vld [vmem:[%s273 + $0x30] sm:$0xff]
  %v688 = vld [vmem:[%s273 + $0x38] sm:$0xff]
  %v689 = vld [vmem:[%s273 + $0x40] sm:$0xff]
  %v690 = vld [vmem:[%s273 + $0x48] sm:$0xff]
  %v691 = vld [vmem:[%s273 + $0x50] sm:$0xff]
  %v692 = vld [vmem:[%s273 + $0x58] sm:$0xff]
  %v693 = vld [vmem:[%s273 + $0x60] sm:$0xff]
  %v694 = vld [vmem:[%s273 + $0x68] sm:$0xff]
  %v695 = vld [vmem:[%s273 + $0x70] sm:$0xff]
  %v696 = vld [vmem:[%s273 + $0x78] sm:$0xff]
  %v698 = vunpack.c.l.b16 %v680
  %v699 = vpack.c.b16 %v698, %v698
  %v700 = vrot.slane %v699, 1
  %v718 = vunpack.c.l.b16 %v681
  %v719 = vunpack.c.h.b16 %v681
  %v720 = vunpack.c.l.b16 %v682
  %v721 = vunpack.c.h.b16 %v682
  %v722 = vunpack.c.l.b16 %v683
  %v723 = vunpack.c.h.b16 %v683
  %v724 = vunpack.c.l.b16 %v684
  %v725 = vunpack.c.h.b16 %v684
  %v726 = vunpack.c.l.b16 %v685
  %v727 = vunpack.c.h.b16 %v685
  %v728 = vunpack.c.l.b16 %v686
  %v729 = vunpack.c.h.b16 %v686
  %v730 = vunpack.c.l.b16 %v687
  %v731 = vunpack.c.h.b16 %v687
  %v732 = vunpack.c.l.b16 %v688
  %v733 = vunpack.c.h.b16 %v688
  %v734 = vunpack.c.l.b16 %v689
  %v735 = vunpack.c.h.b16 %v689
  %v736 = vunpack.c.l.b16 %v690
  %v737 = vunpack.c.h.b16 %v690
  %v738 = vunpack.c.l.b16 %v691
  %v739 = vunpack.c.h.b16 %v691
  %v740 = vunpack.c.l.b16 %v692
  %v741 = vunpack.c.h.b16 %v692
  %v742 = vunpack.c.l.b16 %v693
  %v743 = vunpack.c.h.b16 %v693
  %v744 = vunpack.c.l.b16 %v694
  %v745 = vunpack.c.h.b16 %v694
  %v746 = vunpack.c.l.b16 %v695
  %v747 = vunpack.c.h.b16 %v695
  %v748 = vunpack.c.l.b16 %v696
  %v749 = vunpack.c.h.b16 %v696
  %v750 = vpack.c.b16 %v720, %v718
  %v751 = vpack.c.b16 %v721, %v719
  %v752 = vpack.c.b16 %v724, %v722
  %v753 = vpack.c.b16 %v725, %v723
  %v754 = vpack.c.b16 %v728, %v726
  %v755 = vpack.c.b16 %v729, %v727
  %v756 = vpack.c.b16 %v732, %v730
  %v757 = vpack.c.b16 %v733, %v731
  %v758 = vpack.c.b16 %v736, %v734
  %v759 = vpack.c.b16 %v737, %v735
  %v760 = vpack.c.b16 %v740, %v738
  %v761 = vpack.c.b16 %v741, %v739
  %v762 = vpack.c.b16 %v744, %v742
  %v763 = vpack.c.b16 %v745, %v743
  %v764 = vpack.c.b16 %v748, %v746
  %v765 = vpack.c.b16 %v749, %v747
  %782 = vmatpush.bf16.msra.mxu0 %v764
  %783 = vmatpush.bf16.msra.mxu0 %v762
  %784 = vmatpush.bf16.msra.mxu0 %v760
  %785 = vmatpush.bf16.msra.mxu0 %v758
  %786 = vmatpush.bf16.msra.mxu0 %v756
  %787 = vmatpush.bf16.msra.mxu0 %v754
  %788 = vmatpush.bf16.msra.mxu0 %v752
  %789 = vmatpush.bf16.msra.mxu0 %v750
  %790 = vmatmul.bf16.gmra.mxu0 %v700
  %v791 = vpop.f32.mrf.mxu0
  %v792 = vadd.f32 0.0, %v791
  %v793 = vpop.f32.mrf.mxu0
  %794 = vdwg.mxu0
  %795 = vmatpush.bf16.msra.mxu0 %v765
  %796 = vmatpush.bf16.msra.mxu0 %v763
  %797 = vmatpush.bf16.msra.mxu0 %v761
  %798 = vmatpush.bf16.msra.mxu0 %v759
  %799 = vmatpush.bf16.msra.mxu0 %v757
  %800 = vmatpush.bf16.msra.mxu0 %v755
  %801 = vmatpush.bf16.msra.mxu0 %v753
  %802 = vmatpush.bf16.msra.mxu0 %v751
  %803 = vmatmul.bf16.gmra.mxu0 %v700
  %v804 = vpop.f32.mrf.mxu0
  %v805 = vadd.f32 0.0, %v804
  %v806 = vpop.f32.mrf.mxu0
  %807 = vdwg.mxu0
  %v808 = vadd.f32 %v664, %v792
  %v809 = vadd.f32 %v677, %v805
  %v810 = vld [vmem:[%s2] sm:$0x3]
  %v812 = vperm.slane %v810, 0
  %v813 = vperm.slane %v810, 1
  %v816 = vadd.f32 %v808, %v812
  %v817 = vadd.f32 %v809, %v813
  %v818 = vmax.f32 %v816, 0.0
  %v819 = vmax.f32 %v817, 0.0
  %v820 = vpack.c.bf16 %v819, %v818
  %v822 = vrot.slane %v820, 2
  %v825 = vsel %vm416, %v820, %v822
  %s827 = scalar_lea.vmem %s3, 4
  %828 = vst [vmem:[%s827] sm:$0xf] %v825
  // Predicated region
  $region14: #{vae_forward.9} parent=0 // pred_check
    _
  $region15: #{vae_forward.9} parent=0 // pred_check_branch
    %830 = sbr.rel (0) target = $region17
  $region16: #{vae_forward.9} parent=0 // pred_region
    _
  $region17: #{vae_forward.9} parent=0 // pred_fallthru
    _
  // Predicated region
  $region18: #{vae_forward.9} parent=0 // pred_check
    _
  $region19: #{vae_forward.9} parent=0 // pred_check_branch
    %832 = sbr.rel (0) target = $region21
  $region20: #{vae_forward.9} parent=0 // pred_region
    _
  $region21: #{vae_forward.9} parent=0 // pred_fallthru
    _

// kernel: vae_forward.12
$region0: #{vae_forward.12}
  #allocation0 [shape = 'u32[]', space=smem, size = 0x4, offset = 0x4, fixed_abs, tag = 'smem constant byte address 0x4 - core index']
  #allocation1 [shape = 'u32[72,128]{1,0:T(1,128)}', space=vmem, size = 0x9000, scoped, tag = 'internal scratch']
  %s0 = inlined_call_operand.vmem [shape: bf16[2,6,128], index: 0, kind: input, shape index: {}]
  %s1 = inlined_call_operand.vmem [shape: bf16[4,128,64], index: 1, kind: input, shape index: {}]
  %s2 = inlined_call_operand.vmem [shape: f32[1,64], index: 2, kind: input, shape index: {}]
  %s3 = inlined_call_operand.vmem [shape: bf16[2,5,64], index: 3, kind: output, shape index: {0}]
  %s4 = inlined_call_operand.vmem [shape: bf16[2,4,64], index: 4, kind: output, shape index: {1}]
  %5 = xla_tuple %s3, %s4
  %s6 = sld [smem:[#allocation0]]
  $region30: #{vae_forward.12} parent=0
    _
  %s8 = ssub.s32 1, %s6
  %s9 = scalar_select 0, %s8, %s6
  // Predicated region
  $region2: #{vae_forward.12} parent=0 // pred_check
    _
  $region3: #{vae_forward.12} parent=0 // pred_check_branch
    %11 = sbr.rel (0) target = $region5
  $region4: #{vae_forward.12} parent=0 // pred_region
    _
  $region5: #{vae_forward.12} parent=0 // pred_fallthru
    _
  // Predicated region
  $region6: #{vae_forward.12} parent=0 // pred_check
    _
  $region7: #{vae_forward.12} parent=0 // pred_check_branch
    %13 = sbr.rel (0) target = $region9
  $region8: #{vae_forward.12} parent=0 // pred_region
    _
  $region9: #{vae_forward.12} parent=0 // pred_fallthru
    _
  // Predicated region
  $region10: #{vae_forward.12} parent=0 // pred_check
    _
  $region11: #{vae_forward.12} parent=0 // pred_check_branch
    %15 = sbr.rel (0) target = $region13
  $region12: #{vae_forward.12} parent=0 // pred_region
    _
  $region13: #{vae_forward.12} parent=0 // pred_fallthru
    _
  %v16 = vld [vmem:[%s0] sm:$0x7]
  %s17 = scalar_lea.vmem %s1, 192
  %v18 = vld [vmem:[%s17] sm:$0xf]
  %v19 = vld [vmem:[%s17 + $0x4] sm:$0xf]
  %v20 = vld [vmem:[%s17 + $0x8] sm:$0xf]
  %v21 = vld [vmem:[%s17 + $0xc] sm:$0xf]
  %v22 = vld [vmem:[%s17 + $0x10] sm:$0xf]
  %v23 = vld [vmem:[%s17 + $0x14] sm:$0xf]
  %v24 = vld [vmem:[%s17 + $0x18] sm:$0xf]
  %v25 = vld [vmem:[%s17 + $0x1c] sm:$0xf]
  %v26 = vld [vmem:[%s17 + $0x20] sm:$0xf]
  %v27 = vld [vmem:[%s17 + $0x24] sm:$0xf]
  %v28 = vld [vmem:[%s17 + $0x28] sm:$0xf]
  %v29 = vld [vmem:[%s17 + $0x2c] sm:$0xf]
  %v30 = vld [vmem:[%s17 + $0x30] sm:$0xf]
  %v31 = vld [vmem:[%s17 + $0x34] sm:$0xf]
  %v32 = vld [vmem:[%s17 + $0x38] sm:$0xf]
  %v33 = vld [vmem:[%s17 + $0x3c] sm:$0xf]
  %s34 = scalar_lea.vmem %s1, 64
  %v35 = vld [vmem:[%s34] sm:$0xf]
  %v36 = vld [vmem:[%s34 + $0x4] sm:$0xf]
  %v37 = vld [vmem:[%s34 + $0x8] sm:$0xf]
  %v38 = vld [vmem:[%s34 + $0xc] sm:$0xf]
  %v39 = vld [vmem:[%s34 + $0x10] sm:$0xf]
  %v40 = vld [vmem:[%s34 + $0x14] sm:$0xf]
  %v41 = vld [vmem:[%s34 + $0x18] sm:$0xf]
  %v42 = vld [vmem:[%s34 + $0x1c] sm:$0xf]
  %v43 = vld [vmem:[%s34 + $0x20] sm:$0xf]
  %v44 = vld [vmem:[%s34 + $0x24] sm:$0xf]
  %v45 = vld [vmem:[%s34 + $0x28] sm:$0xf]
  %v46 = vld [vmem:[%s34 + $0x2c] sm:$0xf]
  %v47 = vld [vmem:[%s34 + $0x30] sm:$0xf]
  %v48 = vld [vmem:[%s34 + $0x34] sm:$0xf]
  %v49 = vld [vmem:[%s34 + $0x38] sm:$0xf]
  %v50 = vld [vmem:[%s34 + $0x3c] sm:$0xf]
  %v52 = vunpack.c.l.b16 %v16
  %v53 = vpack.c.b16 %v52, %v52
  %v55 = vshrl.u32 %v53, 16
  %v57 = vshll.u32 %v53, 16
  %v59 = vrot.slane %v57, 1
  %v60 = vor.u32 %v55, %v59
  %v78 = vunpack.c.l.b16 %v35
  %v79 = vunpack.c.l.b16 %v36
  %v80 = vunpack.c.l.b16 %v37
  %v81 = vunpack.c.l.b16 %v38
  %v82 = vunpack.c.l.b16 %v39
  %v83 = vunpack.c.l.b16 %v40
  %v84 = vunpack.c.l.b16 %v41
  %v85 = vunpack.c.l.b16 %v42
  %v86 = vunpack.c.l.b16 %v43
  %v87 = vunpack.c.l.b16 %v44
  %v88 = vunpack.c.l.b16 %v45
  %v89 = vunpack.c.l.b16 %v46
  %v90 = vunpack.c.l.b16 %v47
  %v91 = vunpack.c.l.b16 %v48
  %v92 = vunpack.c.l.b16 %v49
  %v93 = vunpack.c.l.b16 %v50
  %v94 = vpack.c.b16 %v79, %v78
  %v95 = vpack.c.b16 %v81, %v80
  %v96 = vpack.c.b16 %v83, %v82
  %v97 = vpack.c.b16 %v85, %v84
  %v98 = vpack.c.b16 %v87, %v86
  %v99 = vpack.c.b16 %v89, %v88
  %v100 = vpack.c.b16 %v91, %v90
  %v101 = vpack.c.b16 %v93, %v92
  %110 = vmatpush.bf16.msra.mxu0 %v101
  %111 = vmatpush.bf16.msra.mxu0 %v100
  %112 = vmatpush.bf16.msra.mxu0 %v99
  %113 = vmatpush.bf16.msra.mxu0 %v98
  %114 = vmatpush.bf16.msra.mxu0 %v97
  %115 = vmatpush.bf16.msra.mxu0 %v96
  %116 = vmatpush.bf16.msra.mxu0 %v95
  %117 = vmatpush.bf16.msra.mxu0 %v94
  %118 = vmatmul.bf16.gmra.mxu0 %v60
  %v119 = vpop.f32.mrf.mxu0
  %v120 = vadd.f32 0.0, %v119
  %v121 = vpop.f32.mrf.mxu0
  %122 = vdwg.mxu0
  %v139 = vunpack.c.l.b16 %v18
  %v140 = vunpack.c.l.b16 %v19
  %v141 = vunpack.c.l.b16 %v20
  %v142 = vunpack.c.l.b16 %v21
  %v143 = vunpack.c.l.b16 %v22
  %v144 = vunpack.c.l.b16 %v23
  %v145 = vunpack.c.l.b16 %v24
  %v146 = vunpack.c.l.b16 %v25
  %v147 = vunpack.c.l.b16 %v26
  %v148 = vunpack.c.l.b16 %v27
  %v149 = vunpack.c.l.b16 %v28
  %v150 = vunpack.c.l.b16 %v29
  %v151 = vunpack.c.l.b16 %v30
  %v152 = vunpack.c.l.b16 %v31
  %v153 = vunpack.c.l.b16 %v32
  %v154 = vunpack.c.l.b16 %v33
  %v155 = vpack.c.b16 %v140, %v139
  %v156 = vpack.c.b16 %v142, %v141
  %v157 = vpack.c.b16 %v144, %v143
  %v158 = vpack.c.b16 %v146, %v145
  %v159 = vpack.c.b16 %v148, %v147
  %v160 = vpack.c.b16 %v150, %v149
  %v161 = vpack.c.b16 %v152, %v151
  %v162 = vpack.c.b16 %v154, %v153
  %171 = vmatpush.bf16.msra.mxu0 %v162
  %172 = vmatpush.bf16.msra.mxu0 %v161
  %173 = vmatpush.bf16.msra.mxu0 %v160
  %174 = vmatpush.bf16.msra.mxu0 %v159
  %175 = vmatpush.bf16.msra.mxu0 %v158
  %176 = vmatpush.bf16.msra.mxu0 %v157
  %177 = vmatpush.bf16.msra.mxu0 %v156
  %178 = vmatpush.bf16.msra.mxu0 %v155
  %179 = vmatmul.bf16.gmra.mxu0 %v16
  %v180 = vpop.f32.mrf.mxu0
  %v181 = vadd.f32 %v120, %v180
  %v182 = vpop.f32.mrf.mxu0
  %183 = vdwg.mxu0
  %v184 = vld [vmem:[%s2] sm:$0x1]
  %v186 = vperm.slane %v184, 0
  %v188 = vadd.f32 %v181, %v186
  %v189 = vld [vmem:[%s0] sm:$0x6]
  %s190 = scalar_lea.vmem %s1, 128
  %v191 = vld [vmem:[%s190] sm:$0xf]
  %v192 = vld [vmem:[%s190 + $0x4] sm:$0xf]
  %v193 = vld [vmem:[%s190 + $0x8] sm:$0xf]
  %v194 = vld [vmem:[%s190 + $0xc] sm:$0xf]
  %v195 = vld [vmem:[%s190 + $0x10] sm:$0xf]
  %v196 = vld [vmem:[%s190 + $0x14] sm:$0xf]
  %v197 = vld [vmem:[%s190 + $0x18] sm:$0xf]
  %v198 = vld [vmem:[%s190 + $0x1c] sm:$0xf]
  %v199 = vld [vmem:[%s190 + $0x20] sm:$0xf]
  %v200 = vld [vmem:[%s190 + $0x24] sm:$0xf]
  %v201 = vld [vmem:[%s190 + $0x28] sm:$0xf]
  %v202 = vld [vmem:[%s190 + $0x2c] sm:$0xf]
  %v203 = vld [vmem:[%s190 + $0x30] sm:$0xf]
  %v204 = vld [vmem:[%s190 + $0x34] sm:$0xf]
  %v205 = vld [vmem:[%s190 + $0x38] sm:$0xf]
  %v206 = vld [vmem:[%s190 + $0x3c] sm:$0xf]
  %v207 = vld [vmem:[%s1] sm:$0xf]
  %v208 = vld [vmem:[%s1 + $0x4] sm:$0xf]
  %v209 = vld [vmem:[%s1 + $0x8] sm:$0xf]
  %v210 = vld [vmem:[%s1 + $0xc] sm:$0xf]
  %v211 = vld [vmem:[%s1 + $0x10] sm:$0xf]
  %v212 = vld [vmem:[%s1 + $0x14] sm:$0xf]
  %v213 = vld [vmem:[%s1 + $0x18] sm:$0xf]
  %v214 = vld [vmem:[%s1 + $0x1c] sm:$0xf]
  %v215 = vld [vmem:[%s1 + $0x20] sm:$0xf]
  %v216 = vld [vmem:[%s1 + $0x24] sm:$0xf]
  %v217 = vld [vmem:[%s1 + $0x28] sm:$0xf]
  %v218 = vld [vmem:[%s1 + $0x2c] sm:$0xf]
  %v219 = vld [vmem:[%s1 + $0x30] sm:$0xf]
  %v220 = vld [vmem:[%s1 + $0x34] sm:$0xf]
  %v221 = vld [vmem:[%s1 + $0x38] sm:$0xf]
  %v222 = vld [vmem:[%s1 + $0x3c] sm:$0xf]
  %v224 = vunpack.c.l.b16 %v189
  %v225 = vpack.c.b16 %v224, %v224
  %v226 = vrot.slane %v225, 1
  %v244 = vunpack.c.l.b16 %v207
  %v245 = vunpack.c.l.b16 %v208
  %v246 = vunpack.c.l.b16 %v209
  %v247 = vunpack.c.l.b16 %v210
  %v248 = vunpack.c.l.b16 %v211
  %v249 = vunpack.c.l.b16 %v212
  %v250 = vunpack.c.l.b16 %v213
  %v251 = vunpack.c.l.b16 %v214
  %v252 = vunpack.c.l.b16 %v215
  %v253 = vunpack.c.l.b16 %v216
  %v254 = vunpack.c.l.b16 %v217
  %v255 = vunpack.c.l.b16 %v218
  %v256 = vunpack.c.l.b16 %v219
  %v257 = vunpack.c.l.b16 %v220
  %v258 = vunpack.c.l.b16 %v221
  %v259 = vunpack.c.l.b16 %v222
  %v260 = vpack.c.b16 %v245, %v244
  %v261 = vpack.c.b16 %v247, %v246
  %v262 = vpack.c.b16 %v249, %v248
  %v263 = vpack.c.b16 %v251, %v250
  %v264 = vpack.c.b16 %v253, %v252
  %v265 = vpack.c.b16 %v255, %v254
  %v266 = vpack.c.b16 %v257, %v256
  %v267 = vpack.c.b16 %v259, %v258
  %276 = vmatpush.bf16.msra.mxu0 %v267
  %277 = vmatpush.bf16.msra.mxu0 %v266
  %278 = vmatpush.bf16.msra.mxu0 %v265
  %279 = vmatpush.bf16.msra.mxu0 %v264
  %280 = vmatpush.bf16.msra.mxu0 %v263
  %281 = vmatpush.bf16.msra.mxu0 %v262
  %282 = vmatpush.bf16.msra.mxu0 %v261
  %283 = vmatpush.bf16.msra.mxu0 %v260
  %284 = vmatmul.bf16.gmra.mxu0 %v226
  %v285 = vpop.f32.mrf.mxu0
  %v286 = vadd.f32 0.0, %v285
  %v287 = vpop.f32.mrf.mxu0
  %288 = vdwg.mxu0
  %v305 = vunpack.c.l.b16 %v191
  %v306 = vunpack.c.l.b16 %v192
  %v307 = vunpack.c.l.b16 %v193
  %v308 = vunpack.c.l.b16 %v194
  %v309 = vunpack.c.l.b16 %v195
  %v310 = vunpack.c.l.b16 %v196
  %v311 = vunpack.c.l.b16 %v197
  %v312 = vunpack.c.l.b16 %v198
  %v313 = vunpack.c.l.b16 %v199
  %v314 = vunpack.c.l.b16 %v200
  %v315 = vunpack.c.l.b16 %v201
  %v316 = vunpack.c.l.b16 %v202
  %v317 = vunpack.c.l.b16 %v203
  %v318 = vunpack.c.l.b16 %v204
  %v319 = vunpack.c.l.b16 %v205
  %v320 = vunpack.c.l.b16 %v206
  %v321 = vpack.c.b16 %v306, %v305
  %v322 = vpack.c.b16 %v308, %v307
  %v323 = vpack.c.b16 %v310, %v309
  %v324 = vpack.c.b16 %v312, %v311
  %v325 = vpack.c.b16 %v314, %v313
  %v326 = vpack.c.b16 %v316, %v315
  %v327 = vpack.c.b16 %v318, %v317
  %v328 = vpack.c.b16 %v320, %v319
  %337 = vmatpush.bf16.msra.mxu0 %v328
  %338 = vmatpush.bf16.msra.mxu0 %v327
  %339 = vmatpush.bf16.msra.mxu0 %v326
  %340 = vmatpush.bf16.msra.mxu0 %v325
  %341 = vmatpush.bf16.msra.mxu0 %v324
  %342 = vmatpush.bf16.msra.mxu0 %v323
  %343 = vmatpush.bf16.msra.mxu0 %v322
  %344 = vmatpush.bf16.msra.mxu0 %v321
  %345 = vmatmul.bf16.gmra.mxu0 %v60
  %v346 = vpop.f32.mrf.mxu0
  %v347 = vadd.f32 %v286, %v346
  %v348 = vpop.f32.mrf.mxu0
  %349 = vdwg.mxu0
  %v350 = vadd.f32 %v347, %v186
  %v351 = vmax.f32 %v188, 0.0
  %v352 = vmax.f32 %v350, 0.0
  %v353 = vpack.c.bf16 %v351, %v351
  %vm354 = vcmask 518144
  %vm355 = vsmask.f32 2304
  %vm356 = vmand %vm354, %vm355
  %v357 = vld [vmem:[%s3] sm:$0x7]
  %v358 = vsel %vm356, %v353, %v357
  %359 = vst [vmem:[%s3] sm:$0x7] %v358
  %v360 = vpack.c.bf16 %v352, %v352
  %vm361 = vcmask 517120
  %362 = vst.msk [vmem:[%s4] sm:$0x3] %vm361, %v360
  %s363 = scalar_lea.vmem %s0, 4
  %v364 = vld [vmem:[%s363] sm:$0x7]
  %v365 = vld [vmem:[%s17] sm:$0xf]
  %v366 = vld [vmem:[%s17 + $0x4] sm:$0xf]
  %v367 = vld [vmem:[%s17 + $0x8] sm:$0xf]
  %v368 = vld [vmem:[%s17 + $0xc] sm:$0xf]
  %v369 = vld [vmem:[%s17 + $0x10] sm:$0xf]
  %v370 = vld [vmem:[%s17 + $0x14] sm:$0xf]
  %v371 = vld [vmem:[%s17 + $0x18] sm:$0xf]
  %v372 = vld [vmem:[%s17 + $0x1c] sm:$0xf]
  %v373 = vld [vmem:[%s17 + $0x20] sm:$0xf]
  %v374 = vld [vmem:[%s17 + $0x24] sm:$0xf]
  %v375 = vld [vmem:[%s17 + $0x28] sm:$0xf]
  %v376 = vld [vmem:[%s17 + $0x2c] sm:$0xf]
  %v377 = vld [vmem:[%s17 + $0x30] sm:$0xf]
  %v378 = vld [vmem:[%s17 + $0x34] sm:$0xf]
  %v379 = vld [vmem:[%s17 + $0x38] sm:$0xf]
  %v380 = vld [vmem:[%s17 + $0x3c] sm:$0xf]
  %v381 = vld [vmem:[%s34] sm:$0xf]
  %v382 = vld [vmem:[%s34 + $0x4] sm:$0xf]
  %v383 = vld [vmem:[%s34 + $0x8] sm:$0xf]
  %v384 = vld [vmem:[%s34 + $0xc] sm:$0xf]
  %v385 = vld [vmem:[%s34 + $0x10] sm:$0xf]
  %v386 = vld [vmem:[%s34 + $0x14] sm:$0xf]
  %v387 = vld [vmem:[%s34 + $0x18] sm:$0xf]
  %v388 = vld [vmem:[%s34 + $0x1c] sm:$0xf]
  %v389 = vld [vmem:[%s34 + $0x20] sm:$0xf]
  %v390 = vld [vmem:[%s34 + $0x24] sm:$0xf]
  %v391 = vld [vmem:[%s34 + $0x28] sm:$0xf]
  %v392 = vld [vmem:[%s34 + $0x2c] sm:$0xf]
  %v393 = vld [vmem:[%s34 + $0x30] sm:$0xf]
  %v394 = vld [vmem:[%s34 + $0x34] sm:$0xf]
  %v395 = vld [vmem:[%s34 + $0x38] sm:$0xf]
  %v396 = vld [vmem:[%s34 + $0x3c] sm:$0xf]
  %v398 = vunpack.c.l.b16 %v364
  %v399 = vpack.c.b16 %v398, %v398
  %v401 = vshrl.u32 %v399, 16
  %v403 = vshll.u32 %v399, 16
  %v405 = vrot.slane %v403, 1
  %v406 = vor.u32 %v401, %v405
  %v424 = vunpack.c.l.b16 %v381
  %v425 = vunpack.c.l.b16 %v382
  %v426 = vunpack.c.l.b16 %v383
  %v427 = vunpack.c.l.b16 %v384
  %v428 = vunpack.c.l.b16 %v385
  %v429 = vunpack.c.l.b16 %v386
  %v430 = vunpack.c.l.b16 %v387
  %v431 = vunpack.c.l.b16 %v388
  %v432 = vunpack.c.l.b16 %v389
  %v433 = vunpack.c.l.b16 %v390
  %v434 = vunpack.c.l.b16 %v391
  %v435 = vunpack.c.l.b16 %v392
  %v436 = vunpack.c.l.b16 %v393
  %v437 = vunpack.c.l.b16 %v394
  %v438 = vunpack.c.l.b16 %v395
  %v439 = vunpack.c.l.b16 %v396
  %v440 = vpack.c.b16 %v425, %v424
  %v441 = vpack.c.b16 %v427, %v426
  %v442 = vpack.c.b16 %v429, %v428
  %v443 = vpack.c.b16 %v431, %v430
  %v444 = vpack.c.b16 %v433, %v432
  %v445 = vpack.c.b16 %v435, %v434
  %v446 = vpack.c.b16 %v437, %v436
  %v447 = vpack.c.b16 %v439, %v438
  %456 = vmatpush.bf16.msra.mxu0 %v447
  %457 = vmatpush.bf16.msra.mxu0 %v446
  %458 = vmatpush.bf16.msra.mxu0 %v445
  %459 = vmatpush.bf16.msra.mxu0 %v444
  %460 = vmatpush.bf16.msra.mxu0 %v443
  %461 = vmatpush.bf16.msra.mxu0 %v442
  %462 = vmatpush.bf16.msra.mxu0 %v441
  %463 = vmatpush.bf16.msra.mxu0 %v440
  %464 = vmatmul.bf16.gmra.mxu0 %v406
  %v465 = vpop.f32.mrf.mxu0
  %v466 = vadd.f32 0.0, %v465
  %v467 = vpop.f32.mrf.mxu0
  %468 = vdwg.mxu0
  %v485 = vunpack.c.l.b16 %v365
  %v486 = vunpack.c.l.b16 %v366
  %v487 = vunpack.c.l.b16 %v367
  %v488 = vunpack.c.l.b16 %v368
  %v489 = vunpack.c.l.b16 %v369
  %v490 = vunpack.c.l.b16 %v370
  %v491 = vunpack.c.l.b16 %v371
  %v492 = vunpack.c.l.b16 %v372
  %v493 = vunpack.c.l.b16 %v373
  %v494 = vunpack.c.l.b16 %v374
  %v495 = vunpack.c.l.b16 %v375
  %v496 = vunpack.c.l.b16 %v376
  %v497 = vunpack.c.l.b16 %v377
  %v498 = vunpack.c.l.b16 %v378
  %v499 = vunpack.c.l.b16 %v379
  %v500 = vunpack.c.l.b16 %v380
  %v501 = vpack.c.b16 %v486, %v485
  %v502 = vpack.c.b16 %v488, %v487
  %v503 = vpack.c.b16 %v490, %v489
  %v504 = vpack.c.b16 %v492, %v491
  %v505 = vpack.c.b16 %v494, %v493
  %v506 = vpack.c.b16 %v496, %v495
  %v507 = vpack.c.b16 %v498, %v497
  %v508 = vpack.c.b16 %v500, %v499
  %517 = vmatpush.bf16.msra.mxu0 %v508
  %518 = vmatpush.bf16.msra.mxu0 %v507
  %519 = vmatpush.bf16.msra.mxu0 %v506
  %520 = vmatpush.bf16.msra.mxu0 %v505
  %521 = vmatpush.bf16.msra.mxu0 %v504
  %522 = vmatpush.bf16.msra.mxu0 %v503
  %523 = vmatpush.bf16.msra.mxu0 %v502
  %524 = vmatpush.bf16.msra.mxu0 %v501
  %525 = vmatmul.bf16.gmra.mxu0 %v364
  %v526 = vpop.f32.mrf.mxu0
  %v527 = vadd.f32 %v466, %v526
  %v528 = vpop.f32.mrf.mxu0
  %529 = vdwg.mxu0
  %v530 = vld [vmem:[%s2] sm:$0x1]
  %v532 = vperm.slane %v530, 0
  %v534 = vadd.f32 %v527, %v532
  %v535 = vld [vmem:[%s363] sm:$0x6]
  %v536 = vld [vmem:[%s190] sm:$0xf]
  %v537 = vld [vmem:[%s190 + $0x4] sm:$0xf]
  %v538 = vld [vmem:[%s190 + $0x8] sm:$0xf]
  %v539 = vld [vmem:[%s190 + $0xc] sm:$0xf]
  %v540 = vld [vmem:[%s190 + $0x10] sm:$0xf]
  %v541 = vld [vmem:[%s190 + $0x14] sm:$0xf]
  %v542 = vld [vmem:[%s190 + $0x18] sm:$0xf]
  %v543 = vld [vmem:[%s190 + $0x1c] sm:$0xf]
  %v544 = vld [vmem:[%s190 + $0x20] sm:$0xf]
  %v545 = vld [vmem:[%s190 + $0x24] sm:$0xf]
  %v546 = vld [vmem:[%s190 + $0x28] sm:$0xf]
  %v547 = vld [vmem:[%s190 + $0x2c] sm:$0xf]
  %v548 = vld [vmem:[%s190 + $0x30] sm:$0xf]
  %v549 = vld [vmem:[%s190 + $0x34] sm:$0xf]
  %v550 = vld [vmem:[%s190 + $0x38] sm:$0xf]
  %v551 = vld [vmem:[%s190 + $0x3c] sm:$0xf]
  %v552 = vld [vmem:[%s1] sm:$0xf]
  %v553 = vld [vmem:[%s1 + $0x4] sm:$0xf]
  %v554 = vld [vmem:[%s1 + $0x8] sm:$0xf]
  %v555 = vld [vmem:[%s1 + $0xc] sm:$0xf]
  %v556 = vld [vmem:[%s1 + $0x10] sm:$0xf]
  %v557 = vld [vmem:[%s1 + $0x14] sm:$0xf]
  %v558 = vld [vmem:[%s1 + $0x18] sm:$0xf]
  %v559 = vld [vmem:[%s1 + $0x1c] sm:$0xf]
  %v560 = vld [vmem:[%s1 + $0x20] sm:$0xf]
  %v561 = vld [vmem:[%s1 + $0x24] sm:$0xf]
  %v562 = vld [vmem:[%s1 + $0x28] sm:$0xf]
  %v563 = vld [vmem:[%s1 + $0x2c] sm:$0xf]
  %v564 = vld [vmem:[%s1 + $0x30] sm:$0xf]
  %v565 = vld [vmem:[%s1 + $0x34] sm:$0xf]
  %v566 = vld [vmem:[%s1 + $0x38] sm:$0xf]
  %v567 = vld [vmem:[%s1 + $0x3c] sm:$0xf]
  %v569 = vunpack.c.l.b16 %v535
  %v570 = vpack.c.b16 %v569, %v569
  %v571 = vrot.slane %v570, 1
  %v589 = vunpack.c.l.b16 %v552
  %v590 = vunpack.c.l.b16 %v553
  %v591 = vunpack.c.l.b16 %v554
  %v592 = vunpack.c.l.b16 %v555
  %v593 = vunpack.c.l.b16 %v556
  %v594 = vunpack.c.l.b16 %v557
  %v595 = vunpack.c.l.b16 %v558
  %v596 = vunpack.c.l.b16 %v559
  %v597 = vunpack.c.l.b16 %v560
  %v598 = vunpack.c.l.b16 %v561
  %v599 = vunpack.c.l.b16 %v562
  %v600 = vunpack.c.l.b16 %v563
  %v601 = vunpack.c.l.b16 %v564
  %v602 = vunpack.c.l.b16 %v565
  %v603 = vunpack.c.l.b16 %v566
  %v604 = vunpack.c.l.b16 %v567
  %v605 = vpack.c.b16 %v590, %v589
  %v606 = vpack.c.b16 %v592, %v591
  %v607 = vpack.c.b16 %v594, %v593
  %v608 = vpack.c.b16 %v596, %v595
  %v609 = vpack.c.b16 %v598, %v597
  %v610 = vpack.c.b16 %v600, %v599
  %v611 = vpack.c.b16 %v602, %v601
  %v612 = vpack.c.b16 %v604, %v603
  %621 = vmatpush.bf16.msra.mxu0 %v612
  %622 = vmatpush.bf16.msra.mxu0 %v611
  %623 = vmatpush.bf16.msra.mxu0 %v610
  %624 = vmatpush.bf16.msra.mxu0 %v609
  %625 = vmatpush.bf16.msra.mxu0 %v608
  %626 = vmatpush.bf16.msra.mxu0 %v607
  %627 = vmatpush.bf16.msra.mxu0 %v606
  %628 = vmatpush.bf16.msra.mxu0 %v605
  %629 = vmatmul.bf16.gmra.mxu0 %v571
  %v630 = vpop.f32.mrf.mxu0
  %v631 = vadd.f32 0.0, %v630
  %v632 = vpop.f32.mrf.mxu0
  %633 = vdwg.mxu0
  %v650 = vunpack.c.l.b16 %v536
  %v651 = vunpack.c.l.b16 %v537
  %v652 = vunpack.c.l.b16 %v538
  %v653 = vunpack.c.l.b16 %v539
  %v654 = vunpack.c.l.b16 %v540
  %v655 = vunpack.c.l.b16 %v541
  %v656 = vunpack.c.l.b16 %v542
  %v657 = vunpack.c.l.b16 %v543
  %v658 = vunpack.c.l.b16 %v544
  %v659 = vunpack.c.l.b16 %v545
  %v660 = vunpack.c.l.b16 %v546
  %v661 = vunpack.c.l.b16 %v547
  %v662 = vunpack.c.l.b16 %v548
  %v663 = vunpack.c.l.b16 %v549
  %v664 = vunpack.c.l.b16 %v550
  %v665 = vunpack.c.l.b16 %v551
  %v666 = vpack.c.b16 %v651, %v650
  %v667 = vpack.c.b16 %v653, %v652
  %v668 = vpack.c.b16 %v655, %v654
  %v669 = vpack.c.b16 %v657, %v656
  %v670 = vpack.c.b16 %v659, %v658
  %v671 = vpack.c.b16 %v661, %v660
  %v672 = vpack.c.b16 %v663, %v662
  %v673 = vpack.c.b16 %v665, %v664
  %682 = vmatpush.bf16.msra.mxu0 %v673
  %683 = vmatpush.bf16.msra.mxu0 %v672
  %684 = vmatpush.bf16.msra.mxu0 %v671
  %685 = vmatpush.bf16.msra.mxu0 %v670
  %686 = vmatpush.bf16.msra.mxu0 %v669
  %687 = vmatpush.bf16.msra.mxu0 %v668
  %688 = vmatpush.bf16.msra.mxu0 %v667
  %689 = vmatpush.bf16.msra.mxu0 %v666
  %690 = vmatmul.bf16.gmra.mxu0 %v406
  %v691 = vpop.f32.mrf.mxu0
  %v692 = vadd.f32 %v631, %v691
  %v693 = vpop.f32.mrf.mxu0
  %694 = vdwg.mxu0
  %v695 = vadd.f32 %v692, %v532
  %v696 = vmax.f32 %v534, 0.0
  %v697 = vmax.f32 %v695, 0.0
  %v698 = vpack.c.bf16 %v696, %v696
  %s699 = scalar_lea.vmem %s3, 4
  %v700 = vld [vmem:[%s699] sm:$0x7]
  %v701 = vsel %vm356, %v698, %v700
  %702 = vst [vmem:[%s699] sm:$0x7] %v701
  %v703 = vpack.c.bf16 %v697, %v697
  %s704 = scalar_lea.vmem %s4, 2
  %705 = vst.msk [vmem:[%s704] sm:$0x3] %vm361, %v703
  // Predicated region
  $region14: #{vae_forward.12} parent=0 // pred_check
    _
  $region15: #{vae_forward.12} parent=0 // pred_check_branch
    %707 = sbr.rel (0) target = $region17
  $region16: #{vae_forward.12} parent=0 // pred_region
    _
  $region17: #{vae_forward.12} parent=0 // pred_fallthru
    _
  // Predicated region
  $region18: #{vae_forward.12} parent=0 // pred_check
    _
  $region19: #{vae_forward.12} parent=0 // pred_check_branch
    %709 = sbr.rel (0) target = $region21
  $region20: #{vae_forward.12} parent=0 // pred_region
    _
  $region21: #{vae_forward.12} parent=0 // pred_fallthru
    _
  // Predicated region
  $region22: #{vae_forward.12} parent=0 // pred_check
    _
  $region23: #{vae_forward.12} parent=0 // pred_check_branch
    %711 = sbr.rel (0) target = $region25
  $region24: #{vae_forward.12} parent=0 // pred_region
    _
  $region25: #{vae_forward.12} parent=0 // pred_fallthru
    _
  // Predicated region
  $region26: #{vae_forward.12} parent=0 // pred_check
    _
  $region27: #{vae_forward.12} parent=0 // pred_check_branch
    %713 = sbr.rel (0) target = $region29
  $region28: #{vae_forward.12} parent=0 // pred_region
    _
  $region29: #{vae_forward.12} parent=0 // pred_fallthru
    _

// kernel: vae_forward.11
$region0: #{vae_forward.11}
  #allocation0 [shape = 'u32[]', space=smem, size = 0x4, offset = 0x4, fixed_abs, tag = 'smem constant byte address 0x4 - core index']
  #allocation1 [shape = 'u32[72,128]{1,0:T(1,128)}', space=vmem, size = 0x9000, scoped, tag = 'internal scratch']
  %s0 = inlined_call_operand.vmem [shape: bf16[2,6,256], index: 0, kind: input, shape index: {}]
  %s1 = inlined_call_operand.vmem [shape: bf16[3,256,128], index: 1, kind: input, shape index: {}]
  %s2 = inlined_call_operand.vmem [shape: f32[1,128], index: 2, kind: input, shape index: {}]
  %s3 = inlined_call_operand.vmem [shape: bf16[2,4,128], index: 3, kind: output, shape index: {}]
  %s4 = sld [smem:[#allocation0]]
  $region22: #{vae_forward.11} parent=0
    _
  %s6 = ssub.s32 1, %s4
  %s7 = scalar_select 0, %s6, %s4
  // Predicated region
  $region2: #{vae_forward.11} parent=0 // pred_check
    _
  $region3: #{vae_forward.11} parent=0 // pred_check_branch
    %9 = sbr.rel (0) target = $region5
  $region4: #{vae_forward.11} parent=0 // pred_region
    _
  $region5: #{vae_forward.11} parent=0 // pred_fallthru
    _
  // Predicated region
  $region6: #{vae_forward.11} parent=0 // pred_check
    _
  $region7: #{vae_forward.11} parent=0 // pred_check_branch
    %11 = sbr.rel (0) target = $region9
  $region8: #{vae_forward.11} parent=0 // pred_region
    _
  $region9: #{vae_forward.11} parent=0 // pred_fallthru
    _
  // Predicated region
  $region10: #{vae_forward.11} parent=0 // pred_check
    _
  $region11: #{vae_forward.11} parent=0 // pred_check_branch
    %13 = sbr.rel (0) target = $region13
  $region12: #{vae_forward.11} parent=0 // pred_region
    _
  $region13: #{vae_forward.11} parent=0 // pred_fallthru
    _
  %v14 = vld [vmem:[%s0] sm:$0x33]
  %v15 = vld [vmem:[%s1] sm:$0xf]
  %v16 = vld [vmem:[%s1 + $0x4] sm:$0xf]
  %v17 = vld [vmem:[%s1 + $0x8] sm:$0xf]
  %v18 = vld [vmem:[%s1 + $0xc] sm:$0xf]
  %v19 = vld [vmem:[%s1 + $0x10] sm:$0xf]
  %v20 = vld [vmem:[%s1 + $0x14] sm:$0xf]
  %v21 = vld [vmem:[%s1 + $0x18] sm:$0xf]
  %v22 = vld [vmem:[%s1 + $0x1c] sm:$0xf]
  %v23 = vld [vmem:[%s1 + $0x20] sm:$0xf]
  %v24 = vld [vmem:[%s1 + $0x24] sm:$0xf]
  %v25 = vld [vmem:[%s1 + $0x28] sm:$0xf]
  %v26 = vld [vmem:[%s1 + $0x2c] sm:$0xf]
  %v27 = vld [vmem:[%s1 + $0x30] sm:$0xf]
  %v28 = vld [vmem:[%s1 + $0x34] sm:$0xf]
  %v29 = vld [vmem:[%s1 + $0x38] sm:$0xf]
  %v30 = vld [vmem:[%s1 + $0x3c] sm:$0xf]
  %v31 = vld [vmem:[%s1 + $0x40] sm:$0xf]
  %v32 = vld [vmem:[%s1 + $0x44] sm:$0xf]
  %v33 = vld [vmem:[%s1 + $0x48] sm:$0xf]
  %v34 = vld [vmem:[%s1 + $0x4c] sm:$0xf]
  %v35 = vld [vmem:[%s1 + $0x50] sm:$0xf]
  %v36 = vld [vmem:[%s1 + $0x54] sm:$0xf]
  %v37 = vld [vmem:[%s1 + $0x58] sm:$0xf]
  %v38 = vld [vmem:[%s1 + $0x5c] sm:$0xf]
  %v39 = vld [vmem:[%s1 + $0x60] sm:$0xf]
  %v40 = vld [vmem:[%s1 + $0x64] sm:$0xf]
  %v41 = vld [vmem:[%s1 + $0x68] sm:$0xf]
  %v42 = vld [vmem:[%s1 + $0x6c] sm:$0xf]
  %v43 = vld [vmem:[%s1 + $0x70] sm:$0xf]
  %v44 = vld [vmem:[%s1 + $0x74] sm:$0xf]
  %v45 = vld [vmem:[%s1 + $0x78] sm:$0xf]
  %v46 = vld [vmem:[%s1 + $0x7c] sm:$0xf]
  %v47 = vld [vmem:[%s0] sm:$0x77]
  %s48 = scalar_lea.vmem %s1, 128
  %v49 = vld [vmem:[%s48] sm:$0xf]
  %v50 = vld [vmem:[%s48 + $0x4] sm:$0xf]
  %v51 = vld [vmem:[%s48 + $0x8] sm:$0xf]
  %v52 = vld [vmem:[%s48 + $0xc] sm:$0xf]
  %v53 = vld [vmem:[%s48 + $0x10] sm:$0xf]
  %v54 = vld [vmem:[%s48 + $0x14] sm:$0xf]
  %v55 = vld [vmem:[%s48 + $0x18] sm:$0xf]
  %v56 = vld [vmem:[%s48 + $0x1c] sm:$0xf]
  %v57 = vld [vmem:[%s48 + $0x20] sm:$0xf]
  %v58 = vld [vmem:[%s48 + $0x24] sm:$0xf]
  %v59 = vld [vmem:[%s48 + $0x28] sm:$0xf]
  %v60 = vld [vmem:[%s48 + $0x2c] sm:$0xf]
  %v61 = vld [vmem:[%s48 + $0x30] sm:$0xf]
  %v62 = vld [vmem:[%s48 + $0x34] sm:$0xf]
  %v63 = vld [vmem:[%s48 + $0x38] sm:$0xf]
  %v64 = vld [vmem:[%s48 + $0x3c] sm:$0xf]
  %v65 = vld [vmem:[%s48 + $0x40] sm:$0xf]
  %v66 = vld [vmem:[%s48 + $0x44] sm:$0xf]
  %v67 = vld [vmem:[%s48 + $0x48] sm:$0xf]
  %v68 = vld [vmem:[%s48 + $0x4c] sm:$0xf]
  %v69 = vld [vmem:[%s48 + $0x50] sm:$0xf]
  %v70 = vld [vmem:[%s48 + $0x54] sm:$0xf]
  %v71 = vld [vmem:[%s48 + $0x58] sm:$0xf]
  %v72 = vld [vmem:[%s48 + $0x5c] sm:$0xf]
  %v73 = vld [vmem:[%s48 + $0x60] sm:$0xf]
  %v74 = vld [vmem:[%s48 + $0x64] sm:$0xf]
  %v75 = vld [vmem:[%s48 + $0x68] sm:$0xf]
  %v76 = vld [vmem:[%s48 + $0x6c] sm:$0xf]
  %v77 = vld [vmem:[%s48 + $0x70] sm:$0xf]
  %v78 = vld [vmem:[%s48 + $0x74] sm:$0xf]
  %v79 = vld [vmem:[%s48 + $0x78] sm:$0xf]
  %v80 = vld [vmem:[%s48 + $0x7c] sm:$0xf]
  %v82 = vunpack.c.l.b16 %v47
  %v83 = vunpack.c.h.b16 %v47
  %v84 = vpack.c.b16 %v82, %v82
  %v85 = vpack.c.b16 %v83, %v83
  %v87 = vshrl.u32 %v84, 16
  %v89 = vshll.u32 %v84, 16
  %v91 = vrot.slane %v89, 1
  %v92 = vor.u32 %v87, %v91
  %v94 = vshrl.u32 %v85, 16
  %v96 = vshll.u32 %v85, 16
  %v98 = vrot.slane %v96, 1
  %v99 = vor.u32 %v94, %v98
  %v134 = vunpack.c.l.b16 %v49
  %v135 = vunpack.c.l.b16 %v50
  %v136 = vunpack.c.l.b16 %v51
  %v137 = vunpack.c.l.b16 %v52
  %v138 = vunpack.c.l.b16 %v53
  %v139 = vunpack.c.l.b16 %v54
  %v140 = vunpack.c.l.b16 %v55
  %v141 = vunpack.c.l.b16 %v56
  %v142 = vunpack.c.l.b16 %v57
  %v143 = vunpack.c.l.b16 %v58
  %v144 = vunpack.c.l.b16 %v59
  %v145 = vunpack.c.l.b16 %v60
  %v146 = vunpack.c.l.b16 %v61
  %v147 = vunpack.c.l.b16 %v62
  %v148 = vunpack.c.l.b16 %v63
  %v149 = vunpack.c.l.b16 %v64
  %v150 = vunpack.c.l.b16 %v65
  %v151 = vunpack.c.l.b16 %v66
  %v152 = vunpack.c.l.b16 %v67
  %v153 = vunpack.c.l.b16 %v68
  %v154 = vunpack.c.l.b16 %v69
  %v155 = vunpack.c.l.b16 %v70
  %v156 = vunpack.c.l.b16 %v71
  %v157 = vunpack.c.l.b16 %v72
  %v158 = vunpack.c.l.b16 %v73
  %v159 = vunpack.c.l.b16 %v74
  %v160 = vunpack.c.l.b16 %v75
  %v161 = vunpack.c.l.b16 %v76
  %v162 = vunpack.c.l.b16 %v77
  %v163 = vunpack.c.l.b16 %v78
  %v164 = vunpack.c.l.b16 %v79
  %v165 = vunpack.c.l.b16 %v80
  %v166 = vpack.c.b16 %v135, %v134
  %v167 = vpack.c.b16 %v137, %v136
  %v168 = vpack.c.b16 %v139, %v138
  %v169 = vpack.c.b16 %v141, %v140
  %v170 = vpack.c.b16 %v143, %v142
  %v171 = vpack.c.b16 %v145, %v144
  %v172 = vpack.c.b16 %v147, %v146
  %v173 = vpack.c.b16 %v149, %v148
  %v174 = vpack.c.b16 %v151, %v150
  %v175 = vpack.c.b16 %v153, %v152
  %v176 = vpack.c.b16 %v155, %v154
  %v177 = vpack.c.b16 %v157, %v156
  %v178 = vpack.c.b16 %v159, %v158
  %v179 = vpack.c.b16 %v161, %v160
  %v180 = vpack.c.b16 %v163, %v162
  %v181 = vpack.c.b16 %v165, %v164
  %198 = vmatpush.bf16.msra.mxu0 %v173
  %199 = vmatpush.bf16.msra.mxu0 %v172
  %200 = vmatpush.bf16.msra.mxu0 %v171
  %201 = vmatpush.bf16.msra.mxu0 %v170
  %202 = vmatpush.bf16.msra.mxu0 %v169
  %203 = vmatpush.bf16.msra.mxu0 %v168
  %204 = vmatpush.bf16.msra.mxu0 %v167
  %205 = vmatpush.bf16.msra.mxu0 %v166
  %206 = vmatmul.bf16.gmra.mxu0 %v92
  %v207 = vpop.f32.mrf.mxu0
  %v208 = vadd.f32 0.0, %v207
  %v209 = vpop.f32.mrf.mxu0
  %210 = vdwg.mxu0
  %211 = vmatpush.bf16.msra.mxu0 %v181
  %212 = vmatpush.bf16.msra.mxu0 %v180
  %213 = vmatpush.bf16.msra.mxu0 %v179
  %214 = vmatpush.bf16.msra.mxu0 %v178
  %215 = vmatpush.bf16.msra.mxu0 %v177
  %216 = vmatpush.bf16.msra.mxu0 %v176
  %217 = vmatpush.bf16.msra.mxu0 %v175
  %218 = vmatpush.bf16.msra.mxu0 %v174
  %219 = vmatmul.bf16.gmra.mxu0 %v99
  %v220 = vpop.f32.mrf.mxu0
  %v221 = vadd.f32 %v208, %v220
  %v222 = vpop.f32.mrf.mxu0
  %223 = vdwg.mxu0
  %v225 = vunpack.c.l.b16 %v14
  %v226 = vunpack.c.h.b16 %v14
  %v227 = vpack.c.b16 %v225, %v225
  %v228 = vpack.c.b16 %v226, %v226
  %v263 = vunpack.c.l.b16 %v15
  %v264 = vunpack.c.l.b16 %v16
  %v265 = vunpack.c.l.b16 %v17
  %v266 = vunpack.c.l.b16 %v18
  %v267 = vunpack.c.l.b16 %v19
  %v268 = vunpack.c.l.b16 %v20
  %v269 = vunpack.c.l.b16 %v21
  %v270 = vunpack.c.l.b16 %v22
  %v271 = vunpack.c.l.b16 %v23
  %v272 = vunpack.c.l.b16 %v24
  %v273 = vunpack.c.l.b16 %v25
  %v274 = vunpack.c.l.b16 %v26
  %v275 = vunpack.c.l.b16 %v27
  %v276 = vunpack.c.l.b16 %v28
  %v277 = vunpack.c.l.b16 %v29
  %v278 = vunpack.c.l.b16 %v30
  %v279 = vunpack.c.l.b16 %v31
  %v280 = vunpack.c.l.b16 %v32
  %v281 = vunpack.c.l.b16 %v33
  %v282 = vunpack.c.l.b16 %v34
  %v283 = vunpack.c.l.b16 %v35
  %v284 = vunpack.c.l.b16 %v36
  %v285 = vunpack.c.l.b16 %v37
  %v286 = vunpack.c.l.b16 %v38
  %v287 = vunpack.c.l.b16 %v39
  %v288 = vunpack.c.l.b16 %v40
  %v289 = vunpack.c.l.b16 %v41
  %v290 = vunpack.c.l.b16 %v42
  %v291 = vunpack.c.l.b16 %v43
  %v292 = vunpack.c.l.b16 %v44
  %v293 = vunpack.c.l.b16 %v45
  %v294 = vunpack.c.l.b16 %v46
  %v295 = vpack.c.b16 %v264, %v263
  %v296 = vpack.c.b16 %v266, %v265
  %v297 = vpack.c.b16 %v268, %v267
  %v298 = vpack.c.b16 %v270, %v269
  %v299 = vpack.c.b16 %v272, %v271
  %v300 = vpack.c.b16 %v274, %v273
  %v301 = vpack.c.b16 %v276, %v275
  %v302 = vpack.c.b16 %v278, %v277
  %v303 = vpack.c.b16 %v280, %v279
  %v304 = vpack.c.b16 %v282, %v281
  %v305 = vpack.c.b16 %v284, %v283
  %v306 = vpack.c.b16 %v286, %v285
  %v307 = vpack.c.b16 %v288, %v287
  %v308 = vpack.c.b16 %v290, %v289
  %v309 = vpack.c.b16 %v292, %v291
  %v310 = vpack.c.b16 %v294, %v293
  %327 = vmatpush.bf16.msra.mxu0 %v302
  %328 = vmatpush.bf16.msra.mxu0 %v301
  %329 = vmatpush.bf16.msra.mxu0 %v300
  %330 = vmatpush.bf16.msra.mxu0 %v299
  %331 = vmatpush.bf16.msra.mxu0 %v298
  %332 = vmatpush.bf16.msra.mxu0 %v297
  %333 = vmatpush.bf16.msra.mxu0 %v296
  %334 = vmatpush.bf16.msra.mxu0 %v295
  %335 = vmatmul.bf16.gmra.mxu0 %v227
  %v336 = vpop.f32.mrf.mxu0
  %v337 = vadd.f32 %v221, %v336
  %v338 = vpop.f32.mrf.mxu0
  %339 = vdwg.mxu0
  %340 = vmatpush.bf16.msra.mxu0 %v310
  %341 = vmatpush.bf16.msra.mxu0 %v309
  %342 = vmatpush.bf16.msra.mxu0 %v308
  %343 = vmatpush.bf16.msra.mxu0 %v307
  %344 = vmatpush.bf16.msra.mxu0 %v306
  %345 = vmatpush.bf16.msra.mxu0 %v305
  %346 = vmatpush.bf16.msra.mxu0 %v304
  %347 = vmatpush.bf16.msra.mxu0 %v303
  %348 = vmatmul.bf16.gmra.mxu0 %v228
  %v349 = vpop.f32.mrf.mxu0
  %v350 = vadd.f32 %v337, %v349
  %v351 = vpop.f32.mrf.mxu0
  %352 = vdwg.mxu0
  %v353 = vld [vmem:[%s0] sm:$0x66]
  %s354 = scalar_lea.vmem %s1, 256
  %v355 = vld [vmem:[%s354] sm:$0xf]
  %v356 = vld [vmem:[%s354 + $0x4] sm:$0xf]
  %v357 = vld [vmem:[%s354 + $0x8] sm:$0xf]
  %v358 = vld [vmem:[%s354 + $0xc] sm:$0xf]
  %v359 = vld [vmem:[%s354 + $0x10] sm:$0xf]
  %v360 = vld [vmem:[%s354 + $0x14] sm:$0xf]
  %v361 = vld [vmem:[%s354 + $0x18] sm:$0xf]
  %v362 = vld [vmem:[%s354 + $0x1c] sm:$0xf]
  %v363 = vld [vmem:[%s354 + $0x20] sm:$0xf]
  %v364 = vld [vmem:[%s354 + $0x24] sm:$0xf]
  %v365 = vld [vmem:[%s354 + $0x28] sm:$0xf]
  %v366 = vld [vmem:[%s354 + $0x2c] sm:$0xf]
  %v367 = vld [vmem:[%s354 + $0x30] sm:$0xf]
  %v368 = vld [vmem:[%s354 + $0x34] sm:$0xf]
  %v369 = vld [vmem:[%s354 + $0x38] sm:$0xf]
  %v370 = vld [vmem:[%s354 + $0x3c] sm:$0xf]
  %v371 = vld [vmem:[%s354 + $0x40] sm:$0xf]
  %v372 = vld [vmem:[%s354 + $0x44] sm:$0xf]
  %v373 = vld [vmem:[%s354 + $0x48] sm:$0xf]
  %v374 = vld [vmem:[%s354 + $0x4c] sm:$0xf]
  %v375 = vld [vmem:[%s354 + $0x50] sm:$0xf]
  %v376 = vld [vmem:[%s354 + $0x54] sm:$0xf]
  %v377 = vld [vmem:[%s354 + $0x58] sm:$0xf]
  %v378 = vld [vmem:[%s354 + $0x5c] sm:$0xf]
  %v379 = vld [vmem:[%s354 + $0x60] sm:$0xf]
  %v380 = vld [vmem:[%s354 + $0x64] sm:$0xf]
  %v381 = vld [vmem:[%s354 + $0x68] sm:$0xf]
  %v382 = vld [vmem:[%s354 + $0x6c] sm:$0xf]
  %v383 = vld [vmem:[%s354 + $0x70] sm:$0xf]
  %v384 = vld [vmem:[%s354 + $0x74] sm:$0xf]
  %v385 = vld [vmem:[%s354 + $0x78] sm:$0xf]
  %v386 = vld [vmem:[%s354 + $0x7c] sm:$0xf]
  %v388 = vunpack.c.l.b16 %v353
  %v389 = vunpack.c.h.b16 %v353
  %v390 = vpack.c.b16 %v388, %v388
  %v391 = vpack.c.b16 %v389, %v389
  %v392 = vrot.slane %v390, 1
  %v393 = vrot.slane %v391, 1
  %v428 = vunpack.c.l.b16 %v355
  %v429 = vunpack.c.l.b16 %v356
  %v430 = vunpack.c.l.b16 %v357
  %v431 = vunpack.c.l.b16 %v358
  %v432 = vunpack.c.l.b16 %v359
  %v433 = vunpack.c.l.b16 %v360
  %v434 = vunpack.c.l.b16 %v361
  %v435 = vunpack.c.l.b16 %v362
  %v436 = vunpack.c.l.b16 %v363
  %v437 = vunpack.c.l.b16 %v364
  %v438 = vunpack.c.l.b16 %v365
  %v439 = vunpack.c.l.b16 %v366
  %v440 = vunpack.c.l.b16 %v367
  %v441 = vunpack.c.l.b16 %v368
  %v442 = vunpack.c.l.b16 %v369
  %v443 = vunpack.c.l.b16 %v370
  %v444 = vunpack.c.l.b16 %v371
  %v445 = vunpack.c.l.b16 %v372
  %v446 = vunpack.c.l.b16 %v373
  %v447 = vunpack.c.l.b16 %v374
  %v448 = vunpack.c.l.b16 %v375
  %v449 = vunpack.c.l.b16 %v376
  %v450 = vunpack.c.l.b16 %v377
  %v451 = vunpack.c.l.b16 %v378
  %v452 = vunpack.c.l.b16 %v379
  %v453 = vunpack.c.l.b16 %v380
  %v454 = vunpack.c.l.b16 %v381
  %v455 = vunpack.c.l.b16 %v382
  %v456 = vunpack.c.l.b16 %v383
  %v457 = vunpack.c.l.b16 %v384
  %v458 = vunpack.c.l.b16 %v385
  %v459 = vunpack.c.l.b16 %v386
  %v460 = vpack.c.b16 %v429, %v428
  %v461 = vpack.c.b16 %v431, %v430
  %v462 = vpack.c.b16 %v433, %v432
  %v463 = vpack.c.b16 %v435, %v434
  %v464 = vpack.c.b16 %v437, %v436
  %v465 = vpack.c.b16 %v439, %v438
  %v466 = vpack.c.b16 %v441, %v440
  %v467 = vpack.c.b16 %v443, %v442
  %v468 = vpack.c.b16 %v445, %v444
  %v469 = vpack.c.b16 %v447, %v446
  %v470 = vpack.c.b16 %v449, %v448
  %v471 = vpack.c.b16 %v451, %v450
  %v472 = vpack.c.b16 %v453, %v452
  %v473 = vpack.c.b16 %v455, %v454
  %v474 = vpack.c.b16 %v457, %v456
  %v475 = vpack.c.b16 %v459, %v458
  %492 = vmatpush.bf16.msra.mxu0 %v467
  %493 = vmatpush.bf16.msra.mxu0 %v466
  %494 = vmatpush.bf16.msra.mxu0 %v465
  %495 = vmatpush.bf16.msra.mxu0 %v464
  %496 = vmatpush.bf16.msra.mxu0 %v463
  %497 = vmatpush.bf16.msra.mxu0 %v462
  %498 = vmatpush.bf16.msra.mxu0 %v461
  %499 = vmatpush.bf16.msra.mxu0 %v460
  %500 = vmatmul.bf16.gmra.mxu0 %v392
  %v501 = vpop.f32.mrf.mxu0
  %v502 = vadd.f32 0.0, %v501
  %v503 = vpop.f32.mrf.mxu0
  %504 = vdwg.mxu0
  %505 = vmatpush.bf16.msra.mxu0 %v475
  %506 = vmatpush.bf16.msra.mxu0 %v474
  %507 = vmatpush.bf16.msra.mxu0 %v473
  %508 = vmatpush.bf16.msra.mxu0 %v472
  %509 = vmatpush.bf16.msra.mxu0 %v471
  %510 = vmatpush.bf16.msra.mxu0 %v470
  %511 = vmatpush.bf16.msra.mxu0 %v469
  %512 = vmatpush.bf16.msra.mxu0 %v468
  %513 = vmatmul.bf16.gmra.mxu0 %v393
  %v514 = vpop.f32.mrf.mxu0
  %v515 = vadd.f32 %v502, %v514
  %v516 = vpop.f32.mrf.mxu0
  %517 = vdwg.mxu0
  %v518 = vadd.f32 %v350, %v515
  %v519 = vld [vmem:[%s2] sm:$0x1]
  %v521 = vperm.slane %v519, 0
  %v523 = vadd.f32 %v518, %v521
  %v524 = vmax.f32 %v523, 0.0
  %v525 = vpack.c.bf16 %v524, %v524
  %526 = vst [vmem:[%s3] sm:$0x3] %v525
  %s527 = scalar_lea.vmem %s0, 8
  %v528 = vld [vmem:[%s527] sm:$0x33]
  %v529 = vld [vmem:[%s1] sm:$0xf]
  %v530 = vld [vmem:[%s1 + $0x4] sm:$0xf]
  %v531 = vld [vmem:[%s1 + $0x8] sm:$0xf]
  %v532 = vld [vmem:[%s1 + $0xc] sm:$0xf]
  %v533 = vld [vmem:[%s1 + $0x10] sm:$0xf]
  %v534 = vld [vmem:[%s1 + $0x14] sm:$0xf]
  %v535 = vld [vmem:[%s1 + $0x18] sm:$0xf]
  %v536 = vld [vmem:[%s1 + $0x1c] sm:$0xf]
  %v537 = vld [vmem:[%s1 + $0x20] sm:$0xf]
  %v538 = vld [vmem:[%s1 + $0x24] sm:$0xf]
  %v539 = vld [vmem:[%s1 + $0x28] sm:$0xf]
  %v540 = vld [vmem:[%s1 + $0x2c] sm:$0xf]
  %v541 = vld [vmem:[%s1 + $0x30] sm:$0xf]
  %v542 = vld [vmem:[%s1 + $0x34] sm:$0xf]
  %v543 = vld [vmem:[%s1 + $0x38] sm:$0xf]
  %v544 = vld [vmem:[%s1 + $0x3c] sm:$0xf]
  %v545 = vld [vmem:[%s1 + $0x40] sm:$0xf]
  %v546 = vld [vmem:[%s1 + $0x44] sm:$0xf]
  %v547 = vld [vmem:[%s1 + $0x48] sm:$0xf]
  %v548 = vld [vmem:[%s1 + $0x4c] sm:$0xf]
  %v549 = vld [vmem:[%s1 + $0x50] sm:$0xf]
  %v550 = vld [vmem:[%s1 + $0x54] sm:$0xf]
  %v551 = vld [vmem:[%s1 + $0x58] sm:$0xf]
  %v552 = vld [vmem:[%s1 + $0x5c] sm:$0xf]
  %v553 = vld [vmem:[%s1 + $0x60] sm:$0xf]
  %v554 = vld [vmem:[%s1 + $0x64] sm:$0xf]
  %v555 = vld [vmem:[%s1 + $0x68] sm:$0xf]
  %v556 = vld [vmem:[%s1 + $0x6c] sm:$0xf]
  %v557 = vld [vmem:[%s1 + $0x70] sm:$0xf]
  %v558 = vld [vmem:[%s1 + $0x74] sm:$0xf]
  %v559 = vld [vmem:[%s1 + $0x78] sm:$0xf]
  %v560 = vld [vmem:[%s1 + $0x7c] sm:$0xf]
  %v561 = vld [vmem:[%s527] sm:$0x77]
  %v562 = vld [vmem:[%s48] sm:$0xf]
  %v563 = vld [vmem:[%s48 + $0x4] sm:$0xf]
  %v564 = vld [vmem:[%s48 + $0x8] sm:$0xf]
  %v565 = vld [vmem:[%s48 + $0xc] sm:$0xf]
  %v566 = vld [vmem:[%s48 + $0x10] sm:$0xf]
  %v567 = vld [vmem:[%s48 + $0x14] sm:$0xf]
  %v568 = vld [vmem:[%s48 + $0x18] sm:$0xf]
  %v569 = vld [vmem:[%s48 + $0x1c] sm:$0xf]
  %v570 = vld [vmem:[%s48 + $0x20] sm:$0xf]
  %v571 = vld [vmem:[%s48 + $0x24] sm:$0xf]
  %v572 = vld [vmem:[%s48 + $0x28] sm:$0xf]
  %v573 = vld [vmem:[%s48 + $0x2c] sm:$0xf]
  %v574 = vld [vmem:[%s48 + $0x30] sm:$0xf]
  %v575 = vld [vmem:[%s48 + $0x34] sm:$0xf]
  %v576 = vld [vmem:[%s48 + $0x38] sm:$0xf]
  %v577 = vld [vmem:[%s48 + $0x3c] sm:$0xf]
  %v578 = vld [vmem:[%s48 + $0x40] sm:$0xf]
  %v579 = vld [vmem:[%s48 + $0x44] sm:$0xf]
  %v580 = vld [vmem:[%s48 + $0x48] sm:$0xf]
  %v581 = vld [vmem:[%s48 + $0x4c] sm:$0xf]
  %v582 = vld [vmem:[%s48 + $0x50] sm:$0xf]
  %v583 = vld [vmem:[%s48 + $0x54] sm:$0xf]
  %v584 = vld [vmem:[%s48 + $0x58] sm:$0xf]
  %v585 = vld [vmem:[%s48 + $0x5c] sm:$0xf]
  %v586 = vld [vmem:[%s48 + $0x60] sm:$0xf]
  %v587 = vld [vmem:[%s48 + $0x64] sm:$0xf]
  %v588 = vld [vmem:[%s48 + $0x68] sm:$0xf]
  %v589 = vld [vmem:[%s48 + $0x6c] sm:$0xf]
  %v590 = vld [vmem:[%s48 + $0x70] sm:$0xf]
  %v591 = vld [vmem:[%s48 + $0x74] sm:$0xf]
  %v592 = vld [vmem:[%s48 + $0x78] sm:$0xf]
  %v593 = vld [vmem:[%s48 + $0x7c] sm:$0xf]
  %v595 = vunpack.c.l.b16 %v561
  %v596 = vunpack.c.h.b16 %v561
  %v597 = vpack.c.b16 %v595, %v595
  %v598 = vpack.c.b16 %v596, %v596
  %v600 = vshrl.u32 %v597, 16
  %v602 = vshll.u32 %v597, 16
  %v604 = vrot.slane %v602, 1
  %v605 = vor.u32 %v600, %v604
  %v607 = vshrl.u32 %v598, 16
  %v609 = vshll.u32 %v598, 16
  %v611 = vrot.slane %v609, 1
  %v612 = vor.u32 %v607, %v611
  %v647 = vunpack.c.l.b16 %v562
  %v648 = vunpack.c.l.b16 %v563
  %v649 = vunpack.c.l.b16 %v564
  %v650 = vunpack.c.l.b16 %v565
  %v651 = vunpack.c.l.b16 %v566
  %v652 = vunpack.c.l.b16 %v567
  %v653 = vunpack.c.l.b16 %v568
  %v654 = vunpack.c.l.b16 %v569
  %v655 = vunpack.c.l.b16 %v570
  %v656 = vunpack.c.l.b16 %v571
  %v657 = vunpack.c.l.b16 %v572
  %v658 = vunpack.c.l.b16 %v573
  %v659 = vunpack.c.l.b16 %v574
  %v660 = vunpack.c.l.b16 %v575
  %v661 = vunpack.c.l.b16 %v576
  %v662 = vunpack.c.l.b16 %v577
  %v663 = vunpack.c.l.b16 %v578
  %v664 = vunpack.c.l.b16 %v579
  %v665 = vunpack.c.l.b16 %v580
  %v666 = vunpack.c.l.b16 %v581
  %v667 = vunpack.c.l.b16 %v582
  %v668 = vunpack.c.l.b16 %v583
  %v669 = vunpack.c.l.b16 %v584
  %v670 = vunpack.c.l.b16 %v585
  %v671 = vunpack.c.l.b16 %v586
  %v672 = vunpack.c.l.b16 %v587
  %v673 = vunpack.c.l.b16 %v588
  %v674 = vunpack.c.l.b16 %v589
  %v675 = vunpack.c.l.b16 %v590
  %v676 = vunpack.c.l.b16 %v591
  %v677 = vunpack.c.l.b16 %v592
  %v678 = vunpack.c.l.b16 %v593
  %v679 = vpack.c.b16 %v648, %v647
  %v680 = vpack.c.b16 %v650, %v649
  %v681 = vpack.c.b16 %v652, %v651
  %v682 = vpack.c.b16 %v654, %v653
  %v683 = vpack.c.b16 %v656, %v655
  %v684 = vpack.c.b16 %v658, %v657
  %v685 = vpack.c.b16 %v660, %v659
  %v686 = vpack.c.b16 %v662, %v661
  %v687 = vpack.c.b16 %v664, %v663
  %v688 = vpack.c.b16 %v666, %v665
  %v689 = vpack.c.b16 %v668, %v667
  %v690 = vpack.c.b16 %v670, %v669
  %v691 = vpack.c.b16 %v672, %v671
  %v692 = vpack.c.b16 %v674, %v673
  %v693 = vpack.c.b16 %v676, %v675
  %v694 = vpack.c.b16 %v678, %v677
  %711 = vmatpush.bf16.msra.mxu0 %v686
  %712 = vmatpush.bf16.msra.mxu0 %v685
  %713 = vmatpush.bf16.msra.mxu0 %v684
  %714 = vmatpush.bf16.msra.mxu0 %v683
  %715 = vmatpush.bf16.msra.mxu0 %v682
  %716 = vmatpush.bf16.msra.mxu0 %v681
  %717 = vmatpush.bf16.msra.mxu0 %v680
  %718 = vmatpush.bf16.msra.mxu0 %v679
  %719 = vmatmul.bf16.gmra.mxu0 %v605
  %v720 = vpop.f32.mrf.mxu0
  %v721 = vadd.f32 0.0, %v720
  %v722 = vpop.f32.mrf.mxu0
  %723 = vdwg.mxu0
  %724 = vmatpush.bf16.msra.mxu0 %v694
  %725 = vmatpush.bf16.msra.mxu0 %v693
  %726 = vmatpush.bf16.msra.mxu0 %v692
  %727 = vmatpush.bf16.msra.mxu0 %v691
  %728 = vmatpush.bf16.msra.mxu0 %v690
  %729 = vmatpush.bf16.msra.mxu0 %v689
  %730 = vmatpush.bf16.msra.mxu0 %v688
  %731 = vmatpush.bf16.msra.mxu0 %v687
  %732 = vmatmul.bf16.gmra.mxu0 %v612
  %v733 = vpop.f32.mrf.mxu0
  %v734 = vadd.f32 %v721, %v733
  %v735 = vpop.f32.mrf.mxu0
  %736 = vdwg.mxu0
  %v738 = vunpack.c.l.b16 %v528
  %v739 = vunpack.c.h.b16 %v528
  %v740 = vpack.c.b16 %v738, %v738
  %v741 = vpack.c.b16 %v739, %v739
  %v776 = vunpack.c.l.b16 %v529
  %v777 = vunpack.c.l.b16 %v530
  %v778 = vunpack.c.l.b16 %v531
  %v779 = vunpack.c.l.b16 %v532
  %v780 = vunpack.c.l.b16 %v533
  %v781 = vunpack.c.l.b16 %v534
  %v782 = vunpack.c.l.b16 %v535
  %v783 = vunpack.c.l.b16 %v536
  %v784 = vunpack.c.l.b16 %v537
  %v785 = vunpack.c.l.b16 %v538
  %v786 = vunpack.c.l.b16 %v539
  %v787 = vunpack.c.l.b16 %v540
  %v788 = vunpack.c.l.b16 %v541
  %v789 = vunpack.c.l.b16 %v542
  %v790 = vunpack.c.l.b16 %v543
  %v791 = vunpack.c.l.b16 %v544
  %v792 = vunpack.c.l.b16 %v545
  %v793 = vunpack.c.l.b16 %v546
  %v794 = vunpack.c.l.b16 %v547
  %v795 = vunpack.c.l.b16 %v548
  %v796 = vunpack.c.l.b16 %v549
  %v797 = vunpack.c.l.b16 %v550
  %v798 = vunpack.c.l.b16 %v551
  %v799 = vunpack.c.l.b16 %v552
  %v800 = vunpack.c.l.b16 %v553
  %v801 = vunpack.c.l.b16 %v554
  %v802 = vunpack.c.l.b16 %v555
  %v803 = vunpack.c.l.b16 %v556
  %v804 = vunpack.c.l.b16 %v557
  %v805 = vunpack.c.l.b16 %v558
  %v806 = vunpack.c.l.b16 %v559
  %v807 = vunpack.c.l.b16 %v560
  %v808 = vpack.c.b16 %v777, %v776
  %v809 = vpack.c.b16 %v779, %v778
  %v810 = vpack.c.b16 %v781, %v780
  %v811 = vpack.c.b16 %v783, %v782
  %v812 = vpack.c.b16 %v785, %v784
  %v813 = vpack.c.b16 %v787, %v786
  %v814 = vpack.c.b16 %v789, %v788
  %v815 = vpack.c.b16 %v791, %v790
  %v816 = vpack.c.b16 %v793, %v792
  %v817 = vpack.c.b16 %v795, %v794
  %v818 = vpack.c.b16 %v797, %v796
  %v819 = vpack.c.b16 %v799, %v798
  %v820 = vpack.c.b16 %v801, %v800
  %v821 = vpack.c.b16 %v803, %v802
  %v822 = vpack.c.b16 %v805, %v804
  %v823 = vpack.c.b16 %v807, %v806
  %840 = vmatpush.bf16.msra.mxu0 %v815
  %841 = vmatpush.bf16.msra.mxu0 %v814
  %842 = vmatpush.bf16.msra.mxu0 %v813
  %843 = vmatpush.bf16.msra.mxu0 %v812
  %844 = vmatpush.bf16.msra.mxu0 %v811
  %845 = vmatpush.bf16.msra.mxu0 %v810
  %846 = vmatpush.bf16.msra.mxu0 %v809
  %847 = vmatpush.bf16.msra.mxu0 %v808
  %848 = vmatmul.bf16.gmra.mxu0 %v740
  %v849 = vpop.f32.mrf.mxu0
  %v850 = vadd.f32 %v734, %v849
  %v851 = vpop.f32.mrf.mxu0
  %852 = vdwg.mxu0
  %853 = vmatpush.bf16.msra.mxu0 %v823
  %854 = vmatpush.bf16.msra.mxu0 %v822
  %855 = vmatpush.bf16.msra.mxu0 %v821
  %856 = vmatpush.bf16.msra.mxu0 %v820
  %857 = vmatpush.bf16.msra.mxu0 %v819
  %858 = vmatpush.bf16.msra.mxu0 %v818
  %859 = vmatpush.bf16.msra.mxu0 %v817
  %860 = vmatpush.bf16.msra.mxu0 %v816
  %861 = vmatmul.bf16.gmra.mxu0 %v741
  %v862 = vpop.f32.mrf.mxu0
  %v863 = vadd.f32 %v850, %v862
  %v864 = vpop.f32.mrf.mxu0
  %865 = vdwg.mxu0
  %v866 = vld [vmem:[%s527] sm:$0x66]
  %v867 = vld [vmem:[%s354] sm:$0xf]
  %v868 = vld [vmem:[%s354 + $0x4] sm:$0xf]
  %v869 = vld [vmem:[%s354 + $0x8] sm:$0xf]
  %v870 = vld [vmem:[%s354 + $0xc] sm:$0xf]
  %v871 = vld [vmem:[%s354 + $0x10] sm:$0xf]
  %v872 = vld [vmem:[%s354 + $0x14] sm:$0xf]
  %v873 = vld [vmem:[%s354 + $0x18] sm:$0xf]
  %v874 = vld [vmem:[%s354 + $0x1c] sm:$0xf]
  %v875 = vld [vmem:[%s354 + $0x20] sm:$0xf]
  %v876 = vld [vmem:[%s354 + $0x24] sm:$0xf]
  %v877 = vld [vmem:[%s354 + $0x28] sm:$0xf]
  %v878 = vld [vmem:[%s354 + $0x2c] sm:$0xf]
  %v879 = vld [vmem:[%s354 + $0x30] sm:$0xf]
  %v880 = vld [vmem:[%s354 + $0x34] sm:$0xf]
  %v881 = vld [vmem:[%s354 + $0x38] sm:$0xf]
  %v882 = vld [vmem:[%s354 + $0x3c] sm:$0xf]
  %v883 = vld [vmem:[%s354 + $0x40] sm:$0xf]
  %v884 = vld [vmem:[%s354 + $0x44] sm:$0xf]
  %v885 = vld [vmem:[%s354 + $0x48] sm:$0xf]
  %v886 = vld [vmem:[%s354 + $0x4c] sm:$0xf]
  %v887 = vld [vmem:[%s354 + $0x50] sm:$0xf]
  %v888 = vld [vmem:[%s354 + $0x54] sm:$0xf]
  %v889 = vld [vmem:[%s354 + $0x58] sm:$0xf]
  %v890 = vld [vmem:[%s354 + $0x5c] sm:$0xf]
  %v891 = vld [vmem:[%s354 + $0x60] sm:$0xf]
  %v892 = vld [vmem:[%s354 + $0x64] sm:$0xf]
  %v893 = vld [vmem:[%s354 + $0x68] sm:$0xf]
  %v894 = vld [vmem:[%s354 + $0x6c] sm:$0xf]
  %v895 = vld [vmem:[%s354 + $0x70] sm:$0xf]
  %v896 = vld [vmem:[%s354 + $0x74] sm:$0xf]
  %v897 = vld [vmem:[%s354 + $0x78] sm:$0xf]
  %v898 = vld [vmem:[%s354 + $0x7c] sm:$0xf]
  %v900 = vunpack.c.l.b16 %v866
  %v901 = vunpack.c.h.b16 %v866
  %v902 = vpack.c.b16 %v900, %v900
  %v903 = vpack.c.b16 %v901, %v901
  %v904 = vrot.slane %v902, 1
  %v905 = vrot.slane %v903, 1
  %v940 = vunpack.c.l.b16 %v867
  %v941 = vunpack.c.l.b16 %v868
  %v942 = vunpack.c.l.b16 %v869
  %v943 = vunpack.c.l.b16 %v870
  %v944 = vunpack.c.l.b16 %v871
  %v945 = vunpack.c.l.b16 %v872
  %v946 = vunpack.c.l.b16 %v873
  %v947 = vunpack.c.l.b16 %v874
  %v948 = vunpack.c.l.b16 %v875
  %v949 = vunpack.c.l.b16 %v876
  %v950 = vunpack.c.l.b16 %v877
  %v951 = vunpack.c.l.b16 %v878
  %v952 = vunpack.c.l.b16 %v879
  %v953 = vunpack.c.l.b16 %v880
  %v954 = vunpack.c.l.b16 %v881
  %v955 = vunpack.c.l.b16 %v882
  %v956 = vunpack.c.l.b16 %v883
  %v957 = vunpack.c.l.b16 %v884
  %v958 = vunpack.c.l.b16 %v885
  %v959 = vunpack.c.l.b16 %v886
  %v960 = vunpack.c.l.b16 %v887
  %v961 = vunpack.c.l.b16 %v888
  %v962 = vunpack.c.l.b16 %v889
  %v963 = vunpack.c.l.b16 %v890
  %v964 = vunpack.c.l.b16 %v891
  %v965 = vunpack.c.l.b16 %v892
  %v966 = vunpack.c.l.b16 %v893
  %v967 = vunpack.c.l.b16 %v894
  %v968 = vunpack.c.l.b16 %v895
  %v969 = vunpack.c.l.b16 %v896
  %v970 = vunpack.c.l.b16 %v897
  %v971 = vunpack.c.l.b16 %v898
  %v972 = vpack.c.b16 %v941, %v940
  %v973 = vpack.c.b16 %v943, %v942
  %v974 = vpack.c.b16 %v945, %v944
  %v975 = vpack.c.b16 %v947, %v946
  %v976 = vpack.c.b16 %v949, %v948
  %v977 = vpack.c.b16 %v951, %v950
  %v978 = vpack.c.b16 %v953, %v952
  %v979 = vpack.c.b16 %v955, %v954
  %v980 = vpack.c.b16 %v957, %v956
  %v981 = vpack.c.b16 %v959, %v958
  %v982 = vpack.c.b16 %v961, %v960
  %v983 = vpack.c.b16 %v963, %v962
  %v984 = vpack.c.b16 %v965, %v964
  %v985 = vpack.c.b16 %v967, %v966
  %v986 = vpack.c.b16 %v969, %v968
  %v987 = vpack.c.b16 %v971, %v970
  %1004 = vmatpush.bf16.msra.mxu0 %v979
  %1005 = vmatpush.bf16.msra.mxu0 %v978
  %1006 = vmatpush.bf16.msra.mxu0 %v977
  %1007 = vmatpush.bf16.msra.mxu0 %v976
  %1008 = vmatpush.bf16.msra.mxu0 %v975
  %1009 = vmatpush.bf16.msra.mxu0 %v974
  %1010 = vmatpush.bf16.msra.mxu0 %v973
  %1011 = vmatpush.bf16.msra.mxu0 %v972
  %1012 = vmatmul.bf16.gmra.mxu0 %v904
  %v1013 = vpop.f32.mrf.mxu0
  %v1014 = vadd.f32 0.0, %v1013
  %v1015 = vpop.f32.mrf.mxu0
  %1016 = vdwg.mxu0
  %1017 = vmatpush.bf16.msra.mxu0 %v987
  %1018 = vmatpush.bf16.msra.mxu0 %v986
  %1019 = vmatpush.bf16.msra.mxu0 %v985
  %1020 = vmatpush.bf16.msra.mxu0 %v984
  %1021 = vmatpush.bf16.msra.mxu0 %v983
  %1022 = vmatpush.bf16.msra.mxu0 %v982
  %1023 = vmatpush.bf16.msra.mxu0 %v981
  %1024 = vmatpush.bf16.msra.mxu0 %v980
  %1025 = vmatmul.bf16.gmra.mxu0 %v905
  %v1026 = vpop.f32.mrf.mxu0
  %v1027 = vadd.f32 %v1014, %v1026
  %v1028 = vpop.f32.mrf.mxu0
  %1029 = vdwg.mxu0
  %v1030 = vadd.f32 %v863, %v1027
  %v1031 = vld [vmem:[%s2] sm:$0x1]
  %v1033 = vperm.slane %v1031, 0
  %v1035 = vadd.f32 %v1030, %v1033
  %v1036 = vmax.f32 %v1035, 0.0
  %v1037 = vpack.c.bf16 %v1036, %v1036
  %s1038 = scalar_lea.vmem %s3, 2
  %1039 = vst [vmem:[%s1038] sm:$0x3] %v1037
  // Predicated region
  $region14: #{vae_forward.11} parent=0 // pred_check
    _
  $region15: #{vae_forward.11} parent=0 // pred_check_branch
    %1041 = sbr.rel (0) target = $region17
  $region16: #{vae_forward.11} parent=0 // pred_region
    _
  $region17: #{vae_forward.11} parent=0 // pred_fallthru
    _
  // Predicated region
  $region18: #{vae_forward.11} parent=0 // pred_check
    _
  $region19: #{vae_forward.11} parent=0 // pred_check_branch
    %1043 = sbr.rel (0) target = $region21
  $region20: #{vae_forward.11} parent=0 // pred_region
    _
  $region21: #{vae_forward.11} parent=0 // pred_fallthru
    _

// kernel: vae_forward.13
$region0: #{vae_forward.13}
  #allocation0 [shape = 'u32[]', space=smem, size = 0x4, offset = 0x4, fixed_abs, tag = 'smem constant byte address 0x4 - core index']
  #allocation1 [shape = 'u32[72,128]{1,0:T(1,128)}', space=vmem, size = 0x9000, scoped, tag = 'internal scratch']
  %s0 = inlined_call_operand.vmem [shape: bf16[2,11,64], index: 0, kind: input, shape index: {}]
  %s1 = inlined_call_operand.vmem [shape: bf16[4,64,4], index: 1, kind: input, shape index: {}]
  %s2 = inlined_call_operand.vmem [shape: f32[1,4], index: 2, kind: input, shape index: {}]
  %s3 = inlined_call_operand.vmem [shape: f32[2,10,4], index: 3, kind: input, shape index: {}]
  %s4 = inlined_call_operand.vmem [shape: f32[2,9,4], index: 4, kind: input, shape index: {}]
  %s5 = inlined_call_operand.vmem [shape: f32[2,4,8], index: 5, kind: input, shape index: {}]
  %s6 = inlined_call_operand.vmem [shape: f32[2,4,8], index: 6, kind: input, shape index: {}]
  %s7 = inlined_call_operand.vmem [shape: f32[2,10,4], index: 7, kind: output, shape index: {0}]
  %s8 = inlined_call_operand.vmem [shape: f32[2,9,4], index: 8, kind: output, shape index: {1}]
  %s9 = inlined_call_operand.vmem [shape: f32[3], index: 9, kind: output, shape index: {2}]
  %10 = xla_tuple %s7, %s8, %s9
  %s11 = sld [smem:[#allocation0]]
  $region54: #{vae_forward.13} parent=0
    _
  %s13 = ssub.s32 1, %s11
  %s14 = scalar_select 0, %s13, %s11
  $region1: #{vae_forward.13} parent=0
    #allocation2 [shape = 'u8[512]{0}', space=smem, size = 0x200, scoped, tag = 'output window, operand 2, single buffered']
    #allocation3 [shape = 's32[1]{0}', space=sflag, size = 0x4, scoped, tag = 'scoped memory for vae_forward.13']
    %15 = vsyncpa [#allocation3], 0
    // Predicated region
    $region2: #{vae_forward.13} parent=1 // pred_check
      _
    $region3: #{vae_forward.13} parent=1 // pred_check_branch
      %17 = sbr.rel (0) target = $region5
    $region4: #{vae_forward.13} parent=1 // pred_region
      _
    $region5: #{vae_forward.13} parent=1 // pred_fallthru
      _
    // Predicated region
    $region6: #{vae_forward.13} parent=1 // pred_check
      _
    $region7: #{vae_forward.13} parent=1 // pred_check_branch
      %19 = sbr.rel (0) target = $region9
    $region8: #{vae_forward.13} parent=1 // pred_region
      _
    $region9: #{vae_forward.13} parent=1 // pred_fallthru
      _
    // Predicated region
    $region10: #{vae_forward.13} parent=1 // pred_check
      _
    $region11: #{vae_forward.13} parent=1 // pred_check_branch
      %21 = sbr.rel (0) target = $region13
    $region12: #{vae_forward.13} parent=1 // pred_region
      _
    $region13: #{vae_forward.13} parent=1 // pred_fallthru
      _
    // Predicated region
    $region14: #{vae_forward.13} parent=1 // pred_check
      _
    $region15: #{vae_forward.13} parent=1 // pred_check_branch
      %23 = sbr.rel (0) target = $region17
    $region16: #{vae_forward.13} parent=1 // pred_region
      _
    $region17: #{vae_forward.13} parent=1 // pred_fallthru
      _
    // Predicated region
    $region18: #{vae_forward.13} parent=1 // pred_check
      _
    $region19: #{vae_forward.13} parent=1 // pred_check_branch
      %25 = sbr.rel (0) target = $region21
    $region20: #{vae_forward.13} parent=1 // pred_region
      _
    $region21: #{vae_forward.13} parent=1 // pred_fallthru
      _
    // Predicated region
    $region22: #{vae_forward.13} parent=1 // pred_check
      _
    $region23: #{vae_forward.13} parent=1 // pred_check_branch
      %27 = sbr.rel (0) target = $region25
    $region24: #{vae_forward.13} parent=1 // pred_region
      _
    $region25: #{vae_forward.13} parent=1 // pred_fallthru
      _
    // Predicated region
    $region26: #{vae_forward.13} parent=1 // pred_check
      _
    $region27: #{vae_forward.13} parent=1 // pred_check_branch
      %29 = sbr.rel (0) target = $region29
    $region28: #{vae_forward.13} parent=1 // pred_region
      _
    $region29: #{vae_forward.13} parent=1 // pred_fallthru
      _
    %v31 = vld [vmem:[%s0] sm:$0xf]
    %v32 = vld [vmem:[%s0 + $0x4] sm:$0x1]
    %v33 = vld [vmem:[%s0 + $0x4] sm:$0x3]
    %s34 = scalar_lea.vmem %s1, 96
    %v35 = vld [vmem:[%s34] sm:$0xf]
    %v36 = vld [vmem:[%s34 + $0x4] sm:$0xf]
    %v37 = vld [vmem:[%s34 + $0x8] sm:$0xf]
    %v38 = vld [vmem:[%s34 + $0xc] sm:$0xf]
    %v39 = vld [vmem:[%s34 + $0x10] sm:$0xf]
    %v40 = vld [vmem:[%s34 + $0x14] sm:$0xf]
    %v41 = vld [vmem:[%s34 + $0x18] sm:$0xf]
    %v42 = vld [vmem:[%s34 + $0x1c] sm:$0xf]
    %s43 = scalar_lea.vmem %s1, 32
    %v44 = vld [vmem:[%s43] sm:$0xf]
    %v45 = vld [vmem:[%s43 + $0x4] sm:$0xf]
    %v46 = vld [vmem:[%s43 + $0x8] sm:$0xf]
    %v47 = vld [vmem:[%s43 + $0xc] sm:$0xf]
    %v48 = vld [vmem:[%s43 + $0x10] sm:$0xf]
    %v49 = vld [vmem:[%s43 + $0x14] sm:$0xf]
    %v50 = vld [vmem:[%s43 + $0x18] sm:$0xf]
    %v51 = vld [vmem:[%s43 + $0x1c] sm:$0xf]
    %v54 = vunpack.c.l.b16 %v31
    %v55 = vunpack.c.l.b16 %v33
    %v56 = vpack.c.b16 %v55, %v54
    %v58 = vshrl.u32 %v56, 16
    %v60 = vshll.u32 %v56, 16
    %v62 = vrot.slane %v60, 1
    %v63 = vor.u32 %v58, %v62
    %v72 = vunpack.c.l.b16 %v44
    %v73 = vunpack.c.l.b16 %v45
    %v74 = vunpack.c.l.b16 %v46
    %v75 = vunpack.c.l.b16 %v47
    %v76 = vunpack.c.l.b16 %v48
    %v77 = vunpack.c.l.b16 %v49
    %v78 = vunpack.c.l.b16 %v50
    %v79 = vunpack.c.l.b16 %v51
    %v80 = vpack.c.b16 %v73, %v72
    %v81 = vpack.c.b16 %v75, %v74
    %v82 = vpack.c.b16 %v77, %v76
    %v83 = vpack.c.b16 %v79, %v78
    %vm88 = vcmask 523264
    %v90 = vsel %vm88, %v63, 0
    %92 = vmatpush.bf16.msra.mxu0 0
    %93 = vmatpush.bf16.msra.mxu0 0
    %94 = vmatpush.bf16.msra.mxu0 0
    %95 = vmatpush.bf16.msra.mxu0 0
    %96 = vmatpush.bf16.msra.mxu0 %v83
    %97 = vmatpush.bf16.msra.mxu0 %v82
    %98 = vmatpush.bf16.msra.mxu0 %v81
    %99 = vmatpush.bf16.msra.mxu0 %v80
    %100 = vmatmul.bf16.gmra.mxu0 %v90
    %v101 = vpop.f32.mrf.mxu0
    %v102 = vadd.f32 0.0, %v101
    %v103 = vpop.f32.mrf.mxu0
    %v104 = vadd.f32 0.0, %v103
    %105 = vdwg.mxu0
    %v107 = vunpack.c.l.b16 %v32
    %v108 = vpack.c.b16 %v107, %v54
    %v117 = vunpack.c.l.b16 %v35
    %v118 = vunpack.c.l.b16 %v36
    %v119 = vunpack.c.l.b16 %v37
    %v120 = vunpack.c.l.b16 %v38
    %v121 = vunpack.c.l.b16 %v39
    %v122 = vunpack.c.l.b16 %v40
    %v123 = vunpack.c.l.b16 %v41
    %v124 = vunpack.c.l.b16 %v42
    %v125 = vpack.c.b16 %v118, %v117
    %v126 = vpack.c.b16 %v120, %v119
    %v127 = vpack.c.b16 %v122, %v121
    %v128 = vpack.c.b16 %v124, %v123
    %v134 = vsel %vm88, %v108, 0
    %136 = vmatpush.bf16.msra.mxu0 0
    %137 = vmatpush.bf16.msra.mxu0 0
    %138 = vmatpush.bf16.msra.mxu0 0
    %139 = vmatpush.bf16.msra.mxu0 0
    %140 = vmatpush.bf16.msra.mxu0 %v128
    %141 = vmatpush.bf16.msra.mxu0 %v127
    %142 = vmatpush.bf16.msra.mxu0 %v126
    %143 = vmatpush.bf16.msra.mxu0 %v125
    %144 = vmatmul.bf16.gmra.mxu0 %v134
    %v145 = vpop.f32.mrf.mxu0
    %v146 = vadd.f32 %v102, %v145
    %v147 = vpop.f32.mrf.mxu0
    %v148 = vadd.f32 %v104, %v147
    %149 = vdwg.mxu0
    %v150 = vld [vmem:[%s2] sm:$0x1]
    %v152 = vperm.slane %v150, 0
    %v154 = vadd.f32 %v146, %v152
    %v155 = vadd.f32 %v148, %v152
    %v156 = vld [vmem:[%s0] sm:$0xe]
    %s157 = scalar_lea.vmem %s1, 64
    %v158 = vld [vmem:[%s157] sm:$0xf]
    %v159 = vld [vmem:[%s157 + $0x4] sm:$0xf]
    %v160 = vld [vmem:[%s157 + $0x8] sm:$0xf]
    %v161 = vld [vmem:[%s157 + $0xc] sm:$0xf]
    %v162 = vld [vmem:[%s157 + $0x10] sm:$0xf]
    %v163 = vld [vmem:[%s157 + $0x14] sm:$0xf]
    %v164 = vld [vmem:[%s157 + $0x18] sm:$0xf]
    %v165 = vld [vmem:[%s157 + $0x1c] sm:$0xf]
    %v166 = vld [vmem:[%s1] sm:$0xf]
    %v167 = vld [vmem:[%s1 + $0x4] sm:$0xf]
    %v168 = vld [vmem:[%s1 + $0x8] sm:$0xf]
    %v169 = vld [vmem:[%s1 + $0xc] sm:$0xf]
    %v170 = vld [vmem:[%s1 + $0x10] sm:$0xf]
    %v171 = vld [vmem:[%s1 + $0x14] sm:$0xf]
    %v172 = vld [vmem:[%s1 + $0x18] sm:$0xf]
    %v173 = vld [vmem:[%s1 + $0x1c] sm:$0xf]
    %v175 = vunpack.c.l.b16 %v156
    %v176 = vpack.c.b16 %v55, %v175
    %v177 = vrot.slane %v176, 1
    %v186 = vunpack.c.l.b16 %v166
    %v187 = vunpack.c.l.b16 %v167
    %v188 = vunpack.c.l.b16 %v168
    %v189 = vunpack.c.l.b16 %v169
    %v190 = vunpack.c.l.b16 %v170
    %v191 = vunpack.c.l.b16 %v171
    %v192 = vunpack.c.l.b16 %v172
    %v193 = vunpack.c.l.b16 %v173
    %v194 = vpack.c.b16 %v187, %v186
    %v195 = vpack.c.b16 %v189, %v188
    %v196 = vpack.c.b16 %v191, %v190
    %v197 = vpack.c.b16 %v193, %v192
    %v203 = vsel %vm88, %v177, 0
    %205 = vmatpush.bf16.msra.mxu0 0
    %206 = vmatpush.bf16.msra.mxu0 0
    %207 = vmatpush.bf16.msra.mxu0 0
    %208 = vmatpush.bf16.msra.mxu0 0
    %209 = vmatpush.bf16.msra.mxu0 %v197
    %210 = vmatpush.bf16.msra.mxu0 %v196
    %211 = vmatpush.bf16.msra.mxu0 %v195
    %212 = vmatpush.bf16.msra.mxu0 %v194
    %213 = vmatmul.bf16.gmra.mxu0 %v203
    %v214 = vpop.f32.mrf.mxu0
    %v215 = vadd.f32 0.0, %v214
    %v216 = vpop.f32.mrf.mxu0
    %v217 = vadd.f32 0.0, %v216
    %218 = vdwg.mxu0
    %v219 = vshrl.u32 %v108, 16
    %v221 = vshll.u32 %v108, 16
    %v223 = vrot.slane %v221, 1
    %v224 = vor.u32 %v219, %v223
    %v233 = vunpack.c.l.b16 %v158
    %v234 = vunpack.c.l.b16 %v159
    %v235 = vunpack.c.l.b16 %v160
    %v236 = vunpack.c.l.b16 %v161
    %v237 = vunpack.c.l.b16 %v162
    %v238 = vunpack.c.l.b16 %v163
    %v239 = vunpack.c.l.b16 %v164
    %v240 = vunpack.c.l.b16 %v165
    %v241 = vpack.c.b16 %v234, %v233
    %v242 = vpack.c.b16 %v236, %v235
    %v243 = vpack.c.b16 %v238, %v237
    %v244 = vpack.c.b16 %v240, %v239
    %v250 = vsel %vm88, %v224, 0
    %252 = vmatpush.bf16.msra.mxu0 0
    %253 = vmatpush.bf16.msra.mxu0 0
    %254 = vmatpush.bf16.msra.mxu0 0
    %255 = vmatpush.bf16.msra.mxu0 0
    %256 = vmatpush.bf16.msra.mxu0 %v244
    %257 = vmatpush.bf16.msra.mxu0 %v243
    %258 = vmatpush.bf16.msra.mxu0 %v242
    %259 = vmatpush.bf16.msra.mxu0 %v241
    %260 = vmatmul.bf16.gmra.mxu0 %v250
    %v261 = vpop.f32.mrf.mxu0
    %v262 = vadd.f32 %v215, %v261
    %v263 = vpop.f32.mrf.mxu0
    %v264 = vadd.f32 %v217, %v263
    %265 = vdwg.mxu0
    %v266 = vadd.f32 %v262, %v152
    %v267 = vadd.f32 %v264, %v152
    %v268 = vld [vmem:[%s3] sm:$0xff]
    %v269 = vld [vmem:[%s3 + $0x8] sm:$0x3]
    %v270 = vsub.f32 %v154, %v268
    %v271 = vsub.f32 %v155, %v269
    %v272 = vld [vmem:[%s4] sm:$0xff]
    %v273 = vld [vmem:[%s4 + $0x8] sm:$0x1]
    %v274 = vsub.f32 %v266, %v272
    %v275 = vsub.f32 %v267, %v273
    %v276 = vmul.f32 %v270, %v270
    %v277 = vmul.f32 %v271, %v271
    %vm278 = vcmask 31744
    %v279 = vsel %vm278, %v276, 0.0
    %vm280 = vcmask 25600
    %v281 = vsel %vm280, %v277, 0.0
    %v282 = vadd.f32 %v279, %v281
    %283 = vadd.xlane.f32.xlu0 %v282
    %v284 = vpop.xlane.xlu0 %283
    %v285 = vrot.slane %v284, 4
    %v286 = vadd.f32 %v284, %v285
    %v287 = vrot.slane %v286, 2
    %v288 = vadd.f32 %v286, %v287
    %v289 = vrot.slane %v288, 1
    %v290 = vadd.f32 %v288, %v289
    %s291 = vtos %v290
    %s292 = sadd.f32 %s291, 0.0
    %v293 = vmul.f32 %v274, %v274
    %v294 = vmul.f32 %v275, %v275
    %v295 = vsel %vm278, %v293, 0.0
    %vm296 = vcmask 24576
    %v297 = vsel %vm296, %v294, 0.0
    %v298 = vadd.f32 %v295, %v297
    %299 = vadd.xlane.f32.xlu0 %v298
    %v300 = vpop.xlane.xlu0 %299
    %v301 = vrot.slane %v300, 4
    %v302 = vadd.f32 %v300, %v301
    %v303 = vrot.slane %v302, 2
    %v304 = vadd.f32 %v302, %v303
    %v305 = vrot.slane %v304, 1
    %v306 = vadd.f32 %v304, %v305
    %s307 = vtos %v306
    %s308 = sadd.f32 %s292, %s307
    %309 = vst.msk [vmem:[%s7] sm:$0xff] %vm278, %v154
    %310 = vst.msk [vmem:[%s7 + $0x8] sm:$0x3] %vm280, %v155
    %311 = vst.msk [vmem:[%s8] sm:$0xff] %vm278, %v266
    %312 = vst.msk [vmem:[%s8 + $0x8] sm:$0x1] %vm296, %v267
    %v313 = vld [vmem:[%s5] sm:$0xf]
    %v314 = vld [vmem:[%s6] sm:$0xf]
    %v315 = vadd.f32 %v314, 1.0
    %v316 = vmul.f32 %v313, %v313
    %v317 = vsub.f32 %v315, %v316
    %v318 = vmul.f32 %v314, 1.442695
    %v319 = vpow.pop %v318
    %v320 = vsub.f32 %v317, %v319
    %vm321 = vcmask 60416
    %v322 = vsel %vm321, %v320, 0.0
    %323 = vadd.xlane.f32.xlu0 %v322
    %v324 = vpop.xlane.xlu0 %323
    %v325 = vrot.slane %v324, 4
    %v326 = vadd.f32 %v324, %v325
    %v327 = vrot.slane %v326, 2
    %v328 = vadd.f32 %v326, %v327
    %v329 = vrot.slane %v328, 1
    %v330 = vadd.f32 %v328, %v329
    %s331 = vtos %v330
    %s332 = sadd.f32 %s331, 0.0
    %s333 = scalar_lea.vmem %s0, 8
    %v334 = vld [vmem:[%s333] sm:$0xf]
    %v335 = vld [vmem:[%s333 + $0x4] sm:$0x1]
    %v336 = vld [vmem:[%s333 + $0x4] sm:$0x3]
    %v337 = vld [vmem:[%s34] sm:$0xf]
    %v338 = vld [vmem:[%s34 + $0x4] sm:$0xf]
    %v339 = vld [vmem:[%s34 + $0x8] sm:$0xf]
    %v340 = vld [vmem:[%s34 + $0xc] sm:$0xf]
    %v341 = vld [vmem:[%s34 + $0x10] sm:$0xf]
    %v342 = vld [vmem:[%s34 + $0x14] sm:$0xf]
    %v343 = vld [vmem:[%s34 + $0x18] sm:$0xf]
    %v344 = vld [vmem:[%s34 + $0x1c] sm:$0xf]
    %v345 = vld [vmem:[%s43] sm:$0xf]
    %v346 = vld [vmem:[%s43 + $0x4] sm:$0xf]
    %v347 = vld [vmem:[%s43 + $0x8] sm:$0xf]
    %v348 = vld [vmem:[%s43 + $0xc] sm:$0xf]
    %v349 = vld [vmem:[%s43 + $0x10] sm:$0xf]
    %v350 = vld [vmem:[%s43 + $0x14] sm:$0xf]
    %v351 = vld [vmem:[%s43 + $0x18] sm:$0xf]
    %v352 = vld [vmem:[%s43 + $0x1c] sm:$0xf]
    %v355 = vunpack.c.l.b16 %v334
    %v356 = vunpack.c.l.b16 %v336
    %v357 = vpack.c.b16 %v356, %v355
    %v359 = vshrl.u32 %v357, 16
    %v361 = vshll.u32 %v357, 16
    %v363 = vrot.slane %v361, 1
    %v364 = vor.u32 %v359, %v363
    %v373 = vunpack.c.l.b16 %v345
    %v374 = vunpack.c.l.b16 %v346
    %v375 = vunpack.c.l.b16 %v347
    %v376 = vunpack.c.l.b16 %v348
    %v377 = vunpack.c.l.b16 %v349
    %v378 = vunpack.c.l.b16 %v350
    %v379 = vunpack.c.l.b16 %v351
    %v380 = vunpack.c.l.b16 %v352
    %v381 = vpack.c.b16 %v374, %v373
    %v382 = vpack.c.b16 %v376, %v375
    %v383 = vpack.c.b16 %v378, %v377
    %v384 = vpack.c.b16 %v380, %v379
    %v390 = vsel %vm88, %v364, 0
    %392 = vmatpush.bf16.msra.mxu0 0
    %393 = vmatpush.bf16.msra.mxu0 0
    %394 = vmatpush.bf16.msra.mxu0 0
    %395 = vmatpush.bf16.msra.mxu0 0
    %396 = vmatpush.bf16.msra.mxu0 %v384
    %397 = vmatpush.bf16.msra.mxu0 %v383
    %398 = vmatpush.bf16.msra.mxu0 %v382
    %399 = vmatpush.bf16.msra.mxu0 %v381
    %400 = vmatmul.bf16.gmra.mxu0 %v390
    %v401 = vpop.f32.mrf.mxu0
    %v402 = vadd.f32 0.0, %v401
    %v403 = vpop.f32.mrf.mxu0
    %v404 = vadd.f32 0.0, %v403
    %405 = vdwg.mxu0
    %v407 = vunpack.c.l.b16 %v335
    %v408 = vpack.c.b16 %v407, %v355
    %v417 = vunpack.c.l.b16 %v337
    %v418 = vunpack.c.l.b16 %v338
    %v419 = vunpack.c.l.b16 %v339
    %v420 = vunpack.c.l.b16 %v340
    %v421 = vunpack.c.l.b16 %v341
    %v422 = vunpack.c.l.b16 %v342
    %v423 = vunpack.c.l.b16 %v343
    %v424 = vunpack.c.l.b16 %v344
    %v425 = vpack.c.b16 %v418, %v417
    %v426 = vpack.c.b16 %v420, %v419
    %v427 = vpack.c.b16 %v422, %v421
    %v428 = vpack.c.b16 %v424, %v423
    %v434 = vsel %vm88, %v408, 0
    %436 = vmatpush.bf16.msra.mxu0 0
    %437 = vmatpush.bf16.msra.mxu0 0
    %438 = vmatpush.bf16.msra.mxu0 0
    %439 = vmatpush.bf16.msra.mxu0 0
    %440 = vmatpush.bf16.msra.mxu0 %v428
    %441 = vmatpush.bf16.msra.mxu0 %v427
    %442 = vmatpush.bf16.msra.mxu0 %v426
    %443 = vmatpush.bf16.msra.mxu0 %v425
    %444 = vmatmul.bf16.gmra.mxu0 %v434
    %v445 = vpop.f32.mrf.mxu0
    %v446 = vadd.f32 %v402, %v445
    %v447 = vpop.f32.mrf.mxu0
    %v448 = vadd.f32 %v404, %v447
    %449 = vdwg.mxu0
    %v450 = vld [vmem:[%s2] sm:$0x1]
    %v452 = vperm.slane %v450, 0
    %v454 = vadd.f32 %v446, %v452
    %v455 = vadd.f32 %v448, %v452
    %v456 = vld [vmem:[%s333] sm:$0xe]
    %v457 = vld [vmem:[%s157] sm:$0xf]
    %v458 = vld [vmem:[%s157 + $0x4] sm:$0xf]
    %v459 = vld [vmem:[%s157 + $0x8] sm:$0xf]
    %v460 = vld [vmem:[%s157 + $0xc] sm:$0xf]
    %v461 = vld [vmem:[%s157 + $0x10] sm:$0xf]
    %v462 = vld [vmem:[%s157 + $0x14] sm:$0xf]
    %v463 = vld [vmem:[%s157 + $0x18] sm:$0xf]
    %v464 = vld [vmem:[%s157 + $0x1c] sm:$0xf]
    %v465 = vld [vmem:[%s1] sm:$0xf]
    %v466 = vld [vmem:[%s1 + $0x4] sm:$0xf]
    %v467 = vld [vmem:[%s1 + $0x8] sm:$0xf]
    %v468 = vld [vmem:[%s1 + $0xc] sm:$0xf]
    %v469 = vld [vmem:[%s1 + $0x10] sm:$0xf]
    %v470 = vld [vmem:[%s1 + $0x14] sm:$0xf]
    %v471 = vld [vmem:[%s1 + $0x18] sm:$0xf]
    %v472 = vld [vmem:[%s1 + $0x1c] sm:$0xf]
    %v474 = vunpack.c.l.b16 %v456
    %v475 = vpack.c.b16 %v356, %v474
    %v476 = vrot.slane %v475, 1
    %v485 = vunpack.c.l.b16 %v465
    %v486 = vunpack.c.l.b16 %v466
    %v487 = vunpack.c.l.b16 %v467
    %v488 = vunpack.c.l.b16 %v468
    %v489 = vunpack.c.l.b16 %v469
    %v490 = vunpack.c.l.b16 %v470
    %v491 = vunpack.c.l.b16 %v471
    %v492 = vunpack.c.l.b16 %v472
    %v493 = vpack.c.b16 %v486, %v485
    %v494 = vpack.c.b16 %v488, %v487
    %v495 = vpack.c.b16 %v490, %v489
    %v496 = vpack.c.b16 %v492, %v491
    %v502 = vsel %vm88, %v476, 0
    %504 = vmatpush.bf16.msra.mxu0 0
    %505 = vmatpush.bf16.msra.mxu0 0
    %506 = vmatpush.bf16.msra.mxu0 0
    %507 = vmatpush.bf16.msra.mxu0 0
    %508 = vmatpush.bf16.msra.mxu0 %v496
    %509 = vmatpush.bf16.msra.mxu0 %v495
    %510 = vmatpush.bf16.msra.mxu0 %v494
    %511 = vmatpush.bf16.msra.mxu0 %v493
    %512 = vmatmul.bf16.gmra.mxu0 %v502
    %v513 = vpop.f32.mrf.mxu0
    %v514 = vadd.f32 0.0, %v513
    %v515 = vpop.f32.mrf.mxu0
    %v516 = vadd.f32 0.0, %v515
    %517 = vdwg.mxu0
    %v518 = vshrl.u32 %v408, 16
    %v520 = vshll.u32 %v408, 16
    %v522 = vrot.slane %v520, 1
    %v523 = vor.u32 %v518, %v522
    %v532 = vunpack.c.l.b16 %v457
    %v533 = vunpack.c.l.b16 %v458
    %v534 = vunpack.c.l.b16 %v459
    %v535 = vunpack.c.l.b16 %v460
    %v536 = vunpack.c.l.b16 %v461
    %v537 = vunpack.c.l.b16 %v462
    %v538 = vunpack.c.l.b16 %v463
    %v539 = vunpack.c.l.b16 %v464
    %v540 = vpack.c.b16 %v533, %v532
    %v541 = vpack.c.b16 %v535, %v534
    %v542 = vpack.c.b16 %v537, %v536
    %v543 = vpack.c.b16 %v539, %v538
    %v549 = vsel %vm88, %v523, 0
    %551 = vmatpush.bf16.msra.mxu0 0
    %552 = vmatpush.bf16.msra.mxu0 0
    %553 = vmatpush.bf16.msra.mxu0 0
    %554 = vmatpush.bf16.msra.mxu0 0
    %555 = vmatpush.bf16.msra.mxu0 %v543
    %556 = vmatpush.bf16.msra.mxu0 %v542
    %557 = vmatpush.bf16.msra.mxu0 %v541
    %558 = vmatpush.bf16.msra.mxu0 %v540
    %559 = vmatmul.bf16.gmra.mxu0 %v549
    %v560 = vpop.f32.mrf.mxu0
    %v561 = vadd.f32 %v514, %v560
    %v562 = vpop.f32.mrf.mxu0
    %v563 = vadd.f32 %v516, %v562
    %564 = vdwg.mxu0
    %v565 = vadd.f32 %v561, %v452
    %v566 = vadd.f32 %v563, %v452
    %s567 = scalar_lea.vmem %s3, 16
    %v568 = vld [vmem:[%s567] sm:$0xff]
    %v569 = vld [vmem:[%s567 + $0x8] sm:$0x3]
    %v570 = vsub.f32 %v454, %v568
    %v571 = vsub.f32 %v455, %v569
    %s572 = scalar_lea.vmem %s4, 16
    %v573 = vld [vmem:[%s572] sm:$0xff]
    %v574 = vld [vmem:[%s572 + $0x8] sm:$0x1]
    %v575 = vsub.f32 %v565, %v573
    %v576 = vsub.f32 %v566, %v574
    %v577 = vmul.f32 %v570, %v570
    %v578 = vmul.f32 %v571, %v571
    %v579 = vsel %vm278, %v577, 0.0
    %v580 = vsel %vm280, %v578, 0.0
    %v581 = vadd.f32 %v579, %v580
    %582 = vadd.xlane.f32.xlu0 %v581
    %v583 = vpop.xlane.xlu0 %582
    %v584 = vrot.slane %v583, 4
    %v585 = vadd.f32 %v583, %v584
    %v586 = vrot.slane %v585, 2
    %v587 = vadd.f32 %v585, %v586
    %v588 = vrot.slane %v587, 1
    %v589 = vadd.f32 %v587, %v588
    %s590 = vtos %v589
    %s591 = sadd.f32 %s308, %s590
    %v592 = vmul.f32 %v575, %v575
    %v593 = vmul.f32 %v576, %v576
    %v594 = vsel %vm278, %v592, 0.0
    %v595 = vsel %vm296, %v593, 0.0
    %v596 = vadd.f32 %v594, %v595
    %597 = vadd.xlane.f32.xlu0 %v596
    %v598 = vpop.xlane.xlu0 %597
    %v599 = vrot.slane %v598, 4
    %v600 = vadd.f32 %v598, %v599
    %v601 = vrot.slane %v600, 2
    %v602 = vadd.f32 %v600, %v601
    %v603 = vrot.slane %v602, 1
    %v604 = vadd.f32 %v602, %v603
    %s605 = vtos %v604
    %s606 = sadd.f32 %s591, %s605
    %s607 = scalar_lea.vmem %s7, 16
    %608 = vst.msk [vmem:[%s607] sm:$0xff] %vm278, %v454
    %609 = vst.msk [vmem:[%s607 + $0x8] sm:$0x3] %vm280, %v455
    %s610 = scalar_lea.vmem %s8, 16
    %611 = vst.msk [vmem:[%s610] sm:$0xff] %vm278, %v565
    %612 = vst.msk [vmem:[%s610 + $0x8] sm:$0x1] %vm296, %v566
    %s613 = scalar_lea.vmem %s5, 4
    %v614 = vld [vmem:[%s613] sm:$0xf]
    %s615 = scalar_lea.vmem %s6, 4
    %v616 = vld [vmem:[%s615] sm:$0xf]
    %v617 = vadd.f32 %v616, 1.0
    %v618 = vmul.f32 %v614, %v614
    %v619 = vsub.f32 %v617, %v618
    %v620 = vmul.f32 %v616, 1.442695
    %v621 = vpow.pop %v620
    %v622 = vsub.f32 %v619, %v621
    %v623 = vsel %vm321, %v622, 0.0
    %624 = vadd.xlane.f32.xlu0 %v623
    %v625 = vpop.xlane.xlu0 %624
    %v626 = vrot.slane %v625, 4
    %v627 = vadd.f32 %v625, %v626
    %v628 = vrot.slane %v627, 2
    %v629 = vadd.f32 %v627, %v628
    %v630 = vrot.slane %v629, 1
    %v631 = vadd.f32 %v629, %v630
    %s632 = vtos %v631
    %s633 = sadd.f32 %s332, %s632
    %v634 = vrcp.pop 152.0
    %v635 = vmul.f32 152.0, %v634
    %v636 = vsub.f32 1.0, %v635
    %v637 = vmul.f32 %v634, %v636
    %v638 = vadd.f32 %v634, %v637
    %vm639 = vweird.f32 %v634
    %v640 = vsel %vm639, %v634, %v638
    %s641 = vtos %v640
    %s642 = smul.f32 %s606, %s641
    %s643 = smul.f32 %s633, -0.5
    %v644 = vrcp.pop 2.0
    %v645 = vmul.f32 2.0, %v644
    %v646 = vsub.f32 1.0, %v645
    %v647 = vmul.f32 %v644, %v646
    %v648 = vadd.f32 %v644, %v647
    %vm649 = vweird.f32 %v644
    %v650 = vsel %vm649, %v644, %v648
    %s651 = vtos %v650
    %s652 = smul.f32 %s643, %s651
    %s653 = sadd.f32 %s642, %s652
    %s654 = scalar_lea.smem [#allocation2], 0
    %655 = sst [smem:[%s654]] %s653
    %s656 = scalar_lea.smem [#allocation2], 1
    %657 = sst [smem:[%s656]] %s642
    %s658 = scalar_lea.smem [#allocation2], 2
    %659 = sst [smem:[%s658]] %s652
    // Predicated region
    $region30: #{vae_forward.13} parent=1 // pred_check
      _
    $region31: #{vae_forward.13} parent=1 // pred_check_branch
      %661 = sbr.rel (0) target = $region33
    $region32: #{vae_forward.13} parent=1 // pred_region
      _
    $region33: #{vae_forward.13} parent=1 // pred_fallthru
      _
    // Predicated region
    $region34: #{vae_forward.13} parent=1 // pred_check
      _
    $region35: #{vae_forward.13} parent=1 // pred_check_branch
      %663 = sbr.rel (0) target = $region37
    $region36: #{vae_forward.13} parent=1 // pred_region
      _
    $region37: #{vae_forward.13} parent=1 // pred_fallthru
      _
    // Predicated region
    $region38: #{vae_forward.13} parent=1 // pred_check
      _
    $region39: #{vae_forward.13} parent=1 // pred_check_branch
      %665 = sbr.rel (0) target = $region41
    $region40: #{vae_forward.13} parent=1 // pred_region
      %667 = vsyncadd [#allocation3], 0
      %s669 = sshll.u32 %s9, 4
      %s670 = int_to_ptr.vmem [resolvable:$true] %s669
      %672 = dma.smem_to_vmem [#allocation2], 16, %s670, [#allocation3]
    $region41: #{vae_forward.13} parent=1 // pred_fallthru
      _
    // Predicated region
    $region42: #{vae_forward.13} parent=1 // pred_check
      _
    $region43: #{vae_forward.13} parent=1 // pred_check_branch
      %674 = sbr.rel (0) target = $region45
    $region44: #{vae_forward.13} parent=1 // pred_region
      _
    $region45: #{vae_forward.13} parent=1 // pred_fallthru
      _
    // Predicated region
    $region46: #{vae_forward.13} parent=1 // pred_check
      _
    $region47: #{vae_forward.13} parent=1 // pred_check_branch
      %676 = sbr.rel (0) target = $region49
    $region48: #{vae_forward.13} parent=1 // pred_region
      _
    $region49: #{vae_forward.13} parent=1 // pred_fallthru
      _
    // Predicated region
    $region50: #{vae_forward.13} parent=1 // pred_check
      _
    $region51: #{vae_forward.13} parent=1 // pred_check_branch
      %678 = sbr.rel (0) target = $region53
    $region52: #{vae_forward.13} parent=1 // pred_region
      %680 = dma.done [#allocation3], 16
    $region53: #{vae_forward.13} parent=1 // pred_fallthru
      _
    %681 = sfence
    %682 = vsyncpa [#allocation3], 1

</llo_original>
